<compile_context>
chip_gen: v7x
topology: tpu7x:2x2x1
jax: 0.10.0
libtpu: 0.0.40
codegen_flags: <defaults>
</compile_context>

<pallas_src>
import functools

import jax
import jax.numpy as jnp
from jax.experimental import pallas as pl
from jax.experimental.pallas import tpu as pltpu


def _round_up(x, m):
    return (x + m - 1) // m * m


def _apply_act(y, act):
    if act == "leaky01":            # nn.LeakyReLU() default slope 0.01
        return jnp.where(y > 0, y, 0.01 * y)
    if act == "none":
        return y
    raise ValueError(act)


# ----------------------------------------------------------------------------
# Pallas kernels
# ----------------------------------------------------------------------------
def _mlp2_kernel(x_ref, w1_ref, b1_ref, w2_ref, b2_ref, o_ref, *, act1, act2):
    """Fused two-layer MLP on a row tile: act2(act1(x@W1 + b1) @ W2 + b2)."""
    h = jnp.dot(x_ref[...], w1_ref[...], preferred_element_type=jnp.float32)
    h = _apply_act(h + b1_ref[...], act1)
    y = jnp.dot(h.astype(w2_ref.dtype), w2_ref[...],
                preferred_element_type=jnp.float32)
    y = _apply_act(y + b2_ref[...], act2)
    o_ref[...] = y.astype(o_ref.dtype)


def mlp2(x, w1, b1, w2, b2, act1, act2, tile_rows, out_dtype=jnp.float32):
    n, k1 = x.shape
    m1 = w1.shape[1]
    m2 = w2.shape[1]
    assert n % tile_rows == 0
    kernel = functools.partial(_mlp2_kernel, act1=act1, act2=act2)
    return pl.pallas_call(
        kernel,
        out_shape=jax.ShapeDtypeStruct((n, m2), out_dtype),
        grid=(n // tile_rows,),
        in_specs=[
            pl.BlockSpec((tile_rows, k1), lambda i: (i, 0)),
            pl.BlockSpec((k1, m1), lambda i: (0, 0)),
            pl.BlockSpec((1, m1), lambda i: (0, 0)),
            pl.BlockSpec((m1, m2), lambda i: (0, 0)),
            pl.BlockSpec((1, m2), lambda i: (0, 0)),
        ],
        out_specs=pl.BlockSpec((tile_rows, m2), lambda i: (i, 0)),
        compiler_params=pltpu.CompilerParams(dimension_semantics=("parallel",)),
    )(x.astype(jnp.bfloat16), w1.astype(jnp.bfloat16),
      b1.reshape(1, m1).astype(jnp.float32),
      w2.astype(jnp.bfloat16), b2.reshape(1, m2).astype(jnp.float32))


def _linear_kernel(x_ref, w_ref, o_ref):
    o_ref[...] = jnp.dot(x_ref[...], w_ref[...],
                         preferred_element_type=jnp.float32).astype(o_ref.dtype)


def linear_nobias(x, w, tile_rows, out_dtype=jnp.bfloat16):
    """y = x @ W (bf16 operands, f32 MXU accumulation, bf16 store)."""
    n, k = x.shape
    m = w.shape[1]
    assert n % tile_rows == 0
    return pl.pallas_call(
        _linear_kernel,
        out_shape=jax.ShapeDtypeStruct((n, m), out_dtype),
        grid=(n // tile_rows,),
        in_specs=[
            pl.BlockSpec((tile_rows, k), lambda i: (i, 0)),
            pl.BlockSpec((k, m), lambda i: (0, 0)),
        ],
        out_specs=pl.BlockSpec((tile_rows, m), lambda i: (i, 0)),
        compiler_params=pltpu.CompilerParams(dimension_semantics=("parallel",)),
    )(x.astype(jnp.bfloat16), w.astype(jnp.bfloat16))


def _gat_attn_kernel(adj_ref, wx_ref, adstw_ref, asrct_ref, b_ref, o_ref, *,
                     heads, c_per_head, tile_rows):
    """Dense GAT attention + aggregation + bias on one dst-row tile.

    e[i,j]   = leaky_relu_0.2(a_dst . wx[i] + a_src . wx[j]) + adj_bias[i,j]
    alpha    = row-softmax(e)          (softmax over sources j, self-loops incl.)
    out[i]   = concat_h(alpha_h @ wx_h) + bias
    """
    # dst rows sliced from the resident full-source wx block (no extra DMA).
    row0 = pl.multiple_of(pl.program_id(0) * tile_rows, tile_rows)
    wx_dst = wx_ref[pl.ds(row0, tile_rows), :]                   # (T, hc) bf16
    # alpha_dst for this dst tile (bf16 MXU, f32 acc, lane-padded RHS).
    a_dst = jnp.dot(wx_dst, adstw_ref[...],
                    preferred_element_type=jnp.float32)          # (T, 128)
    adj_bias = adj_ref[...].astype(jnp.float32)                  # (T, N)
    aggs = []
    for h in range(heads):
        s = a_dst[:, h:h + 1] + asrct_ref[h:h + 1, :]            # (T, N)
        s = jnp.where(s > 0, s, 0.2 * s)                         # LeakyReLU(0.2)
        s = s + adj_bias                                         # -1e30 off-edge
        m = jnp.max(s, axis=1, keepdims=True)
        e = jnp.exp(s - m)
        denom = jnp.sum(e, axis=1, keepdims=True)
        alpha = e * pl.reciprocal(denom, approx=True)            # EUP divide
        agg = jnp.dot(alpha.astype(jnp.bfloat16),
                      wx_ref[:, h * c_per_head:(h + 1) * c_per_head],
                      preferred_element_type=jnp.float32)        # (T, C)
        aggs.append(agg)
    out = aggs[0] if heads == 1 else jnp.concatenate(aggs, axis=1)
    o_ref[...] = (out + b_ref[...]).astype(o_ref.dtype)          # lane-dense store


def gat_conv(p, x, adj_bias, heads, c_per_head, tile_rows,
             out_dtype=jnp.bfloat16):
    """PyG-style GATConv (concat=True, negative_slope=0.2, self-loops added)."""
    n = x.shape[0]
    hc = heads * c_per_head
    wx = linear_nobias(x, p["W"], tile_rows)                     # (n, hc) bf16

    # Per-head attention vectors packed as block-diagonal matrices.
    eyeh = jnp.eye(heads, dtype=jnp.float32)
    a_src_w = (p["a_src"][:, :, None] * eyeh[:, None, :]).reshape(hc, heads)
    a_dst_w = (p["a_dst"][:, :, None] * eyeh[:, None, :]).reshape(hc, heads)
    # Pad a_dst_w to a lane-dense 128-wide RHS (MXU pads to 128 anyway).
    a_dst_w = jnp.zeros((hc, 128), jnp.float32).at[:, :heads].set(a_dst_w)
    # alpha_src as rows (H, N): tiny, precomputed once per layer.
    asrc_t = jnp.dot(wx.astype(jnp.float32), a_src_w).T          # (heads, n)

    kernel = functools.partial(_gat_attn_kernel, heads=heads,
                               c_per_head=c_per_head, tile_rows=tile_rows)
    return pl.pallas_call(
        kernel,
        out_shape=jax.ShapeDtypeStruct((n, hc), out_dtype),
        grid=(n // tile_rows,),
        in_specs=[
            pl.BlockSpec((tile_rows, n), lambda i: (i, 0)),      # adjacency bias tile
            pl.BlockSpec((n, hc), lambda i: (0, 0)),             # wx (all sources)
            pl.BlockSpec((hc, 128), lambda i: (0, 0)),           # block-diag a_dst
            pl.BlockSpec((heads, n), lambda i: (0, 0)),          # alpha_src rows
            pl.BlockSpec((1, hc), lambda i: (0, 0)),             # GAT bias
        ],
        out_specs=pl.BlockSpec((tile_rows, hc), lambda i: (i, 0)),
        compiler_params=pltpu.CompilerParams(dimension_semantics=("parallel",)),
    )(adj_bias, wx, a_dst_w.astype(jnp.bfloat16), asrc_t.astype(jnp.float32),
      p["bias"].reshape(1, hc).astype(jnp.float32))


# ----------------------------------------------------------------------------
# Model glue
# ----------------------------------------------------------------------------
def _build_feature_weight(params, k_pad, emb):
    """Block-diagonal fusion of the four feature projections (+ padded cols)."""
    blocks = [(params["des_w"], params["des_b"]),
              (params["tweet_w"], params["tweet_b"]),
              (params["num_w"], params["num_b"]),
              (params["cat_w"], params["cat_b"])]
    w = jnp.zeros((k_pad, emb), jnp.float32)
    r = 0
    c = 0
    for wb, _ in blocks:
        w = w.at[r:r + wb.shape[0], c:c + wb.shape[1]].set(wb)
        r += wb.shape[0]
        c += wb.shape[1]
    b = jnp.concatenate([bb for _, bb in blocks])
    return w, b


def _build_adj_bias(edge_index, n, n_pad):
    # NOTE: duplicate (dst, src) edges collapse to one (dense formulation).
    src, dst = edge_index[0], edge_index[1]
    adj = jnp.zeros((n_pad, n_pad), jnp.bool_)
    adj = adj.at[dst, src].set(True)
    idx = jnp.arange(n)
    adj = adj.at[idx, idx].set(True)                  # add_self_loops (default)
    return jnp.where(adj, 0.0, -1e30).astype(jnp.bfloat16)


def forward(params, des, tweet, num_prop, cat_prop, edge_index, edge_type=None):
    # edge_type is unused by BotGAT (kept for call-signature parity).
    del edge_type
    n = des.shape[0]
    emb = params["inp_w"].shape[0]
    out_dim = params["out2_w"].shape[1]

    tile = min(128, _round_up(n, 16))
    n_pad = _round_up(n, tile)

    # Fused: [des|tweet|num|cat] block-diag projection + LeakyReLU,
    #        then linear_relu_input — one kernel, lane-dense 128-wide output.
    xc = jnp.concatenate([des, tweet, num_prop, cat_prop], axis=1)
    k_pad = _round_up(xc.shape[1], 128)
    xc = jnp.pad(xc, ((0, n_pad - n), (0, k_pad - xc.shape[1])))
    wf, bf = _build_feature_weight(params, k_pad, emb)
    x = mlp2(xc, wf, bf, params["inp_w"], params["inp_b"],
             "leaky01", "leaky01", tile, out_dtype=jnp.bfloat16)

    adj_bias = _build_adj_bias(edge_index, n, n_pad)

    # gat1: heads=4, 32 per head (concat -> 128); gat2: heads=1, 128.
    x = gat_conv(params["gat1"], x, adj_bias, heads=4,
                 c_per_head=emb // 4, tile_rows=tile)
    # F.dropout(training=False) == identity (inference).
    x = gat_conv(params["gat2"], x, adj_bias, heads=1,
                 c_per_head=emb, tile_rows=tile)

    # Fused output head; final weight zero-padded to 128 cols for lane-dense
    # stores, sliced back to (N, 2) outside the kernel.
    w2p = jnp.zeros((emb, 128), jnp.float32).at[:, :out_dim].set(params["out2_w"])
    b2p = jnp.zeros((128,), jnp.float32).at[:out_dim].set(params["out2_b"])
    out = mlp2(x, params["out1_w"], params["out1_b"], w2p, b2p,
               "leaky01", "none", tile)
    return out[:n, :out_dim]


# ----------------------------------------------------------------------------
# Deterministic parameter init (shapes from BotGAT.__init__)
# ----------------------------------------------------------------------------
def _lin(key, fan_in, fan_out):
    kw, kb = jax.random.split(key)
    bound = 1.0 / (fan_in ** 0.5)
    w = jax.random.uniform(kw, (fan_in, fan_out), jnp.float32, -bound, bound)
    b = jax.random.uniform(kb, (fan_out,), jnp.float32, -bound, bound)
    return w, b


def init_params(key, des_size=768, tweet_size=768, num_prop_size=6,
                cat_prop_size=11, emb=128):
    q = emb // 4
    ks = list(jax.random.split(key, 9))
    p = {}
    p["des_w"], p["des_b"] = _lin(ks[0], des_size, q)
    p["tweet_w"], p["tweet_b"] = _lin(ks[1], tweet_size, q)
    p["num_w"], p["num_b"] = _lin(ks[2], num_prop_size, q)
    p["cat_w"], p["cat_b"] = _lin(ks[3], cat_prop_size, q)
    p["inp_w"], p["inp_b"] = _lin(ks[4], emb, emb)

    def gat(k, in_ch, out_ch, heads):
        k1, k2, k3 = jax.random.split(k, 3)
        s = 1.0 / (in_ch ** 0.5)
        return dict(
            W=jax.random.uniform(k1, (in_ch, heads * out_ch), jnp.float32, -s, s),
            a_src=jax.random.uniform(k2, (heads, out_ch), jnp.float32, -s, s),
            a_dst=jax.random.uniform(k3, (heads, out_ch), jnp.float32, -s, s),
            bias=jnp.zeros((heads * out_ch,), jnp.float32),
        )

    p["gat1"] = gat(ks[5], emb, q, 4)
    p["gat2"] = gat(ks[6], emb, emb, 1)
    p["out1_w"], p["out1_b"] = _lin(ks[7], emb, emb)
    p["out2_w"], p["out2_b"] = _lin(ks[8], emb, 2)
    return p


# ----------------------------------------------------------------------------
if __name__ == "__main__":
    key = jax.random.PRNGKey(0)
    kp, kd, kt, kn, kc = jax.random.split(key, 5)

    N = 64                      # nodes
    params = init_params(kp)

    des = jax.random.normal(kd, (N, 768), jnp.float32)
    tweet = jax.random.normal(kt, (N, 768), jnp.float32)
    num_prop = jax.random.normal(kn, (N, 6), jnp.float32)
    cat_prop = jax.random.normal(kc, (N, 11), jnp.float32)

    # Deterministic graph: each node i receives edges from (i + off) % N.
    offsets = jnp.array([1, 2, 5, 11], dtype=jnp.int32)
    dst = jnp.tile(jnp.arange(N, dtype=jnp.int32), offsets.shape[0])
    src = (dst + jnp.repeat(offsets, N)) % N
    edge_index = jnp.stack([src, dst], axis=0)            # (2, 256)
    edge_type = ((dst + jnp.repeat(offsets, N)) % 2).astype(jnp.int32)

    fwd = jax.jit(forward)
    out = fwd(params, des, tweet, num_prop, cat_prop, edge_index, edge_type)
    out = jax.block_until_ready(out)

    assert out.shape == (N, 2), out.shape
    assert bool(jnp.all(jnp.isfinite(out)))
    print("KERNEL_OK")
</pallas_src>

<mosaic_0001>
module attributes {stable_mosaic.version = 11 : i64} {
  func.func @_mlp2_kernel(%arg0: i32, %arg1: memref<64x1664xbf16, #tpu.memory_space<vmem>>, %arg2: memref<1664x128xbf16, #tpu.memory_space<vmem>>, %arg3: memref<1x128xf32, #tpu.memory_space<vmem>>, %arg4: memref<128x128xbf16, #tpu.memory_space<vmem>>, %arg5: memref<1x128xf32, #tpu.memory_space<vmem>>, %arg6: memref<64x128xbf16, #tpu.memory_space<vmem>>) attributes {dimension_semantics = [#tpu.dimension_semantics<parallel>], iteration_bounds = array<i64: 1>, scalar_prefetch = 0 : i64, scratch_operands = 0 : i64, tpu.core_type = #tpu.core_type<tc>, window_params = [{transform_indices = @transform_0, window_bounds = array<i64: 64, 1664>}, {pipeline_mode = #tpu.pipeline_mode<synchronous>, transform_indices = @transform_1, window_bounds = array<i64: 1664, 128>}, {pipeline_mode = #tpu.pipeline_mode<synchronous>, transform_indices = @transform_2, window_bounds = array<i64: 1, 128>}, {pipeline_mode = #tpu.pipeline_mode<synchronous>, transform_indices = @transform_3, window_bounds = array<i64: 128, 128>}, {pipeline_mode = #tpu.pipeline_mode<synchronous>, transform_indices = @transform_4, window_bounds = array<i64: 1, 128>}, {transform_indices = @transform_5, window_bounds = array<i64: 64, 128>}]} {
    %c0 = arith.constant 0 : index
    %c0_0 = arith.constant 0 : index
    %0 = vector.load %arg1[%c0, %c0_0] : memref<64x1664xbf16, #tpu.memory_space<vmem>>, vector<64x1664xbf16>
    %c0_1 = arith.constant 0 : index
    %c0_2 = arith.constant 0 : index
    %1 = vector.load %arg2[%c0_1, %c0_2] : memref<1664x128xbf16, #tpu.memory_space<vmem>>, vector<1664x128xbf16>
    %cst = arith.constant dense<0.000000e+00> : vector<64x128xf32>
    %2 = tpu.matmul %0, %1, %cst {dimension_numbers = #tpu.dot_dimension_numbers<[1], [0], [0], [1], [0, 0, 1, 1], [], []>} : vector<64x1664xbf16>, vector<1664x128xbf16>, vector<64x128xf32> -> vector<64x128xf32>
    %c0_3 = arith.constant 0 : index
    %c0_4 = arith.constant 0 : index
    %3 = vector.load %arg3[%c0_3, %c0_4] : memref<1x128xf32, #tpu.memory_space<vmem>>, vector<1x128xf32>
    %4 = vector.broadcast %3 : vector<1x128xf32> to vector<64x128xf32>
    %5 = arith.addf %2, %4 : vector<64x128xf32>
    %cst_5 = arith.constant 0.000000e+00 : f32
    %6 = vector.broadcast %cst_5 : f32 to vector<64x128xf32>
    %7 = arith.cmpf ogt, %5, %6 : vector<64x128xf32>
    %cst_6 = arith.constant 0.00999999977 : f32
    %8 = vector.broadcast %cst_6 : f32 to vector<64x128xf32>
    %9 = arith.mulf %8, %5 : vector<64x128xf32>
    %10 = arith.select %7, %5, %9 : vector<64x128xi1>, vector<64x128xf32>
    %11 = arith.truncf %10 : vector<64x128xf32> to vector<64x128xbf16>
    %c0_7 = arith.constant 0 : index
    %c0_8 = arith.constant 0 : index
    %12 = vector.load %arg4[%c0_7, %c0_8] : memref<128x128xbf16, #tpu.memory_space<vmem>>, vector<128x128xbf16>
    %cst_9 = arith.constant dense<0.000000e+00> : vector<64x128xf32>
    %13 = tpu.matmul %11, %12, %cst_9 {dimension_numbers = #tpu.dot_dimension_numbers<[1], [0], [0], [1], [0, 0, 1, 1], [], []>} : vector<64x128xbf16>, vector<128x128xbf16>, vector<64x128xf32> -> vector<64x128xf32>
    %c0_10 = arith.constant 0 : index
    %c0_11 = arith.constant 0 : index
    %14 = vector.load %arg5[%c0_10, %c0_11] : memref<1x128xf32, #tpu.memory_space<vmem>>, vector<1x128xf32>
    %15 = vector.broadcast %14 : vector<1x128xf32> to vector<64x128xf32>
    %16 = arith.addf %13, %15 : vector<64x128xf32>
    %cst_12 = arith.constant 0.000000e+00 : f32
    %17 = vector.broadcast %cst_12 : f32 to vector<64x128xf32>
    %18 = arith.cmpf ogt, %16, %17 : vector<64x128xf32>
    %cst_13 = arith.constant 0.00999999977 : f32
    %19 = vector.broadcast %cst_13 : f32 to vector<64x128xf32>
    %20 = arith.mulf %19, %16 : vector<64x128xf32>
    %21 = arith.select %18, %16, %20 : vector<64x128xi1>, vector<64x128xf32>
    %22 = arith.truncf %21 : vector<64x128xf32> to vector<64x128xbf16>
    %c0_14 = arith.constant 0 : index
    %c0_15 = arith.constant 0 : index
    %23 = vector.load %arg6[%c0_14, %c0_15] : memref<64x128xbf16, #tpu.memory_space<vmem>>, vector<64x128xbf16>
    tpu.vector_store %arg6[%c0_14, %c0_15], %22 {strides = array<i32>} : memref<64x128xbf16, #tpu.memory_space<vmem>>, vector<64x128xbf16>,
    return
  }
  func.func @transform_0(%arg0: i32) -> (i32, i32) {
    %c0_i32 = arith.constant 0 : i32
    %c0_i32_0 = arith.constant 0 : i32
    return %arg0, %c0_i32 : i32, i32
  }
  func.func @transform_1(%arg0: i32) -> (i32, i32) {
    %c0_i32 = arith.constant 0 : i32
    %c0_i32_0 = arith.constant 0 : i32
    %c0_i32_1 = arith.constant 0 : i32
    return %c0_i32, %c0_i32_0 : i32, i32
  }
  func.func @transform_2(%arg0: i32) -> (i32, i32) {
    %c0_i32 = arith.constant 0 : i32
    %c0_i32_0 = arith.constant 0 : i32
    %c0_i32_1 = arith.constant 0 : i32
    return %c0_i32, %c0_i32_0 : i32, i32
  }
  func.func @transform_3(%arg0: i32) -> (i32, i32) {
    %c0_i32 = arith.constant 0 : i32
    %c0_i32_0 = arith.constant 0 : i32
    %c0_i32_1 = arith.constant 0 : i32
    return %c0_i32, %c0_i32_0 : i32, i32
  }
  func.func @transform_4(%arg0: i32) -> (i32, i32) {
    %c0_i32 = arith.constant 0 : i32
    %c0_i32_0 = arith.constant 0 : i32
    %c0_i32_1 = arith.constant 0 : i32
    return %c0_i32, %c0_i32_0 : i32, i32
  }
  func.func @transform_5(%arg0: i32) -> (i32, i32) {
    %c0_i32 = arith.constant 0 : i32
    %c0_i32_0 = arith.constant 0 : i32
    return %arg0, %c0_i32 : i32, i32
  }
}

module attributes {stable_mosaic.version = 11 : i64} {
  func.func @_linear_kernel(%arg0: i32, %arg1: memref<64x128xbf16, #tpu.memory_space<vmem>>, %arg2: memref<128x128xbf16, #tpu.memory_space<vmem>>, %arg3: memref<64x128xbf16, #tpu.memory_space<vmem>>) attributes {dimension_semantics = [#tpu.dimension_semantics<parallel>], iteration_bounds = array<i64: 1>, scalar_prefetch = 0 : i64, scratch_operands = 0 : i64, tpu.core_type = #tpu.core_type<tc>, window_params = [{transform_indices = @transform_0, window_bounds = array<i64: 64, 128>}, {pipeline_mode = #tpu.pipeline_mode<synchronous>, transform_indices = @transform_1, window_bounds = array<i64: 128, 128>}, {transform_indices = @transform_2, window_bounds = array<i64: 64, 128>}]} {
    %c0 = arith.constant 0 : index
    %c0_0 = arith.constant 0 : index
    %0 = vector.load %arg1[%c0, %c0_0] : memref<64x128xbf16, #tpu.memory_space<vmem>>, vector<64x128xbf16>
    %c0_1 = arith.constant 0 : index
    %c0_2 = arith.constant 0 : index
    %1 = vector.load %arg2[%c0_1, %c0_2] : memref<128x128xbf16, #tpu.memory_space<vmem>>, vector<128x128xbf16>
    %cst = arith.constant dense<0.000000e+00> : vector<64x128xf32>
    %2 = tpu.matmul %0, %1, %cst {dimension_numbers = #tpu.dot_dimension_numbers<[1], [0], [0], [1], [0, 0, 1, 1], [], []>} : vector<64x128xbf16>, vector<128x128xbf16>, vector<64x128xf32> -> vector<64x128xf32>
    %3 = arith.truncf %2 : vector<64x128xf32> to vector<64x128xbf16>
    %c0_3 = arith.constant 0 : index
    %c0_4 = arith.constant 0 : index
    %4 = vector.load %arg3[%c0_3, %c0_4] : memref<64x128xbf16, #tpu.memory_space<vmem>>, vector<64x128xbf16>
    tpu.vector_store %arg3[%c0_3, %c0_4], %3 {strides = array<i32>} : memref<64x128xbf16, #tpu.memory_space<vmem>>, vector<64x128xbf16>,
    return
  }
  func.func @transform_0(%arg0: i32) -> (i32, i32) {
    %c0_i32 = arith.constant 0 : i32
    %c0_i32_0 = arith.constant 0 : i32
    return %arg0, %c0_i32 : i32, i32
  }
  func.func @transform_1(%arg0: i32) -> (i32, i32) {
    %c0_i32 = arith.constant 0 : i32
    %c0_i32_0 = arith.constant 0 : i32
    %c0_i32_1 = arith.constant 0 : i32
    return %c0_i32, %c0_i32_0 : i32, i32
  }
  func.func @transform_2(%arg0: i32) -> (i32, i32) {
    %c0_i32 = arith.constant 0 : i32
    %c0_i32_0 = arith.constant 0 : i32
    return %arg0, %c0_i32 : i32, i32
  }
}

module attributes {stable_mosaic.version = 11 : i64} {
  func.func @_gat_attn_kernel(%arg0: i32, %arg1: memref<64x64xbf16, #tpu.memory_space<vmem>>, %arg2: memref<64x128xbf16, #tpu.memory_space<vmem>>, %arg3: memref<128x128xbf16, #tpu.memory_space<vmem>>, %arg4: memref<4x64xf32, #tpu.memory_space<vmem>>, %arg5: memref<1x128xf32, #tpu.memory_space<vmem>>, %arg6: memref<64x128xbf16, #tpu.memory_space<vmem>>) attributes {dimension_semantics = [#tpu.dimension_semantics<parallel>], iteration_bounds = array<i64: 1>, scalar_prefetch = 0 : i64, scratch_operands = 0 : i64, tpu.core_type = #tpu.core_type<tc>, window_params = [{transform_indices = @transform_0, window_bounds = array<i64: 64, 64>}, {pipeline_mode = #tpu.pipeline_mode<synchronous>, transform_indices = @transform_1, window_bounds = array<i64: 64, 128>}, {pipeline_mode = #tpu.pipeline_mode<synchronous>, transform_indices = @transform_2, window_bounds = array<i64: 128, 128>}, {pipeline_mode = #tpu.pipeline_mode<synchronous>, transform_indices = @transform_3, window_bounds = array<i64: 4, 64>}, {pipeline_mode = #tpu.pipeline_mode<synchronous>, transform_indices = @transform_4, window_bounds = array<i64: 1, 128>}, {transform_indices = @transform_5, window_bounds = array<i64: 64, 128>}]} {
    %c64_i32 = arith.constant 64 : i32
    %0 = arith.muli %arg0, %c64_i32 : i32
    %1 = tpu.assume_multiple %0, 64 : i32
    %2 = arith.index_cast %1 : i32 to index
    %c0 = arith.constant 0 : index
    %3 = vector.load %arg2[%2, %c0] : memref<64x128xbf16, #tpu.memory_space<vmem>>, vector<64x128xbf16>
    %c0_0 = arith.constant 0 : index
    %c0_1 = arith.constant 0 : index
    %4 = vector.load %arg3[%c0_0, %c0_1] : memref<128x128xbf16, #tpu.memory_space<vmem>>, vector<128x128xbf16>
    %cst = arith.constant dense<0.000000e+00> : vector<64x128xf32>
    %5 = tpu.matmul %3, %4, %cst {dimension_numbers = #tpu.dot_dimension_numbers<[1], [0], [0], [1], [0, 0, 1, 1], [], []>} : vector<64x128xbf16>, vector<128x128xbf16>, vector<64x128xf32> -> vector<64x128xf32>
    %c0_2 = arith.constant 0 : index
    %c0_3 = arith.constant 0 : index
    %6 = vector.load %arg1[%c0_2, %c0_3] : memref<64x64xbf16, #tpu.memory_space<vmem>>, vector<64x64xbf16>
    %7 = arith.extf %6 : vector<64x64xbf16> to vector<64x64xf32>
    %8 = vector.extract_strided_slice %5 {offsets = [0, 0], sizes = [64, 1], strides = [1, 1]} : vector<64x128xf32> to vector<64x1xf32>
    %c0_4 = arith.constant 0 : index
    %c0_5 = arith.constant 0 : index
    %9 = vector.load %arg4[%c0_4, %c0_5] : memref<4x64xf32, #tpu.memory_space<vmem>>, vector<1x64xf32>
    %10 = vector.broadcast %8 : vector<64x1xf32> to vector<64x64xf32>
    %11 = vector.broadcast %9 : vector<1x64xf32> to vector<64x64xf32>
    %12 = arith.addf %10, %11 : vector<64x64xf32>
    %cst_6 = arith.constant 0.000000e+00 : f32
    %13 = vector.broadcast %cst_6 : f32 to vector<64x64xf32>
    %14 = arith.cmpf ogt, %12, %13 : vector<64x64xf32>
    %cst_7 = arith.constant 2.000000e-01 : f32
    %15 = vector.broadcast %cst_7 : f32 to vector<64x64xf32>
    %16 = arith.mulf %15, %12 : vector<64x64xf32>
    %17 = arith.select %14, %12, %16 : vector<64x64xi1>, vector<64x64xf32>
    %18 = arith.addf %17, %7 : vector<64x64xf32>
    %cst_8 = arith.constant dense<0xFF800000> : vector<64xf32>
    %19 = vector.multi_reduction <maximumf>, %18, %cst_8 [1] : vector<64x64xf32> to vector<64xf32>
    %20 = vector.shape_cast %19 : vector<64xf32> to vector<64x1xf32>
    %21 = vector.broadcast %20 : vector<64x1xf32> to vector<64x64xf32>
    %22 = arith.subf %18, %21 : vector<64x64xf32>
    %23 = math.exp %22 : vector<64x64xf32>
    %cst_9 = arith.constant dense<0.000000e+00> : vector<64xf32>
    %24 = vector.multi_reduction <add>, %23, %cst_9 [1] : vector<64x64xf32> to vector<64xf32>
    %25 = vector.shape_cast %24 : vector<64xf32> to vector<64x1xf32>
    %26 = tpu.reciprocal %25 {approx = true} : vector<64x1xf32> -> vector<64x1xf32>
    %27 = vector.broadcast %26 : vector<64x1xf32> to vector<64x64xf32>
    %28 = arith.mulf %23, %27 : vector<64x64xf32>
    %29 = arith.truncf %28 : vector<64x64xf32> to vector<64x64xbf16>
    %c0_10 = arith.constant 0 : index
    %c0_11 = arith.constant 0 : index
    %30 = vector.load %arg2[%c0_10, %c0_11] : memref<64x128xbf16, #tpu.memory_space<vmem>>, vector<64x32xbf16>
    %cst_12 = arith.constant dense<0.000000e+00> : vector<64x32xf32>
    %31 = tpu.matmul %29, %30, %cst_12 {dimension_numbers = #tpu.dot_dimension_numbers<[1], [0], [0], [1], [0, 0, 1, 1], [], []>} : vector<64x64xbf16>, vector<64x32xbf16>, vector<64x32xf32> -> vector<64x32xf32>
    %32 = vector.extract_strided_slice %5 {offsets = [0, 1], sizes = [64, 1], strides = [1, 1]} : vector<64x128xf32> to vector<64x1xf32>
    %c1 = arith.constant 1 : index
    %c0_13 = arith.constant 0 : index
    %33 = vector.load %arg4[%c1, %c0_13] : memref<4x64xf32, #tpu.memory_space<vmem>>, vector<1x64xf32>
    %34 = vector.broadcast %32 : vector<64x1xf32> to vector<64x64xf32>
    %35 = vector.broadcast %33 : vector<1x64xf32> to vector<64x64xf32>
    %36 = arith.addf %34, %35 : vector<64x64xf32>
    %cst_14 = arith.constant 0.000000e+00 : f32
    %37 = vector.broadcast %cst_14 : f32 to vector<64x64xf32>
    %38 = arith.cmpf ogt, %36, %37 : vector<64x64xf32>
    %cst_15 = arith.constant 2.000000e-01 : f32
    %39 = vector.broadcast %cst_15 : f32 to vector<64x64xf32>
    %40 = arith.mulf %39, %36 : vector<64x64xf32>
    %41 = arith.select %38, %36, %40 : vector<64x64xi1>, vector<64x64xf32>
    %42 = arith.addf %41, %7 : vector<64x64xf32>
    %cst_16 = arith.constant dense<0xFF800000> : vector<64xf32>
    %43 = vector.multi_reduction <maximumf>, %42, %cst_16 [1] : vector<64x64xf32> to vector<64xf32>
    %44 = vector.shape_cast %43 : vector<64xf32> to vector<64x1xf32>
    %45 = vector.broadcast %44 : vector<64x1xf32> to vector<64x64xf32>
    %46 = arith.subf %42, %45 : vector<64x64xf32>
    %47 = math.exp %46 : vector<64x64xf32>
    %cst_17 = arith.constant dense<0.000000e+00> : vector<64xf32>
    %48 = vector.multi_reduction <add>, %47, %cst_17 [1] : vector<64x64xf32> to vector<64xf32>
    %49 = vector.shape_cast %48 : vector<64xf32> to vector<64x1xf32>
    %50 = tpu.reciprocal %49 {approx = true} : vector<64x1xf32> -> vector<64x1xf32>
    %51 = vector.broadcast %50 : vector<64x1xf32> to vector<64x64xf32>
    %52 = arith.mulf %47, %51 : vector<64x64xf32>
    %53 = arith.truncf %52 : vector<64x64xf32> to vector<64x64xbf16>
    %c0_18 = arith.constant 0 : index
    %c32 = arith.constant 32 : index
    %54 = vector.load %arg2[%c0_18, %c32] : memref<64x128xbf16, #tpu.memory_space<vmem>>, vector<64x32xbf16>
    %cst_19 = arith.constant dense<0.000000e+00> : vector<64x32xf32>
    %55 = tpu.matmul %53, %54, %cst_19 {dimension_numbers = #tpu.dot_dimension_numbers<[1], [0], [0], [1], [0, 0, 1, 1], [], []>} : vector<64x64xbf16>, vector<64x32xbf16>, vector<64x32xf32> -> vector<64x32xf32>
    %56 = vector.extract_strided_slice %5 {offsets = [0, 2], sizes = [64, 1], strides = [1, 1]} : vector<64x128xf32> to vector<64x1xf32>
    %c2 = arith.constant 2 : index
    %c0_20 = arith.constant 0 : index
    %57 = vector.load %arg4[%c2, %c0_20] : memref<4x64xf32, #tpu.memory_space<vmem>>, vector<1x64xf32>
    %58 = vector.broadcast %56 : vector<64x1xf32> to vector<64x64xf32>
    %59 = vector.broadcast %57 : vector<1x64xf32> to vector<64x64xf32>
    %60 = arith.addf %58, %59 : vector<64x64xf32>
    %cst_21 = arith.constant 0.000000e+00 : f32
    %61 = vector.broadcast %cst_21 : f32 to vector<64x64xf32>
    %62 = arith.cmpf ogt, %60, %61 : vector<64x64xf32>
    %cst_22 = arith.constant 2.000000e-01 : f32
    %63 = vector.broadcast %cst_22 : f32 to vector<64x64xf32>
    %64 = arith.mulf %63, %60 : vector<64x64xf32>
    %65 = arith.select %62, %60, %64 : vector<64x64xi1>, vector<64x64xf32>
    %66 = arith.addf %65, %7 : vector<64x64xf32>
    %cst_23 = arith.constant dense<0xFF800000> : vector<64xf32>
    %67 = vector.multi_reduction <maximumf>, %66, %cst_23 [1] : vector<64x64xf32> to vector<64xf32>
    %68 = vector.shape_cast %67 : vector<64xf32> to vector<64x1xf32>
    %69 = vector.broadcast %68 : vector<64x1xf32> to vector<64x64xf32>
    %70 = arith.subf %66, %69 : vector<64x64xf32>
    %71 = math.exp %70 : vector<64x64xf32>
    %cst_24 = arith.constant dense<0.000000e+00> : vector<64xf32>
    %72 = vector.multi_reduction <add>, %71, %cst_24 [1] : vector<64x64xf32> to vector<64xf32>
    %73 = vector.shape_cast %72 : vector<64xf32> to vector<64x1xf32>
    %74 = tpu.reciprocal %73 {approx = true} : vector<64x1xf32> -> vector<64x1xf32>
    %75 = vector.broadcast %74 : vector<64x1xf32> to vector<64x64xf32>
    %76 = arith.mulf %71, %75 : vector<64x64xf32>
    %77 = arith.truncf %76 : vector<64x64xf32> to vector<64x64xbf16>
    %c0_25 = arith.constant 0 : index
    %c64 = arith.constant 64 : index
    %78 = vector.load %arg2[%c0_25, %c64] : memref<64x128xbf16, #tpu.memory_space<vmem>>, vector<64x32xbf16>
    %cst_26 = arith.constant dense<0.000000e+00> : vector<64x32xf32>
    %79 = tpu.matmul %77, %78, %cst_26 {dimension_numbers = #tpu.dot_dimension_numbers<[1], [0], [0], [1], [0, 0, 1, 1], [], []>} : vector<64x64xbf16>, vector<64x32xbf16>, vector<64x32xf32> -> vector<64x32xf32>
    %80 = vector.extract_strided_slice %5 {offsets = [0, 3], sizes = [64, 1], strides = [1, 1]} : vector<64x128xf32> to vector<64x1xf32>
    %c3 = arith.constant 3 : index
    %c0_27 = arith.constant 0 : index
    %81 = vector.load %arg4[%c3, %c0_27] : memref<4x64xf32, #tpu.memory_space<vmem>>, vector<1x64xf32>
    %82 = vector.broadcast %80 : vector<64x1xf32> to vector<64x64xf32>
    %83 = vector.broadcast %81 : vector<1x64xf32> to vector<64x64xf32>
    %84 = arith.addf %82, %83 : vector<64x64xf32>
    %cst_28 = arith.constant 0.000000e+00 : f32
    %85 = vector.broadcast %cst_28 : f32 to vector<64x64xf32>
    %86 = arith.cmpf ogt, %84, %85 : vector<64x64xf32>
    %cst_29 = arith.constant 2.000000e-01 : f32
    %87 = vector.broadcast %cst_29 : f32 to vector<64x64xf32>
    %88 = arith.mulf %87, %84 : vector<64x64xf32>
    %89 = arith.select %86, %84, %88 : vector<64x64xi1>, vector<64x64xf32>
    %90 = arith.addf %89, %7 : vector<64x64xf32>
    %cst_30 = arith.constant dense<0xFF800000> : vector<64xf32>
    %91 = vector.multi_reduction <maximumf>, %90, %cst_30 [1] : vector<64x64xf32> to vector<64xf32>
    %92 = vector.shape_cast %91 : vector<64xf32> to vector<64x1xf32>
    %93 = vector.broadcast %92 : vector<64x1xf32> to vector<64x64xf32>
    %94 = arith.subf %90, %93 : vector<64x64xf32>
    %95 = math.exp %94 : vector<64x64xf32>
    %cst_31 = arith.constant dense<0.000000e+00> : vector<64xf32>
    %96 = vector.multi_reduction <add>, %95, %cst_31 [1] : vector<64x64xf32> to vector<64xf32>
    %97 = vector.shape_cast %96 : vector<64xf32> to vector<64x1xf32>
    %98 = tpu.reciprocal %97 {approx = true} : vector<64x1xf32> -> vector<64x1xf32>
    %99 = vector.broadcast %98 : vector<64x1xf32> to vector<64x64xf32>
    %100 = arith.mulf %95, %99 : vector<64x64xf32>
    %101 = arith.truncf %100 : vector<64x64xf32> to vector<64x64xbf16>
    %c0_32 = arith.constant 0 : index
    %c96 = arith.constant 96 : index
    %102 = vector.load %arg2[%c0_32, %c96] : memref<64x128xbf16, #tpu.memory_space<vmem>>, vector<64x32xbf16>
    %cst_33 = arith.constant dense<0.000000e+00> : vector<64x32xf32>
    %103 = tpu.matmul %101, %102, %cst_33 {dimension_numbers = #tpu.dot_dimension_numbers<[1], [0], [0], [1], [0, 0, 1, 1], [], []>} : vector<64x64xbf16>, vector<64x32xbf16>, vector<64x32xf32> -> vector<64x32xf32>
    %104 = tpu.concatenate %31, %55, %79, %103 in 1 : vector<64x32xf32>, vector<64x32xf32>, vector<64x32xf32>, vector<64x32xf32> -> vector<64x128xf32>
    %c0_34 = arith.constant 0 : index
    %c0_35 = arith.constant 0 : index
    %105 = vector.load %arg5[%c0_34, %c0_35] : memref<1x128xf32, #tpu.memory_space<vmem>>, vector<1x128xf32>
    %106 = vector.broadcast %105 : vector<1x128xf32> to vector<64x128xf32>
    %107 = arith.addf %104, %106 : vector<64x128xf32>
    %108 = arith.truncf %107 : vector<64x128xf32> to vector<64x128xbf16>
    %c0_36 = arith.constant 0 : index
    %c0_37 = arith.constant 0 : index
    %109 = vector.load %arg6[%c0_36, %c0_37] : memref<64x128xbf16, #tpu.memory_space<vmem>>, vector<64x128xbf16>
    tpu.vector_store %arg6[%c0_36, %c0_37], %108 {strides = array<i32>} : memref<64x128xbf16, #tpu.memory_space<vmem>>, vector<64x128xbf16>,
    return
  }
  func.func @transform_0(%arg0: i32) -> (i32, i32) {
    %c0_i32 = arith.constant 0 : i32
    %c0_i32_0 = arith.constant 0 : i32
    return %arg0, %c0_i32 : i32, i32
  }
  func.func @transform_1(%arg0: i32) -> (i32, i32) {
    %c0_i32 = arith.constant 0 : i32
    %c0_i32_0 = arith.constant 0 : i32
    %c0_i32_1 = arith.constant 0 : i32
    return %c0_i32, %c0_i32_0 : i32, i32
  }
  func.func @transform_2(%arg0: i32) -> (i32, i32) {
    %c0_i32 = arith.constant 0 : i32
    %c0_i32_0 = arith.constant 0 : i32
    %c0_i32_1 = arith.constant 0 : i32
    return %c0_i32, %c0_i32_0 : i32, i32
  }
  func.func @transform_3(%arg0: i32) -> (i32, i32) {
    %c0_i32 = arith.constant 0 : i32
    %c0_i32_0 = arith.constant 0 : i32
    %c0_i32_1 = arith.constant 0 : i32
    return %c0_i32, %c0_i32_0 : i32, i32
  }
  func.func @transform_4(%arg0: i32) -> (i32, i32) {
    %c0_i32 = arith.constant 0 : i32
    %c0_i32_0 = arith.constant 0 : i32
    %c0_i32_1 = arith.constant 0 : i32
    return %c0_i32, %c0_i32_0 : i32, i32
  }
  func.func @transform_5(%arg0: i32) -> (i32, i32) {
    %c0_i32 = arith.constant 0 : i32
    %c0_i32_0 = arith.constant 0 : i32
    return %arg0, %c0_i32 : i32, i32
  }
}

module attributes {stable_mosaic.version = 11 : i64} {
  func.func @_gat_attn_kernel(%arg0: i32, %arg1: memref<64x64xbf16, #tpu.memory_space<vmem>>, %arg2: memref<64x128xbf16, #tpu.memory_space<vmem>>, %arg3: memref<128x128xbf16, #tpu.memory_space<vmem>>, %arg4: memref<1x64xf32, #tpu.memory_space<vmem>>, %arg5: memref<1x128xf32, #tpu.memory_space<vmem>>, %arg6: memref<64x128xbf16, #tpu.memory_space<vmem>>) attributes {dimension_semantics = [#tpu.dimension_semantics<parallel>], iteration_bounds = array<i64: 1>, scalar_prefetch = 0 : i64, scratch_operands = 0 : i64, tpu.core_type = #tpu.core_type<tc>, window_params = [{transform_indices = @transform_0, window_bounds = array<i64: 64, 64>}, {pipeline_mode = #tpu.pipeline_mode<synchronous>, transform_indices = @transform_1, window_bounds = array<i64: 64, 128>}, {pipeline_mode = #tpu.pipeline_mode<synchronous>, transform_indices = @transform_2, window_bounds = array<i64: 128, 128>}, {pipeline_mode = #tpu.pipeline_mode<synchronous>, transform_indices = @transform_3, window_bounds = array<i64: 1, 64>}, {pipeline_mode = #tpu.pipeline_mode<synchronous>, transform_indices = @transform_4, window_bounds = array<i64: 1, 128>}, {transform_indices = @transform_5, window_bounds = array<i64: 64, 128>}]} {
    %c64_i32 = arith.constant 64 : i32
    %0 = arith.muli %arg0, %c64_i32 : i32
    %1 = tpu.assume_multiple %0, 64 : i32
    %2 = arith.index_cast %1 : i32 to index
    %c0 = arith.constant 0 : index
    %3 = vector.load %arg2[%2, %c0] : memref<64x128xbf16, #tpu.memory_space<vmem>>, vector<64x128xbf16>
    %c0_0 = arith.constant 0 : index
    %c0_1 = arith.constant 0 : index
    %4 = vector.load %arg3[%c0_0, %c0_1] : memref<128x128xbf16, #tpu.memory_space<vmem>>, vector<128x128xbf16>
    %cst = arith.constant dense<0.000000e+00> : vector<64x128xf32>
    %5 = tpu.matmul %3, %4, %cst {dimension_numbers = #tpu.dot_dimension_numbers<[1], [0], [0], [1], [0, 0, 1, 1], [], []>} : vector<64x128xbf16>, vector<128x128xbf16>, vector<64x128xf32> -> vector<64x128xf32>
    %c0_2 = arith.constant 0 : index
    %c0_3 = arith.constant 0 : index
    %6 = vector.load %arg1[%c0_2, %c0_3] : memref<64x64xbf16, #tpu.memory_space<vmem>>, vector<64x64xbf16>
    %7 = arith.extf %6 : vector<64x64xbf16> to vector<64x64xf32>
    %8 = vector.extract_strided_slice %5 {offsets = [0, 0], sizes = [64, 1], strides = [1, 1]} : vector<64x128xf32> to vector<64x1xf32>
    %c0_4 = arith.constant 0 : index
    %c0_5 = arith.constant 0 : index
    %9 = vector.load %arg4[%c0_4, %c0_5] : memref<1x64xf32, #tpu.memory_space<vmem>>, vector<1x64xf32>
    %10 = vector.broadcast %8 : vector<64x1xf32> to vector<64x64xf32>
    %11 = vector.broadcast %9 : vector<1x64xf32> to vector<64x64xf32>
    %12 = arith.addf %10, %11 : vector<64x64xf32>
    %cst_6 = arith.constant 0.000000e+00 : f32
    %13 = vector.broadcast %cst_6 : f32 to vector<64x64xf32>
    %14 = arith.cmpf ogt, %12, %13 : vector<64x64xf32>
    %cst_7 = arith.constant 2.000000e-01 : f32
    %15 = vector.broadcast %cst_7 : f32 to vector<64x64xf32>
    %16 = arith.mulf %15, %12 : vector<64x64xf32>
    %17 = arith.select %14, %12, %16 : vector<64x64xi1>, vector<64x64xf32>
    %18 = arith.addf %17, %7 : vector<64x64xf32>
    %cst_8 = arith.constant dense<0xFF800000> : vector<64xf32>
    %19 = vector.multi_reduction <maximumf>, %18, %cst_8 [1] : vector<64x64xf32> to vector<64xf32>
    %20 = vector.shape_cast %19 : vector<64xf32> to vector<64x1xf32>
    %21 = vector.broadcast %20 : vector<64x1xf32> to vector<64x64xf32>
    %22 = arith.subf %18, %21 : vector<64x64xf32>
    %23 = math.exp %22 : vector<64x64xf32>
    %cst_9 = arith.constant dense<0.000000e+00> : vector<64xf32>
    %24 = vector.multi_reduction <add>, %23, %cst_9 [1] : vector<64x64xf32> to vector<64xf32>
    %25 = vector.shape_cast %24 : vector<64xf32> to vector<64x1xf32>
    %26 = tpu.reciprocal %25 {approx = true} : vector<64x1xf32> -> vector<64x1xf32>
    %27 = vector.broadcast %26 : vector<64x1xf32> to vector<64x64xf32>
    %28 = arith.mulf %23, %27 : vector<64x64xf32>
    %29 = arith.truncf %28 : vector<64x64xf32> to vector<64x64xbf16>
    %c0_10 = arith.constant 0 : index
    %c0_11 = arith.constant 0 : index
    %30 = vector.load %arg2[%c0_10, %c0_11] : memref<64x128xbf16, #tpu.memory_space<vmem>>, vector<64x128xbf16>
    %cst_12 = arith.constant dense<0.000000e+00> : vector<64x128xf32>
    %31 = tpu.matmul %29, %30, %cst_12 {dimension_numbers = #tpu.dot_dimension_numbers<[1], [0], [0], [1], [0, 0, 1, 1], [], []>} : vector<64x64xbf16>, vector<64x128xbf16>, vector<64x128xf32> -> vector<64x128xf32>
    %c0_13 = arith.constant 0 : index
    %c0_14 = arith.constant 0 : index
    %32 = vector.load %arg5[%c0_13, %c0_14] : memref<1x128xf32, #tpu.memory_space<vmem>>, vector<1x128xf32>
    %33 = vector.broadcast %32 : vector<1x128xf32> to vector<64x128xf32>
    %34 = arith.addf %31, %33 : vector<64x128xf32>
    %35 = arith.truncf %34 : vector<64x128xf32> to vector<64x128xbf16>
    %c0_15 = arith.constant 0 : index
    %c0_16 = arith.constant 0 : index
    %36 = vector.load %arg6[%c0_15, %c0_16] : memref<64x128xbf16, #tpu.memory_space<vmem>>, vector<64x128xbf16>
    tpu.vector_store %arg6[%c0_15, %c0_16], %35 {strides = array<i32>} : memref<64x128xbf16, #tpu.memory_space<vmem>>, vector<64x128xbf16>,
    return
  }
  func.func @transform_0(%arg0: i32) -> (i32, i32) {
    %c0_i32 = arith.constant 0 : i32
    %c0_i32_0 = arith.constant 0 : i32
    return %arg0, %c0_i32 : i32, i32
  }
  func.func @transform_1(%arg0: i32) -> (i32, i32) {
    %c0_i32 = arith.constant 0 : i32
    %c0_i32_0 = arith.constant 0 : i32
    %c0_i32_1 = arith.constant 0 : i32
    return %c0_i32, %c0_i32_0 : i32, i32
  }
  func.func @transform_2(%arg0: i32) -> (i32, i32) {
    %c0_i32 = arith.constant 0 : i32
    %c0_i32_0 = arith.constant 0 : i32
    %c0_i32_1 = arith.constant 0 : i32
    return %c0_i32, %c0_i32_0 : i32, i32
  }
  func.func @transform_3(%arg0: i32) -> (i32, i32) {
    %c0_i32 = arith.constant 0 : i32
    %c0_i32_0 = arith.constant 0 : i32
    %c0_i32_1 = arith.constant 0 : i32
    return %c0_i32, %c0_i32_0 : i32, i32
  }
  func.func @transform_4(%arg0: i32) -> (i32, i32) {
    %c0_i32 = arith.constant 0 : i32
    %c0_i32_0 = arith.constant 0 : i32
    %c0_i32_1 = arith.constant 0 : i32
    return %c0_i32, %c0_i32_0 : i32, i32
  }
  func.func @transform_5(%arg0: i32) -> (i32, i32) {
    %c0_i32 = arith.constant 0 : i32
    %c0_i32_0 = arith.constant 0 : i32
    return %arg0, %c0_i32 : i32, i32
  }
}

module attributes {stable_mosaic.version = 11 : i64} {
  func.func @_mlp2_kernel(%arg0: i32, %arg1: memref<64x128xbf16, #tpu.memory_space<vmem>>, %arg2: memref<128x128xbf16, #tpu.memory_space<vmem>>, %arg3: memref<1x128xf32, #tpu.memory_space<vmem>>, %arg4: memref<128x128xbf16, #tpu.memory_space<vmem>>, %arg5: memref<1x128xf32, #tpu.memory_space<vmem>>, %arg6: memref<64x128xf32, #tpu.memory_space<vmem>>) attributes {dimension_semantics = [#tpu.dimension_semantics<parallel>], iteration_bounds = array<i64: 1>, scalar_prefetch = 0 : i64, scratch_operands = 0 : i64, tpu.core_type = #tpu.core_type<tc>, window_params = [{transform_indices = @transform_0, window_bounds = array<i64: 64, 128>}, {pipeline_mode = #tpu.pipeline_mode<synchronous>, transform_indices = @transform_1, window_bounds = array<i64: 128, 128>}, {pipeline_mode = #tpu.pipeline_mode<synchronous>, transform_indices = @transform_2, window_bounds = array<i64: 1, 128>}, {pipeline_mode = #tpu.pipeline_mode<synchronous>, transform_indices = @transform_3, window_bounds = array<i64: 128, 128>}, {pipeline_mode = #tpu.pipeline_mode<synchronous>, transform_indices = @transform_4, window_bounds = array<i64: 1, 128>}, {transform_indices = @transform_5, window_bounds = array<i64: 64, 128>}]} {
    %c0 = arith.constant 0 : index
    %c0_0 = arith.constant 0 : index
    %0 = vector.load %arg1[%c0, %c0_0] : memref<64x128xbf16, #tpu.memory_space<vmem>>, vector<64x128xbf16>
    %c0_1 = arith.constant 0 : index
    %c0_2 = arith.constant 0 : index
    %1 = vector.load %arg2[%c0_1, %c0_2] : memref<128x128xbf16, #tpu.memory_space<vmem>>, vector<128x128xbf16>
    %cst = arith.constant dense<0.000000e+00> : vector<64x128xf32>
    %2 = tpu.matmul %0, %1, %cst {dimension_numbers = #tpu.dot_dimension_numbers<[1], [0], [0], [1], [0, 0, 1, 1], [], []>} : vector<64x128xbf16>, vector<128x128xbf16>, vector<64x128xf32> -> vector<64x128xf32>
    %c0_3 = arith.constant 0 : index
    %c0_4 = arith.constant 0 : index
    %3 = vector.load %arg3[%c0_3, %c0_4] : memref<1x128xf32, #tpu.memory_space<vmem>>, vector<1x128xf32>
    %4 = vector.broadcast %3 : vector<1x128xf32> to vector<64x128xf32>
    %5 = arith.addf %2, %4 : vector<64x128xf32>
    %cst_5 = arith.constant 0.000000e+00 : f32
    %6 = vector.broadcast %cst_5 : f32 to vector<64x128xf32>
    %7 = arith.cmpf ogt, %5, %6 : vector<64x128xf32>
    %cst_6 = arith.constant 0.00999999977 : f32
    %8 = vector.broadcast %cst_6 : f32 to vector<64x128xf32>
    %9 = arith.mulf %8, %5 : vector<64x128xf32>
    %10 = arith.select %7, %5, %9 : vector<64x128xi1>, vector<64x128xf32>
    %11 = arith.truncf %10 : vector<64x128xf32> to vector<64x128xbf16>
    %c0_7 = arith.constant 0 : index
    %c0_8 = arith.constant 0 : index
    %12 = vector.load %arg4[%c0_7, %c0_8] : memref<128x128xbf16, #tpu.memory_space<vmem>>, vector<128x128xbf16>
    %cst_9 = arith.constant dense<0.000000e+00> : vector<64x128xf32>
    %13 = tpu.matmul %11, %12, %cst_9 {dimension_numbers = #tpu.dot_dimension_numbers<[1], [0], [0], [1], [0, 0, 1, 1], [], []>} : vector<64x128xbf16>, vector<128x128xbf16>, vector<64x128xf32> -> vector<64x128xf32>
    %c0_10 = arith.constant 0 : index
    %c0_11 = arith.constant 0 : index
    %14 = vector.load %arg5[%c0_10, %c0_11] : memref<1x128xf32, #tpu.memory_space<vmem>>, vector<1x128xf32>
    %15 = vector.broadcast %14 : vector<1x128xf32> to vector<64x128xf32>
    %16 = arith.addf %13, %15 : vector<64x128xf32>
    %c0_12 = arith.constant 0 : index
    %c0_13 = arith.constant 0 : index
    %17 = vector.load %arg6[%c0_12, %c0_13] : memref<64x128xf32, #tpu.memory_space<vmem>>, vector<64x128xf32>
    tpu.vector_store %arg6[%c0_12, %c0_13], %16 {strides = array<i32>} : memref<64x128xf32, #tpu.memory_space<vmem>>, vector<64x128xf32>,
    return
  }
  func.func @transform_0(%arg0: i32) -> (i32, i32) {
    %c0_i32 = arith.constant 0 : i32
    %c0_i32_0 = arith.constant 0 : i32
    return %arg0, %c0_i32 : i32, i32
  }
  func.func @transform_1(%arg0: i32) -> (i32, i32) {
    %c0_i32 = arith.constant 0 : i32
    %c0_i32_0 = arith.constant 0 : i32
    %c0_i32_1 = arith.constant 0 : i32
    return %c0_i32, %c0_i32_0 : i32, i32
  }
  func.func @transform_2(%arg0: i32) -> (i32, i32) {
    %c0_i32 = arith.constant 0 : i32
    %c0_i32_0 = arith.constant 0 : i32
    %c0_i32_1 = arith.constant 0 : i32
    return %c0_i32, %c0_i32_0 : i32, i32
  }
  func.func @transform_3(%arg0: i32) -> (i32, i32) {
    %c0_i32 = arith.constant 0 : i32
    %c0_i32_0 = arith.constant 0 : i32
    %c0_i32_1 = arith.constant 0 : i32
    return %c0_i32, %c0_i32_0 : i32, i32
  }
  func.func @transform_4(%arg0: i32) -> (i32, i32) {
    %c0_i32 = arith.constant 0 : i32
    %c0_i32_0 = arith.constant 0 : i32
    %c0_i32_1 = arith.constant 0 : i32
    return %c0_i32, %c0_i32_0 : i32, i32
  }
  func.func @transform_5(%arg0: i32) -> (i32, i32) {
    %c0_i32 = arith.constant 0 : i32
    %c0_i32_0 = arith.constant 0 : i32
    return %arg0, %c0_i32 : i32, i32
  }
}

</mosaic_0001>

<llo_original>
// kernel: forward.7
$region0: #{forward.7}
  #allocation0 [shape = 'u32[]', space=smem, size = 0x4, offset = 0x4, fixed_abs, tag = 'smem constant byte address 0x4 - core index']
  #allocation1 [shape = 'u32[144,128]{1,0:T(1,128)}', space=vmem, size = 0x12000, scoped, tag = 'internal scratch']
  %s0 = inlined_call_operand.vmem [shape: bf16[64,128], index: 0, kind: input, shape index: {}]
  %s1 = inlined_call_operand.vmem [shape: bf16[128,128], index: 1, kind: input, shape index: {}]
  %s2 = inlined_call_operand.vmem [shape: bf16[64,128], index: 2, kind: output, shape index: {}]
  %s3 = sld [smem:[#allocation0]]
  $region18: #{forward.7} parent=0
    _
  %s5 = ssub.s32 1, %s3
  %s6 = scalar_select 0, %s5, %s3
  // Predicated region
  $region2: #{forward.7} parent=0 // pred_check
    _
  $region3: #{forward.7} parent=0 // pred_check_branch
    %8 = sbr.rel (0) target = $region5
  $region4: #{forward.7} parent=0 // pred_region
    _
  $region5: #{forward.7} parent=0 // pred_fallthru
    _
  // Predicated region
  $region6: #{forward.7} parent=0 // pred_check
    _
  $region7: #{forward.7} parent=0 // pred_check_branch
    %10 = sbr.rel (0) target = $region9
  $region8: #{forward.7} parent=0 // pred_region
    _
  $region9: #{forward.7} parent=0 // pred_fallthru
    _
  %v12 = vld [vmem:[%s0] sm:$0xf]
  %v13 = vld [vmem:[%s0 + $0x4] sm:$0xf]
  %v14 = vld [vmem:[%s0 + $0x8] sm:$0xf]
  %v15 = vld [vmem:[%s0 + $0xc] sm:$0xf]
  %v16 = vld [vmem:[%s0 + $0x10] sm:$0xf]
  %v17 = vld [vmem:[%s0 + $0x14] sm:$0xf]
  %v18 = vld [vmem:[%s0 + $0x18] sm:$0xf]
  %v19 = vld [vmem:[%s0 + $0x1c] sm:$0xf]
  %v20 = vld [vmem:[%s1] sm:$0xf]
  %v21 = vld [vmem:[%s1 + $0x4] sm:$0xf]
  %v22 = vld [vmem:[%s1 + $0x8] sm:$0xf]
  %v23 = vld [vmem:[%s1 + $0xc] sm:$0xf]
  %v24 = vld [vmem:[%s1 + $0x10] sm:$0xf]
  %v25 = vld [vmem:[%s1 + $0x14] sm:$0xf]
  %v26 = vld [vmem:[%s1 + $0x18] sm:$0xf]
  %v27 = vld [vmem:[%s1 + $0x1c] sm:$0xf]
  %v28 = vld [vmem:[%s1 + $0x20] sm:$0xf]
  %v29 = vld [vmem:[%s1 + $0x24] sm:$0xf]
  %v30 = vld [vmem:[%s1 + $0x28] sm:$0xf]
  %v31 = vld [vmem:[%s1 + $0x2c] sm:$0xf]
  %v32 = vld [vmem:[%s1 + $0x30] sm:$0xf]
  %v33 = vld [vmem:[%s1 + $0x34] sm:$0xf]
  %v34 = vld [vmem:[%s1 + $0x38] sm:$0xf]
  %v35 = vld [vmem:[%s1 + $0x3c] sm:$0xf]
  %v44 = vunpack.c.l.b16 %v12
  %v45 = vunpack.c.l.b16 %v13
  %v46 = vunpack.c.l.b16 %v14
  %v47 = vunpack.c.l.b16 %v15
  %v48 = vunpack.c.l.b16 %v16
  %v49 = vunpack.c.l.b16 %v17
  %v50 = vunpack.c.l.b16 %v18
  %v51 = vunpack.c.l.b16 %v19
  %v52 = vpack.c.b16 %v45, %v44
  %v53 = vpack.c.b16 %v47, %v46
  %v54 = vpack.c.b16 %v49, %v48
  %v55 = vpack.c.b16 %v51, %v50
  %v76 = vunpack.c.l.b16 %v20
  %v77 = vunpack.c.l.b16 %v21
  %v78 = vunpack.c.l.b16 %v22
  %v79 = vunpack.c.l.b16 %v23
  %v80 = vunpack.c.l.b16 %v24
  %v81 = vunpack.c.l.b16 %v25
  %v82 = vunpack.c.l.b16 %v26
  %v83 = vunpack.c.l.b16 %v27
  %v84 = vunpack.c.l.b16 %v28
  %v85 = vunpack.c.l.b16 %v29
  %v86 = vunpack.c.l.b16 %v30
  %v87 = vunpack.c.l.b16 %v31
  %v88 = vunpack.c.l.b16 %v32
  %v89 = vunpack.c.l.b16 %v33
  %v90 = vunpack.c.l.b16 %v34
  %v91 = vunpack.c.l.b16 %v35
  %v92 = vpack.c.b16 %v77, %v76
  %v93 = vpack.c.b16 %v79, %v78
  %v94 = vpack.c.b16 %v81, %v80
  %v95 = vpack.c.b16 %v83, %v82
  %v96 = vpack.c.b16 %v85, %v84
  %v97 = vpack.c.b16 %v87, %v86
  %v98 = vpack.c.b16 %v89, %v88
  %v99 = vpack.c.b16 %v91, %v90
  %108 = vmatprep.subr.bf16.mxu0 0
  %109 = vmatpush1.bf16.msra.mxu0 %v92
  %110 = vmatprep.subr.bf16.mxu0 0
  %111 = vmatpush1.bf16.msra.mxu0 %v93
  %112 = vmatprep.subr.bf16.mxu0 0
  %113 = vmatpush1.bf16.msra.mxu0 %v94
  %114 = vmatprep.subr.bf16.mxu0 0
  %115 = vmatpush1.bf16.msra.mxu0 %v95
  %116 = vmatprep.subr.bf16.mxu0 0
  %117 = vmatpush1.bf16.msra.mxu0 %v96
  %118 = vmatprep.subr.bf16.mxu0 0
  %119 = vmatpush1.bf16.msra.mxu0 %v97
  %120 = vmatprep.subr.bf16.mxu0 0
  %121 = vmatpush1.bf16.msra.mxu0 %v98
  %122 = vmatprep.subr.bf16.mxu0 0
  %123 = vmatpush1.bf16.msra.mxu0 %v99
  %124 = vmatprep.subr.bf16.mxu0 0
  %125 = vmatpush1.bf16.msra.mxu0 0
  %126 = vmatprep.subr.bf16.mxu0 0
  %127 = vmatpush1.bf16.msra.mxu0 0
  %128 = vmatprep.subr.bf16.mxu0 0
  %129 = vmatpush1.bf16.msra.mxu0 0
  %130 = vmatprep.subr.bf16.mxu0 0
  %131 = vmatpush1.bf16.msra.mxu0 0
  %132 = vmatprep.subr.bf16.mxu0 0
  %133 = vmatpush1.bf16.msra.mxu0 0
  %134 = vmatprep.subr.bf16.mxu0 0
  %135 = vmatpush1.bf16.msra.mxu0 0
  %136 = vmatprep.subr.bf16.mxu0 0
  %137 = vmatpush1.bf16.msra.mxu0 0
  %138 = vmatprep.subr.bf16.mxu0 0
  %139 = vmatpush1.bf16.msra.mxu0 0
  %140 = vmatprep.mubr.bf16.mxu0 0
  %141 = vmatmul.mubr.bf16.gmra.mrb[0].mxu0 %v52
  %v142 = vpop.f32.mrb[0].mxu0
  %v143 = vadd.f32 0.0, %v142
  %v144 = vpop.f32.mrb[0].mxu0
  %v145 = vpop.f32.mrb[0].mxu0
  %v146 = vadd.f32 0.0, %v145
  %v147 = vpop.f32.mrb[0].mxu0
  %148 = vmatprep.mubr.bf16.mxu0 0
  %149 = vmatmul.mubr.bf16.gmra.mrb[0].mxu0 %v53
  %v150 = vpop.f32.mrb[0].mxu0
  %v151 = vadd.f32 0.0, %v150
  %v152 = vpop.f32.mrb[0].mxu0
  %v153 = vpop.f32.mrb[0].mxu0
  %v154 = vadd.f32 0.0, %v153
  %v155 = vpop.f32.mrb[0].mxu0
  %156 = vmatprep.mubr.bf16.mxu0 0
  %157 = vmatmul.mubr.bf16.gmra.mrb[0].mxu0 %v54
  %v158 = vpop.f32.mrb[0].mxu0
  %v159 = vadd.f32 0.0, %v158
  %v160 = vpop.f32.mrb[0].mxu0
  %v161 = vpop.f32.mrb[0].mxu0
  %v162 = vadd.f32 0.0, %v161
  %v163 = vpop.f32.mrb[0].mxu0
  %164 = vmatprep.mubr.bf16.mxu0 0
  %165 = vmatmul.mubr.bf16.gmra.mrb[0].mxu0 %v55
  %v166 = vpop.f32.mrb[0].mxu0
  %v167 = vadd.f32 0.0, %v166
  %v168 = vpop.f32.mrb[0].mxu0
  %v169 = vpop.f32.mrb[0].mxu0
  %v170 = vadd.f32 0.0, %v169
  %v171 = vpop.f32.mrb[0].mxu0
  %172 = vdwg.mxu0
  %v173 = vpack.c.bf16 %v146, %v143
  %v174 = vpack.c.bf16 %v154, %v151
  %v175 = vpack.c.bf16 %v162, %v159
  %v176 = vpack.c.bf16 %v170, %v167
  %v181 = vunpack.c.l.b16 %v173
  %v182 = vunpack.c.h.b16 %v173
  %v183 = vunpack.c.l.b16 %v174
  %v184 = vunpack.c.h.b16 %v174
  %v185 = vunpack.c.l.b16 %v175
  %v186 = vunpack.c.h.b16 %v175
  %v187 = vunpack.c.l.b16 %v176
  %v188 = vunpack.c.h.b16 %v176
  %v189 = vpack.c.b16 %v181, %v181
  %v190 = vpack.c.b16 %v182, %v182
  %v191 = vpack.c.b16 %v183, %v183
  %v192 = vpack.c.b16 %v184, %v184
  %v193 = vpack.c.b16 %v185, %v185
  %v194 = vpack.c.b16 %v186, %v186
  %v195 = vpack.c.b16 %v187, %v187
  %v196 = vpack.c.b16 %v188, %v188
  %205 = vst [vmem:[%s2] sm:$0xf] %v189
  %206 = vst [vmem:[%s2 + $0x4] sm:$0xf] %v190
  %207 = vst [vmem:[%s2 + $0x8] sm:$0xf] %v191
  %208 = vst [vmem:[%s2 + $0xc] sm:$0xf] %v192
  %209 = vst [vmem:[%s2 + $0x10] sm:$0xf] %v193
  %210 = vst [vmem:[%s2 + $0x14] sm:$0xf] %v194
  %211 = vst [vmem:[%s2 + $0x18] sm:$0xf] %v195
  %212 = vst [vmem:[%s2 + $0x1c] sm:$0xf] %v196
  // Predicated region
  $region10: #{forward.7} parent=0 // pred_check
    _
  $region11: #{forward.7} parent=0 // pred_check_branch
    %214 = sbr.rel (0) target = $region13
  $region12: #{forward.7} parent=0 // pred_region
    _
  $region13: #{forward.7} parent=0 // pred_fallthru
    _
  // Predicated region
  $region14: #{forward.7} parent=0 // pred_check
    _
  $region15: #{forward.7} parent=0 // pred_check_branch
    %216 = sbr.rel (0) target = $region17
  $region16: #{forward.7} parent=0 // pred_region
    _
  $region17: #{forward.7} parent=0 // pred_fallthru
    _

// kernel: forward.6
$region0: #{forward.6}
  #allocation0 [shape = 'u32[]', space=smem, size = 0x4, offset = 0x4, fixed_abs, tag = 'smem constant byte address 0x4 - core index']
  #allocation1 [shape = 'u32[144,128]{1,0:T(1,128)}', space=vmem, size = 0x12000, scoped, tag = 'internal scratch']
  %s0 = inlined_call_operand.vmem [shape: bf16[64,1664], index: 0, kind: input, shape index: {}]
  %s1 = inlined_call_operand.vmem [shape: bf16[1664,128], index: 1, kind: input, shape index: {}]
  %s2 = inlined_call_operand.vmem [shape: f32[1,128], index: 2, kind: input, shape index: {}]
  %s3 = inlined_call_operand.vmem [shape: bf16[128,128], index: 3, kind: input, shape index: {}]
  %s4 = inlined_call_operand.vmem [shape: f32[1,128], index: 4, kind: input, shape index: {}]
  %s5 = inlined_call_operand.vmem [shape: bf16[64,128], index: 5, kind: output, shape index: {}]
  %s6 = sld [smem:[#allocation0]]
  $region30: #{forward.6} parent=0
    _
  %s8 = ssub.s32 1, %s6
  %s9 = scalar_select 0, %s8, %s6
  // Predicated region
  $region2: #{forward.6} parent=0 // pred_check
    _
  $region3: #{forward.6} parent=0 // pred_check_branch
    %11 = sbr.rel (0) target = $region5
  $region4: #{forward.6} parent=0 // pred_region
    _
  $region5: #{forward.6} parent=0 // pred_fallthru
    _
  // Predicated region
  $region6: #{forward.6} parent=0 // pred_check
    _
  $region7: #{forward.6} parent=0 // pred_check_branch
    %13 = sbr.rel (0) target = $region9
  $region8: #{forward.6} parent=0 // pred_region
    _
  $region9: #{forward.6} parent=0 // pred_fallthru
    _
  // Predicated region
  $region10: #{forward.6} parent=0 // pred_check
    _
  $region11: #{forward.6} parent=0 // pred_check_branch
    %15 = sbr.rel (0) target = $region13
  $region12: #{forward.6} parent=0 // pred_region
    _
  $region13: #{forward.6} parent=0 // pred_fallthru
    _
  // Predicated region
  $region14: #{forward.6} parent=0 // pred_check
    _
  $region15: #{forward.6} parent=0 // pred_check_branch
    %17 = sbr.rel (0) target = $region17
  $region16: #{forward.6} parent=0 // pred_region
    _
  $region17: #{forward.6} parent=0 // pred_fallthru
    _
  // Predicated region
  $region18: #{forward.6} parent=0 // pred_check
    _
  $region19: #{forward.6} parent=0 // pred_check_branch
    %19 = sbr.rel (0) target = $region21
  $region20: #{forward.6} parent=0 // pred_region
    _
  $region21: #{forward.6} parent=0 // pred_fallthru
    _
  %v21 = vld [vmem:[%s0] sm:$0xff]
  %v22 = vld [vmem:[%s0 + $0x8] sm:$0xff]
  %v23 = vld [vmem:[%s0 + $0x10] sm:$0xff]
  %v24 = vld [vmem:[%s0 + $0x18] sm:$0xff]
  %v25 = vld [vmem:[%s0 + $0x20] sm:$0xff]
  %v26 = vld [vmem:[%s0 + $0x28] sm:$0xff]
  %v27 = vld [vmem:[%s0 + $0x30] sm:$0xf]
  %v28 = vld [vmem:[%s0 + $0x34] sm:$0xff]
  %v29 = vld [vmem:[%s0 + $0x3c] sm:$0xff]
  %v30 = vld [vmem:[%s0 + $0x44] sm:$0xff]
  %v31 = vld [vmem:[%s0 + $0x4c] sm:$0xff]
  %v32 = vld [vmem:[%s0 + $0x54] sm:$0xff]
  %v33 = vld [vmem:[%s0 + $0x5c] sm:$0xff]
  %v34 = vld [vmem:[%s0 + $0x64] sm:$0xf]
  %v35 = vld [vmem:[%s0 + $0x68] sm:$0xff]
  %v36 = vld [vmem:[%s0 + $0x70] sm:$0xff]
  %v37 = vld [vmem:[%s0 + $0x78] sm:$0xff]
  %v38 = vld [vmem:[%s0 + $0x80] sm:$0xff]
  %v39 = vld [vmem:[%s0 + $0x88] sm:$0xff]
  %v40 = vld [vmem:[%s0 + $0x90] sm:$0xff]
  %v41 = vld [vmem:[%s0 + $0x98] sm:$0xf]
  %v42 = vld [vmem:[%s0 + $0x9c] sm:$0xff]
  %v43 = vld [vmem:[%s0 + $0xa4] sm:$0xff]
  %v44 = vld [vmem:[%s0 + $0xac] sm:$0xff]
  %v45 = vld [vmem:[%s0 + $0xb4] sm:$0xff]
  %v46 = vld [vmem:[%s0 + $0xbc] sm:$0xff]
  %v47 = vld [vmem:[%s0 + $0xc4] sm:$0xff]
  %v48 = vld [vmem:[%s0 + $0xcc] sm:$0xf]
  %v49 = vld [vmem:[%s0 + $0xd0] sm:$0xff]
  %v50 = vld [vmem:[%s0 + $0xd8] sm:$0xff]
  %v51 = vld [vmem:[%s0 + $0xe0] sm:$0xff]
  %v52 = vld [vmem:[%s0 + $0xe8] sm:$0xff]
  %v53 = vld [vmem:[%s0 + $0xf0] sm:$0xff]
  %v54 = vld [vmem:[%s0 + $0xf8] sm:$0xff]
  %v55 = vld [vmem:[%s0 + $0x100] sm:$0xf]
  %v56 = vld [vmem:[%s0 + $0x104] sm:$0xff]
  %v57 = vld [vmem:[%s0 + $0x10c] sm:$0xff]
  %v58 = vld [vmem:[%s0 + $0x114] sm:$0xff]
  %v59 = vld [vmem:[%s0 + $0x11c] sm:$0xff]
  %v60 = vld [vmem:[%s0 + $0x124] sm:$0xff]
  %v61 = vld [vmem:[%s0 + $0x12c] sm:$0xff]
  %v62 = vld [vmem:[%s0 + $0x134] sm:$0xf]
  %v63 = vld [vmem:[%s0 + $0x138] sm:$0xff]
  %v64 = vld [vmem:[%s0 + $0x140] sm:$0xff]
  %v65 = vld [vmem:[%s0 + $0x148] sm:$0xff]
  %v66 = vld [vmem:[%s0 + $0x150] sm:$0xff]
  %v67 = vld [vmem:[%s0 + $0x158] sm:$0xff]
  %v68 = vld [vmem:[%s0 + $0x160] sm:$0xff]
  %v69 = vld [vmem:[%s0 + $0x168] sm:$0xf]
  %v70 = vld [vmem:[%s0 + $0x16c] sm:$0xff]
  %v71 = vld [vmem:[%s0 + $0x174] sm:$0xff]
  %v72 = vld [vmem:[%s0 + $0x17c] sm:$0xff]
  %v73 = vld [vmem:[%s0 + $0x184] sm:$0xff]
  %v74 = vld [vmem:[%s0 + $0x18c] sm:$0xff]
  %v75 = vld [vmem:[%s0 + $0x194] sm:$0xff]
  %v76 = vld [vmem:[%s0 + $0x19c] sm:$0xf]
  %v77 = vld [vmem:[%s1] sm:$0xf]
  %v78 = vld [vmem:[%s1 + $0x4] sm:$0xf]
  %v79 = vld [vmem:[%s1 + $0x8] sm:$0xf]
  %v80 = vld [vmem:[%s1 + $0xc] sm:$0xf]
  %v81 = vld [vmem:[%s1 + $0x10] sm:$0xf]
  %v82 = vld [vmem:[%s1 + $0x14] sm:$0xf]
  %v83 = vld [vmem:[%s1 + $0x18] sm:$0xf]
  %v84 = vld [vmem:[%s1 + $0x1c] sm:$0xf]
  %v85 = vld [vmem:[%s1 + $0x20] sm:$0xf]
  %v86 = vld [vmem:[%s1 + $0x24] sm:$0xf]
  %v87 = vld [vmem:[%s1 + $0x28] sm:$0xf]
  %v88 = vld [vmem:[%s1 + $0x2c] sm:$0xf]
  %v89 = vld [vmem:[%s1 + $0x30] sm:$0xf]
  %v90 = vld [vmem:[%s1 + $0x34] sm:$0xf]
  %v91 = vld [vmem:[%s1 + $0x38] sm:$0xf]
  %v92 = vld [vmem:[%s1 + $0x3c] sm:$0xf]
  %v93 = vld [vmem:[%s1 + $0x40] sm:$0xf]
  %v94 = vld [vmem:[%s1 + $0x44] sm:$0xf]
  %v95 = vld [vmem:[%s1 + $0x48] sm:$0xf]
  %v96 = vld [vmem:[%s1 + $0x4c] sm:$0xf]
  %v97 = vld [vmem:[%s1 + $0x50] sm:$0xf]
  %v98 = vld [vmem:[%s1 + $0x54] sm:$0xf]
  %v99 = vld [vmem:[%s1 + $0x58] sm:$0xf]
  %v100 = vld [vmem:[%s1 + $0x5c] sm:$0xf]
  %v101 = vld [vmem:[%s1 + $0x60] sm:$0xf]
  %v102 = vld [vmem:[%s1 + $0x64] sm:$0xf]
  %v103 = vld [vmem:[%s1 + $0x68] sm:$0xf]
  %v104 = vld [vmem:[%s1 + $0x6c] sm:$0xf]
  %v105 = vld [vmem:[%s1 + $0x70] sm:$0xf]
  %v106 = vld [vmem:[%s1 + $0x74] sm:$0xf]
  %v107 = vld [vmem:[%s1 + $0x78] sm:$0xf]
  %v108 = vld [vmem:[%s1 + $0x7c] sm:$0xf]
  %v109 = vld [vmem:[%s1 + $0x80] sm:$0xf]
  %v110 = vld [vmem:[%s1 + $0x84] sm:$0xf]
  %v111 = vld [vmem:[%s1 + $0x88] sm:$0xf]
  %v112 = vld [vmem:[%s1 + $0x8c] sm:$0xf]
  %v113 = vld [vmem:[%s1 + $0x90] sm:$0xf]
  %v114 = vld [vmem:[%s1 + $0x94] sm:$0xf]
  %v115 = vld [vmem:[%s1 + $0x98] sm:$0xf]
  %v116 = vld [vmem:[%s1 + $0x9c] sm:$0xf]
  %v117 = vld [vmem:[%s1 + $0xa0] sm:$0xf]
  %v118 = vld [vmem:[%s1 + $0xa4] sm:$0xf]
  %v119 = vld [vmem:[%s1 + $0xa8] sm:$0xf]
  %v120 = vld [vmem:[%s1 + $0xac] sm:$0xf]
  %v121 = vld [vmem:[%s1 + $0xb0] sm:$0xf]
  %v122 = vld [vmem:[%s1 + $0xb4] sm:$0xf]
  %v123 = vld [vmem:[%s1 + $0xb8] sm:$0xf]
  %v124 = vld [vmem:[%s1 + $0xbc] sm:$0xf]
  %v125 = vld [vmem:[%s1 + $0xc0] sm:$0xf]
  %v126 = vld [vmem:[%s1 + $0xc4] sm:$0xf]
  %v127 = vld [vmem:[%s1 + $0xc8] sm:$0xf]
  %v128 = vld [vmem:[%s1 + $0xcc] sm:$0xf]
  %v129 = vld [vmem:[%s1 + $0xd0] sm:$0xf]
  %v130 = vld [vmem:[%s1 + $0xd4] sm:$0xf]
  %v131 = vld [vmem:[%s1 + $0xd8] sm:$0xf]
  %v132 = vld [vmem:[%s1 + $0xdc] sm:$0xf]
  %v133 = vld [vmem:[%s1 + $0xe0] sm:$0xf]
  %v134 = vld [vmem:[%s1 + $0xe4] sm:$0xf]
  %v135 = vld [vmem:[%s1 + $0xe8] sm:$0xf]
  %v136 = vld [vmem:[%s1 + $0xec] sm:$0xf]
  %v137 = vld [vmem:[%s1 + $0xf0] sm:$0xf]
  %v138 = vld [vmem:[%s1 + $0xf4] sm:$0xf]
  %v139 = vld [vmem:[%s1 + $0xf8] sm:$0xf]
  %v140 = vld [vmem:[%s1 + $0xfc] sm:$0xf]
  %v141 = vld [vmem:[%s1 + $0x100] sm:$0xf]
  %v142 = vld [vmem:[%s1 + $0x104] sm:$0xf]
  %v143 = vld [vmem:[%s1 + $0x108] sm:$0xf]
  %v144 = vld [vmem:[%s1 + $0x10c] sm:$0xf]
  %v145 = vld [vmem:[%s1 + $0x110] sm:$0xf]
  %v146 = vld [vmem:[%s1 + $0x114] sm:$0xf]
  %v147 = vld [vmem:[%s1 + $0x118] sm:$0xf]
  %v148 = vld [vmem:[%s1 + $0x11c] sm:$0xf]
  %v149 = vld [vmem:[%s1 + $0x120] sm:$0xf]
  %v150 = vld [vmem:[%s1 + $0x124] sm:$0xf]
  %v151 = vld [vmem:[%s1 + $0x128] sm:$0xf]
  %v152 = vld [vmem:[%s1 + $0x12c] sm:$0xf]
  %v153 = vld [vmem:[%s1 + $0x130] sm:$0xf]
  %v154 = vld [vmem:[%s1 + $0x134] sm:$0xf]
  %v155 = vld [vmem:[%s1 + $0x138] sm:$0xf]
  %v156 = vld [vmem:[%s1 + $0x13c] sm:$0xf]
  %v157 = vld [vmem:[%s1 + $0x140] sm:$0xf]
  %v158 = vld [vmem:[%s1 + $0x144] sm:$0xf]
  %v159 = vld [vmem:[%s1 + $0x148] sm:$0xf]
  %v160 = vld [vmem:[%s1 + $0x14c] sm:$0xf]
  %v161 = vld [vmem:[%s1 + $0x150] sm:$0xf]
  %v162 = vld [vmem:[%s1 + $0x154] sm:$0xf]
  %v163 = vld [vmem:[%s1 + $0x158] sm:$0xf]
  %v164 = vld [vmem:[%s1 + $0x15c] sm:$0xf]
  %v165 = vld [vmem:[%s1 + $0x160] sm:$0xf]
  %v166 = vld [vmem:[%s1 + $0x164] sm:$0xf]
  %v167 = vld [vmem:[%s1 + $0x168] sm:$0xf]
  %v168 = vld [vmem:[%s1 + $0x16c] sm:$0xf]
  %v169 = vld [vmem:[%s1 + $0x170] sm:$0xf]
  %v170 = vld [vmem:[%s1 + $0x174] sm:$0xf]
  %v171 = vld [vmem:[%s1 + $0x178] sm:$0xf]
  %v172 = vld [vmem:[%s1 + $0x17c] sm:$0xf]
  %v173 = vld [vmem:[%s1 + $0x180] sm:$0xf]
  %v174 = vld [vmem:[%s1 + $0x184] sm:$0xf]
  %v175 = vld [vmem:[%s1 + $0x188] sm:$0xf]
  %v176 = vld [vmem:[%s1 + $0x18c] sm:$0xf]
  %v177 = vld [vmem:[%s1 + $0x190] sm:$0xf]
  %v178 = vld [vmem:[%s1 + $0x194] sm:$0xf]
  %v179 = vld [vmem:[%s1 + $0x198] sm:$0xf]
  %v180 = vld [vmem:[%s1 + $0x19c] sm:$0xf]
  %v181 = vld [vmem:[%s1 + $0x1a0] sm:$0xf]
  %v182 = vld [vmem:[%s1 + $0x1a4] sm:$0xf]
  %v183 = vld [vmem:[%s1 + $0x1a8] sm:$0xf]
  %v184 = vld [vmem:[%s1 + $0x1ac] sm:$0xf]
  %v185 = vld [vmem:[%s1 + $0x1b0] sm:$0xf]
  %v186 = vld [vmem:[%s1 + $0x1b4] sm:$0xf]
  %v187 = vld [vmem:[%s1 + $0x1b8] sm:$0xf]
  %v188 = vld [vmem:[%s1 + $0x1bc] sm:$0xf]
  %v189 = vld [vmem:[%s1 + $0x1c0] sm:$0xf]
  %v190 = vld [vmem:[%s1 + $0x1c4] sm:$0xf]
  %v191 = vld [vmem:[%s1 + $0x1c8] sm:$0xf]
  %v192 = vld [vmem:[%s1 + $0x1cc] sm:$0xf]
  %v193 = vld [vmem:[%s1 + $0x1d0] sm:$0xf]
  %v194 = vld [vmem:[%s1 + $0x1d4] sm:$0xf]
  %v195 = vld [vmem:[%s1 + $0x1d8] sm:$0xf]
  %v196 = vld [vmem:[%s1 + $0x1dc] sm:$0xf]
  %v197 = vld [vmem:[%s1 + $0x1e0] sm:$0xf]
  %v198 = vld [vmem:[%s1 + $0x1e4] sm:$0xf]
  %v199 = vld [vmem:[%s1 + $0x1e8] sm:$0xf]
  %v200 = vld [vmem:[%s1 + $0x1ec] sm:$0xf]
  %v201 = vld [vmem:[%s1 + $0x1f0] sm:$0xf]
  %v202 = vld [vmem:[%s1 + $0x1f4] sm:$0xf]
  %v203 = vld [vmem:[%s1 + $0x1f8] sm:$0xf]
  %v204 = vld [vmem:[%s1 + $0x1fc] sm:$0xf]
  %v205 = vld [vmem:[%s1 + $0x200] sm:$0xf]
  %v206 = vld [vmem:[%s1 + $0x204] sm:$0xf]
  %v207 = vld [vmem:[%s1 + $0x208] sm:$0xf]
  %v208 = vld [vmem:[%s1 + $0x20c] sm:$0xf]
  %v209 = vld [vmem:[%s1 + $0x210] sm:$0xf]
  %v210 = vld [vmem:[%s1 + $0x214] sm:$0xf]
  %v211 = vld [vmem:[%s1 + $0x218] sm:$0xf]
  %v212 = vld [vmem:[%s1 + $0x21c] sm:$0xf]
  %v213 = vld [vmem:[%s1 + $0x220] sm:$0xf]
  %v214 = vld [vmem:[%s1 + $0x224] sm:$0xf]
  %v215 = vld [vmem:[%s1 + $0x228] sm:$0xf]
  %v216 = vld [vmem:[%s1 + $0x22c] sm:$0xf]
  %v217 = vld [vmem:[%s1 + $0x230] sm:$0xf]
  %v218 = vld [vmem:[%s1 + $0x234] sm:$0xf]
  %v219 = vld [vmem:[%s1 + $0x238] sm:$0xf]
  %v220 = vld [vmem:[%s1 + $0x23c] sm:$0xf]
  %v221 = vld [vmem:[%s1 + $0x240] sm:$0xf]
  %v222 = vld [vmem:[%s1 + $0x244] sm:$0xf]
  %v223 = vld [vmem:[%s1 + $0x248] sm:$0xf]
  %v224 = vld [vmem:[%s1 + $0x24c] sm:$0xf]
  %v225 = vld [vmem:[%s1 + $0x250] sm:$0xf]
  %v226 = vld [vmem:[%s1 + $0x254] sm:$0xf]
  %v227 = vld [vmem:[%s1 + $0x258] sm:$0xf]
  %v228 = vld [vmem:[%s1 + $0x25c] sm:$0xf]
  %v229 = vld [vmem:[%s1 + $0x260] sm:$0xf]
  %v230 = vld [vmem:[%s1 + $0x264] sm:$0xf]
  %v231 = vld [vmem:[%s1 + $0x268] sm:$0xf]
  %v232 = vld [vmem:[%s1 + $0x26c] sm:$0xf]
  %v233 = vld [vmem:[%s1 + $0x270] sm:$0xf]
  %v234 = vld [vmem:[%s1 + $0x274] sm:$0xf]
  %v235 = vld [vmem:[%s1 + $0x278] sm:$0xf]
  %v236 = vld [vmem:[%s1 + $0x27c] sm:$0xf]
  %v237 = vld [vmem:[%s1 + $0x280] sm:$0xf]
  %v238 = vld [vmem:[%s1 + $0x284] sm:$0xf]
  %v239 = vld [vmem:[%s1 + $0x288] sm:$0xf]
  %v240 = vld [vmem:[%s1 + $0x28c] sm:$0xf]
  %v241 = vld [vmem:[%s1 + $0x290] sm:$0xf]
  %v242 = vld [vmem:[%s1 + $0x294] sm:$0xf]
  %v243 = vld [vmem:[%s1 + $0x298] sm:$0xf]
  %v244 = vld [vmem:[%s1 + $0x29c] sm:$0xf]
  %v245 = vld [vmem:[%s1 + $0x2a0] sm:$0xf]
  %v246 = vld [vmem:[%s1 + $0x2a4] sm:$0xf]
  %v247 = vld [vmem:[%s1 + $0x2a8] sm:$0xf]
  %v248 = vld [vmem:[%s1 + $0x2ac] sm:$0xf]
  %v249 = vld [vmem:[%s1 + $0x2b0] sm:$0xf]
  %v250 = vld [vmem:[%s1 + $0x2b4] sm:$0xf]
  %v251 = vld [vmem:[%s1 + $0x2b8] sm:$0xf]
  %v252 = vld [vmem:[%s1 + $0x2bc] sm:$0xf]
  %v253 = vld [vmem:[%s1 + $0x2c0] sm:$0xf]
  %v254 = vld [vmem:[%s1 + $0x2c4] sm:$0xf]
  %v255 = vld [vmem:[%s1 + $0x2c8] sm:$0xf]
  %v256 = vld [vmem:[%s1 + $0x2cc] sm:$0xf]
  %v257 = vld [vmem:[%s1 + $0x2d0] sm:$0xf]
  %v258 = vld [vmem:[%s1 + $0x2d4] sm:$0xf]
  %v259 = vld [vmem:[%s1 + $0x2d8] sm:$0xf]
  %v260 = vld [vmem:[%s1 + $0x2dc] sm:$0xf]
  %v261 = vld [vmem:[%s1 + $0x2e0] sm:$0xf]
  %v262 = vld [vmem:[%s1 + $0x2e4] sm:$0xf]
  %v263 = vld [vmem:[%s1 + $0x2e8] sm:$0xf]
  %v264 = vld [vmem:[%s1 + $0x2ec] sm:$0xf]
  %v265 = vld [vmem:[%s1 + $0x2f0] sm:$0xf]
  %v266 = vld [vmem:[%s1 + $0x2f4] sm:$0xf]
  %v267 = vld [vmem:[%s1 + $0x2f8] sm:$0xf]
  %v268 = vld [vmem:[%s1 + $0x2fc] sm:$0xf]
  %v269 = vld [vmem:[%s1 + $0x300] sm:$0xf]
  %v270 = vld [vmem:[%s1 + $0x304] sm:$0xf]
  %v271 = vld [vmem:[%s1 + $0x308] sm:$0xf]
  %v272 = vld [vmem:[%s1 + $0x30c] sm:$0xf]
  %v273 = vld [vmem:[%s1 + $0x310] sm:$0xf]
  %v274 = vld [vmem:[%s1 + $0x314] sm:$0xf]
  %v275 = vld [vmem:[%s1 + $0x318] sm:$0xf]
  %v276 = vld [vmem:[%s1 + $0x31c] sm:$0xf]
  %v277 = vld [vmem:[%s1 + $0x320] sm:$0xf]
  %v278 = vld [vmem:[%s1 + $0x324] sm:$0xf]
  %v279 = vld [vmem:[%s1 + $0x328] sm:$0xf]
  %v280 = vld [vmem:[%s1 + $0x32c] sm:$0xf]
  %v281 = vld [vmem:[%s1 + $0x330] sm:$0xf]
  %v282 = vld [vmem:[%s1 + $0x334] sm:$0xf]
  %v283 = vld [vmem:[%s1 + $0x338] sm:$0xf]
  %v284 = vld [vmem:[%s1 + $0x33c] sm:$0xf]
  %v285 = vld [vmem:[%s2] sm:$0x1]
  %v287 = vlaneseq
  %v288 = vshrl.u32 %v287, 7
  %v289 = vsub.s32 0, %v288
  %v290 = vrot.slane %v285, %v289
  %v348 = vunpack.c.l.b16 %v21
  %v349 = vunpack.c.h.b16 %v21
  %v350 = vunpack.c.l.b16 %v22
  %v351 = vunpack.c.h.b16 %v22
  %v352 = vunpack.c.l.b16 %v23
  %v353 = vunpack.c.h.b16 %v23
  %v354 = vunpack.c.l.b16 %v24
  %v355 = vunpack.c.h.b16 %v24
  %v356 = vunpack.c.l.b16 %v25
  %v357 = vunpack.c.h.b16 %v25
  %v358 = vunpack.c.l.b16 %v26
  %v359 = vunpack.c.h.b16 %v26
  %v360 = vunpack.c.l.b16 %v27
  %v361 = vunpack.c.l.b16 %v28
  %v362 = vunpack.c.h.b16 %v28
  %v363 = vunpack.c.l.b16 %v29
  %v364 = vunpack.c.h.b16 %v29
  %v365 = vunpack.c.l.b16 %v30
  %v366 = vunpack.c.h.b16 %v30
  %v367 = vunpack.c.l.b16 %v31
  %v368 = vunpack.c.h.b16 %v31
  %v369 = vunpack.c.l.b16 %v32
  %v370 = vunpack.c.h.b16 %v32
  %v371 = vunpack.c.l.b16 %v33
  %v372 = vunpack.c.h.b16 %v33
  %v373 = vunpack.c.l.b16 %v34
  %v374 = vunpack.c.l.b16 %v35
  %v375 = vunpack.c.h.b16 %v35
  %v376 = vunpack.c.l.b16 %v36
  %v377 = vunpack.c.h.b16 %v36
  %v378 = vunpack.c.l.b16 %v37
  %v379 = vunpack.c.h.b16 %v37
  %v380 = vunpack.c.l.b16 %v38
  %v381 = vunpack.c.h.b16 %v38
  %v382 = vunpack.c.l.b16 %v39
  %v383 = vunpack.c.h.b16 %v39
  %v384 = vunpack.c.l.b16 %v40
  %v385 = vunpack.c.h.b16 %v40
  %v386 = vunpack.c.l.b16 %v41
  %v387 = vunpack.c.l.b16 %v42
  %v388 = vunpack.c.h.b16 %v42
  %v389 = vunpack.c.l.b16 %v43
  %v390 = vunpack.c.h.b16 %v43
  %v391 = vunpack.c.l.b16 %v44
  %v392 = vunpack.c.h.b16 %v44
  %v393 = vunpack.c.l.b16 %v45
  %v394 = vunpack.c.h.b16 %v45
  %v395 = vunpack.c.l.b16 %v46
  %v396 = vunpack.c.h.b16 %v46
  %v397 = vunpack.c.l.b16 %v47
  %v398 = vunpack.c.h.b16 %v47
  %v399 = vunpack.c.l.b16 %v48
  %v400 = vunpack.c.l.b16 %v49
  %v401 = vunpack.c.h.b16 %v49
  %v402 = vunpack.c.l.b16 %v50
  %v403 = vunpack.c.h.b16 %v50
  %v404 = vunpack.c.l.b16 %v51
  %v405 = vunpack.c.h.b16 %v51
  %v406 = vunpack.c.l.b16 %v52
  %v407 = vunpack.c.h.b16 %v52
  %v408 = vunpack.c.l.b16 %v53
  %v409 = vunpack.c.h.b16 %v53
  %v410 = vunpack.c.l.b16 %v54
  %v411 = vunpack.c.h.b16 %v54
  %v412 = vunpack.c.l.b16 %v55
  %v413 = vunpack.c.l.b16 %v56
  %v414 = vunpack.c.h.b16 %v56
  %v415 = vunpack.c.l.b16 %v57
  %v416 = vunpack.c.h.b16 %v57
  %v417 = vunpack.c.l.b16 %v58
  %v418 = vunpack.c.h.b16 %v58
  %v419 = vunpack.c.l.b16 %v59
  %v420 = vunpack.c.h.b16 %v59
  %v421 = vunpack.c.l.b16 %v60
  %v422 = vunpack.c.h.b16 %v60
  %v423 = vunpack.c.l.b16 %v61
  %v424 = vunpack.c.h.b16 %v61
  %v425 = vunpack.c.l.b16 %v62
  %v426 = vunpack.c.l.b16 %v63
  %v427 = vunpack.c.h.b16 %v63
  %v428 = vunpack.c.l.b16 %v64
  %v429 = vunpack.c.h.b16 %v64
  %v430 = vunpack.c.l.b16 %v65
  %v431 = vunpack.c.h.b16 %v65
  %v432 = vunpack.c.l.b16 %v66
  %v433 = vunpack.c.h.b16 %v66
  %v434 = vunpack.c.l.b16 %v67
  %v435 = vunpack.c.h.b16 %v67
  %v436 = vunpack.c.l.b16 %v68
  %v437 = vunpack.c.h.b16 %v68
  %v438 = vunpack.c.l.b16 %v69
  %v439 = vunpack.c.l.b16 %v70
  %v440 = vunpack.c.h.b16 %v70
  %v441 = vunpack.c.l.b16 %v71
  %v442 = vunpack.c.h.b16 %v71
  %v443 = vunpack.c.l.b16 %v72
  %v444 = vunpack.c.h.b16 %v72
  %v445 = vunpack.c.l.b16 %v73
  %v446 = vunpack.c.h.b16 %v73
  %v447 = vunpack.c.l.b16 %v74
  %v448 = vunpack.c.h.b16 %v74
  %v449 = vunpack.c.l.b16 %v75
  %v450 = vunpack.c.h.b16 %v75
  %v451 = vunpack.c.l.b16 %v76
  %v452 = vpack.c.b16 %v361, %v348
  %v453 = vpack.c.b16 %v362, %v349
  %v454 = vpack.c.b16 %v363, %v350
  %v455 = vpack.c.b16 %v364, %v351
  %v456 = vpack.c.b16 %v365, %v352
  %v457 = vpack.c.b16 %v366, %v353
  %v458 = vpack.c.b16 %v367, %v354
  %v459 = vpack.c.b16 %v368, %v355
  %v460 = vpack.c.b16 %v369, %v356
  %v461 = vpack.c.b16 %v370, %v357
  %v462 = vpack.c.b16 %v371, %v358
  %v463 = vpack.c.b16 %v372, %v359
  %v464 = vpack.c.b16 %v373, %v360
  %v465 = vpack.c.b16 %v387, %v374
  %v466 = vpack.c.b16 %v388, %v375
  %v467 = vpack.c.b16 %v389, %v376
  %v468 = vpack.c.b16 %v390, %v377
  %v469 = vpack.c.b16 %v391, %v378
  %v470 = vpack.c.b16 %v392, %v379
  %v471 = vpack.c.b16 %v393, %v380
  %v472 = vpack.c.b16 %v394, %v381
  %v473 = vpack.c.b16 %v395, %v382
  %v474 = vpack.c.b16 %v396, %v383
  %v475 = vpack.c.b16 %v397, %v384
  %v476 = vpack.c.b16 %v398, %v385
  %v477 = vpack.c.b16 %v399, %v386
  %v478 = vpack.c.b16 %v413, %v400
  %v479 = vpack.c.b16 %v414, %v401
  %v480 = vpack.c.b16 %v415, %v402
  %v481 = vpack.c.b16 %v416, %v403
  %v482 = vpack.c.b16 %v417, %v404
  %v483 = vpack.c.b16 %v418, %v405
  %v484 = vpack.c.b16 %v419, %v406
  %v485 = vpack.c.b16 %v420, %v407
  %v486 = vpack.c.b16 %v421, %v408
  %v487 = vpack.c.b16 %v422, %v409
  %v488 = vpack.c.b16 %v423, %v410
  %v489 = vpack.c.b16 %v424, %v411
  %v490 = vpack.c.b16 %v425, %v412
  %v491 = vpack.c.b16 %v439, %v426
  %v492 = vpack.c.b16 %v440, %v427
  %v493 = vpack.c.b16 %v441, %v428
  %v494 = vpack.c.b16 %v442, %v429
  %v495 = vpack.c.b16 %v443, %v430
  %v496 = vpack.c.b16 %v444, %v431
  %v497 = vpack.c.b16 %v445, %v432
  %v498 = vpack.c.b16 %v446, %v433
  %v499 = vpack.c.b16 %v447, %v434
  %v500 = vpack.c.b16 %v448, %v435
  %v501 = vpack.c.b16 %v449, %v436
  %v502 = vpack.c.b16 %v450, %v437
  %v503 = vpack.c.b16 %v451, %v438
  %v764 = vunpack.c.l.b16 %v77
  %v765 = vunpack.c.l.b16 %v78
  %v766 = vunpack.c.l.b16 %v79
  %v767 = vunpack.c.l.b16 %v80
  %v768 = vunpack.c.l.b16 %v81
  %v769 = vunpack.c.l.b16 %v82
  %v770 = vunpack.c.l.b16 %v83
  %v771 = vunpack.c.l.b16 %v84
  %v772 = vunpack.c.l.b16 %v85
  %v773 = vunpack.c.l.b16 %v86
  %v774 = vunpack.c.l.b16 %v87
  %v775 = vunpack.c.l.b16 %v88
  %v776 = vunpack.c.l.b16 %v89
  %v777 = vunpack.c.l.b16 %v90
  %v778 = vunpack.c.l.b16 %v91
  %v779 = vunpack.c.l.b16 %v92
  %v780 = vunpack.c.l.b16 %v93
  %v781 = vunpack.c.l.b16 %v94
  %v782 = vunpack.c.l.b16 %v95
  %v783 = vunpack.c.l.b16 %v96
  %v784 = vunpack.c.l.b16 %v97
  %v785 = vunpack.c.l.b16 %v98
  %v786 = vunpack.c.l.b16 %v99
  %v787 = vunpack.c.l.b16 %v100
  %v788 = vunpack.c.l.b16 %v101
  %v789 = vunpack.c.l.b16 %v102
  %v790 = vunpack.c.l.b16 %v103
  %v791 = vunpack.c.l.b16 %v104
  %v792 = vunpack.c.l.b16 %v105
  %v793 = vunpack.c.l.b16 %v106
  %v794 = vunpack.c.l.b16 %v107
  %v795 = vunpack.c.l.b16 %v108
  %v796 = vunpack.c.l.b16 %v109
  %v797 = vunpack.c.l.b16 %v110
  %v798 = vunpack.c.l.b16 %v111
  %v799 = vunpack.c.l.b16 %v112
  %v800 = vunpack.c.l.b16 %v113
  %v801 = vunpack.c.l.b16 %v114
  %v802 = vunpack.c.l.b16 %v115
  %v803 = vunpack.c.l.b16 %v116
  %v804 = vunpack.c.l.b16 %v117
  %v805 = vunpack.c.l.b16 %v118
  %v806 = vunpack.c.l.b16 %v119
  %v807 = vunpack.c.l.b16 %v120
  %v808 = vunpack.c.l.b16 %v121
  %v809 = vunpack.c.l.b16 %v122
  %v810 = vunpack.c.l.b16 %v123
  %v811 = vunpack.c.l.b16 %v124
  %v812 = vunpack.c.l.b16 %v125
  %v813 = vunpack.c.l.b16 %v126
  %v814 = vunpack.c.l.b16 %v127
  %v815 = vunpack.c.l.b16 %v128
  %v816 = vunpack.c.l.b16 %v129
  %v817 = vunpack.c.l.b16 %v130
  %v818 = vunpack.c.l.b16 %v131
  %v819 = vunpack.c.l.b16 %v132
  %v820 = vunpack.c.l.b16 %v133
  %v821 = vunpack.c.l.b16 %v134
  %v822 = vunpack.c.l.b16 %v135
  %v823 = vunpack.c.l.b16 %v136
  %v824 = vunpack.c.l.b16 %v137
  %v825 = vunpack.c.l.b16 %v138
  %v826 = vunpack.c.l.b16 %v139
  %v827 = vunpack.c.l.b16 %v140
  %v828 = vunpack.c.l.b16 %v141
  %v829 = vunpack.c.l.b16 %v142
  %v830 = vunpack.c.l.b16 %v143
  %v831 = vunpack.c.l.b16 %v144
  %v832 = vunpack.c.l.b16 %v145
  %v833 = vunpack.c.l.b16 %v146
  %v834 = vunpack.c.l.b16 %v147
  %v835 = vunpack.c.l.b16 %v148
  %v836 = vunpack.c.l.b16 %v149
  %v837 = vunpack.c.l.b16 %v150
  %v838 = vunpack.c.l.b16 %v151
  %v839 = vunpack.c.l.b16 %v152
  %v840 = vunpack.c.l.b16 %v153
  %v841 = vunpack.c.l.b16 %v154
  %v842 = vunpack.c.l.b16 %v155
  %v843 = vunpack.c.l.b16 %v156
  %v844 = vunpack.c.l.b16 %v157
  %v845 = vunpack.c.l.b16 %v158
  %v846 = vunpack.c.l.b16 %v159
  %v847 = vunpack.c.l.b16 %v160
  %v848 = vunpack.c.l.b16 %v161
  %v849 = vunpack.c.l.b16 %v162
  %v850 = vunpack.c.l.b16 %v163
  %v851 = vunpack.c.l.b16 %v164
  %v852 = vunpack.c.l.b16 %v165
  %v853 = vunpack.c.l.b16 %v166
  %v854 = vunpack.c.l.b16 %v167
  %v855 = vunpack.c.l.b16 %v168
  %v856 = vunpack.c.l.b16 %v169
  %v857 = vunpack.c.l.b16 %v170
  %v858 = vunpack.c.l.b16 %v171
  %v859 = vunpack.c.l.b16 %v172
  %v860 = vunpack.c.l.b16 %v173
  %v861 = vunpack.c.l.b16 %v174
  %v862 = vunpack.c.l.b16 %v175
  %v863 = vunpack.c.l.b16 %v176
  %v864 = vunpack.c.l.b16 %v177
  %v865 = vunpack.c.l.b16 %v178
  %v866 = vunpack.c.l.b16 %v179
  %v867 = vunpack.c.l.b16 %v180
  %v868 = vunpack.c.l.b16 %v181
  %v869 = vunpack.c.l.b16 %v182
  %v870 = vunpack.c.l.b16 %v183
  %v871 = vunpack.c.l.b16 %v184
  %v872 = vunpack.c.l.b16 %v185
  %v873 = vunpack.c.l.b16 %v186
  %v874 = vunpack.c.l.b16 %v187
  %v875 = vunpack.c.l.b16 %v188
  %v876 = vunpack.c.l.b16 %v189
  %v877 = vunpack.c.l.b16 %v190
  %v878 = vunpack.c.l.b16 %v191
  %v879 = vunpack.c.l.b16 %v192
  %v880 = vunpack.c.l.b16 %v193
  %v881 = vunpack.c.l.b16 %v194
  %v882 = vunpack.c.l.b16 %v195
  %v883 = vunpack.c.l.b16 %v196
  %v884 = vunpack.c.l.b16 %v197
  %v885 = vunpack.c.l.b16 %v198
  %v886 = vunpack.c.l.b16 %v199
  %v887 = vunpack.c.l.b16 %v200
  %v888 = vunpack.c.l.b16 %v201
  %v889 = vunpack.c.l.b16 %v202
  %v890 = vunpack.c.l.b16 %v203
  %v891 = vunpack.c.l.b16 %v204
  %v892 = vunpack.c.l.b16 %v205
  %v893 = vunpack.c.l.b16 %v206
  %v894 = vunpack.c.l.b16 %v207
  %v895 = vunpack.c.l.b16 %v208
  %v896 = vunpack.c.l.b16 %v209
  %v897 = vunpack.c.l.b16 %v210
  %v898 = vunpack.c.l.b16 %v211
  %v899 = vunpack.c.l.b16 %v212
  %v900 = vunpack.c.l.b16 %v213
  %v901 = vunpack.c.l.b16 %v214
  %v902 = vunpack.c.l.b16 %v215
  %v903 = vunpack.c.l.b16 %v216
  %v904 = vunpack.c.l.b16 %v217
  %v905 = vunpack.c.l.b16 %v218
  %v906 = vunpack.c.l.b16 %v219
  %v907 = vunpack.c.l.b16 %v220
  %v908 = vunpack.c.l.b16 %v221
  %v909 = vunpack.c.l.b16 %v222
  %v910 = vunpack.c.l.b16 %v223
  %v911 = vunpack.c.l.b16 %v224
  %v912 = vunpack.c.l.b16 %v225
  %v913 = vunpack.c.l.b16 %v226
  %v914 = vunpack.c.l.b16 %v227
  %v915 = vunpack.c.l.b16 %v228
  %v916 = vunpack.c.l.b16 %v229
  %v917 = vunpack.c.l.b16 %v230
  %v918 = vunpack.c.l.b16 %v231
  %v919 = vunpack.c.l.b16 %v232
  %v920 = vunpack.c.l.b16 %v233
  %v921 = vunpack.c.l.b16 %v234
  %v922 = vunpack.c.l.b16 %v235
  %v923 = vunpack.c.l.b16 %v236
  %v924 = vunpack.c.l.b16 %v237
  %v925 = vunpack.c.l.b16 %v238
  %v926 = vunpack.c.l.b16 %v239
  %v927 = vunpack.c.l.b16 %v240
  %v928 = vunpack.c.l.b16 %v241
  %v929 = vunpack.c.l.b16 %v242
  %v930 = vunpack.c.l.b16 %v243
  %v931 = vunpack.c.l.b16 %v244
  %v932 = vunpack.c.l.b16 %v245
  %v933 = vunpack.c.l.b16 %v246
  %v934 = vunpack.c.l.b16 %v247
  %v935 = vunpack.c.l.b16 %v248
  %v936 = vunpack.c.l.b16 %v249
  %v937 = vunpack.c.l.b16 %v250
  %v938 = vunpack.c.l.b16 %v251
  %v939 = vunpack.c.l.b16 %v252
  %v940 = vunpack.c.l.b16 %v253
  %v941 = vunpack.c.l.b16 %v254
  %v942 = vunpack.c.l.b16 %v255
  %v943 = vunpack.c.l.b16 %v256
  %v944 = vunpack.c.l.b16 %v257
  %v945 = vunpack.c.l.b16 %v258
  %v946 = vunpack.c.l.b16 %v259
  %v947 = vunpack.c.l.b16 %v260
  %v948 = vunpack.c.l.b16 %v261
  %v949 = vunpack.c.l.b16 %v262
  %v950 = vunpack.c.l.b16 %v263
  %v951 = vunpack.c.l.b16 %v264
  %v952 = vunpack.c.l.b16 %v265
  %v953 = vunpack.c.l.b16 %v266
  %v954 = vunpack.c.l.b16 %v267
  %v955 = vunpack.c.l.b16 %v268
  %v956 = vunpack.c.l.b16 %v269
  %v957 = vunpack.c.l.b16 %v270
  %v958 = vunpack.c.l.b16 %v271
  %v959 = vunpack.c.l.b16 %v272
  %v960 = vunpack.c.l.b16 %v273
  %v961 = vunpack.c.l.b16 %v274
  %v962 = vunpack.c.l.b16 %v275
  %v963 = vunpack.c.l.b16 %v276
  %v964 = vunpack.c.l.b16 %v277
  %v965 = vunpack.c.l.b16 %v278
  %v966 = vunpack.c.l.b16 %v279
  %v967 = vunpack.c.l.b16 %v280
  %v968 = vunpack.c.l.b16 %v281
  %v969 = vunpack.c.l.b16 %v282
  %v970 = vunpack.c.l.b16 %v283
  %v971 = vunpack.c.l.b16 %v284
  %v972 = vpack.c.b16 %v765, %v764
  %v973 = vpack.c.b16 %v767, %v766
  %v974 = vpack.c.b16 %v769, %v768
  %v975 = vpack.c.b16 %v771, %v770
  %v976 = vpack.c.b16 %v773, %v772
  %v977 = vpack.c.b16 %v775, %v774
  %v978 = vpack.c.b16 %v777, %v776
  %v979 = vpack.c.b16 %v779, %v778
  %v980 = vpack.c.b16 %v781, %v780
  %v981 = vpack.c.b16 %v783, %v782
  %v982 = vpack.c.b16 %v785, %v784
  %v983 = vpack.c.b16 %v787, %v786
  %v984 = vpack.c.b16 %v789, %v788
  %v985 = vpack.c.b16 %v791, %v790
  %v986 = vpack.c.b16 %v793, %v792
  %v987 = vpack.c.b16 %v795, %v794
  %v988 = vpack.c.b16 %v797, %v796
  %v989 = vpack.c.b16 %v799, %v798
  %v990 = vpack.c.b16 %v801, %v800
  %v991 = vpack.c.b16 %v803, %v802
  %v992 = vpack.c.b16 %v805, %v804
  %v993 = vpack.c.b16 %v807, %v806
  %v994 = vpack.c.b16 %v809, %v808
  %v995 = vpack.c.b16 %v811, %v810
  %v996 = vpack.c.b16 %v813, %v812
  %v997 = vpack.c.b16 %v815, %v814
  %v998 = vpack.c.b16 %v817, %v816
  %v999 = vpack.c.b16 %v819, %v818
  %v1000 = vpack.c.b16 %v821, %v820
  %v1001 = vpack.c.b16 %v823, %v822
  %v1002 = vpack.c.b16 %v825, %v824
  %v1003 = vpack.c.b16 %v827, %v826
  %v1004 = vpack.c.b16 %v829, %v828
  %v1005 = vpack.c.b16 %v831, %v830
  %v1006 = vpack.c.b16 %v833, %v832
  %v1007 = vpack.c.b16 %v835, %v834
  %v1008 = vpack.c.b16 %v837, %v836
  %v1009 = vpack.c.b16 %v839, %v838
  %v1010 = vpack.c.b16 %v841, %v840
  %v1011 = vpack.c.b16 %v843, %v842
  %v1012 = vpack.c.b16 %v845, %v844
  %v1013 = vpack.c.b16 %v847, %v846
  %v1014 = vpack.c.b16 %v849, %v848
  %v1015 = vpack.c.b16 %v851, %v850
  %v1016 = vpack.c.b16 %v853, %v852
  %v1017 = vpack.c.b16 %v855, %v854
  %v1018 = vpack.c.b16 %v857, %v856
  %v1019 = vpack.c.b16 %v859, %v858
  %v1020 = vpack.c.b16 %v861, %v860
  %v1021 = vpack.c.b16 %v863, %v862
  %v1022 = vpack.c.b16 %v865, %v864
  %v1023 = vpack.c.b16 %v867, %v866
  %v1024 = vpack.c.b16 %v869, %v868
  %v1025 = vpack.c.b16 %v871, %v870
  %v1026 = vpack.c.b16 %v873, %v872
  %v1027 = vpack.c.b16 %v875, %v874
  %v1028 = vpack.c.b16 %v877, %v876
  %v1029 = vpack.c.b16 %v879, %v878
  %v1030 = vpack.c.b16 %v881, %v880
  %v1031 = vpack.c.b16 %v883, %v882
  %v1032 = vpack.c.b16 %v885, %v884
  %v1033 = vpack.c.b16 %v887, %v886
  %v1034 = vpack.c.b16 %v889, %v888
  %v1035 = vpack.c.b16 %v891, %v890
  %v1036 = vpack.c.b16 %v893, %v892
  %v1037 = vpack.c.b16 %v895, %v894
  %v1038 = vpack.c.b16 %v897, %v896
  %v1039 = vpack.c.b16 %v899, %v898
  %v1040 = vpack.c.b16 %v901, %v900
  %v1041 = vpack.c.b16 %v903, %v902
  %v1042 = vpack.c.b16 %v905, %v904
  %v1043 = vpack.c.b16 %v907, %v906
  %v1044 = vpack.c.b16 %v909, %v908
  %v1045 = vpack.c.b16 %v911, %v910
  %v1046 = vpack.c.b16 %v913, %v912
  %v1047 = vpack.c.b16 %v915, %v914
  %v1048 = vpack.c.b16 %v917, %v916
  %v1049 = vpack.c.b16 %v919, %v918
  %v1050 = vpack.c.b16 %v921, %v920
  %v1051 = vpack.c.b16 %v923, %v922
  %v1052 = vpack.c.b16 %v925, %v924
  %v1053 = vpack.c.b16 %v927, %v926
  %v1054 = vpack.c.b16 %v929, %v928
  %v1055 = vpack.c.b16 %v931, %v930
  %v1056 = vpack.c.b16 %v933, %v932
  %v1057 = vpack.c.b16 %v935, %v934
  %v1058 = vpack.c.b16 %v937, %v936
  %v1059 = vpack.c.b16 %v939, %v938
  %v1060 = vpack.c.b16 %v941, %v940
  %v1061 = vpack.c.b16 %v943, %v942
  %v1062 = vpack.c.b16 %v945, %v944
  %v1063 = vpack.c.b16 %v947, %v946
  %v1064 = vpack.c.b16 %v949, %v948
  %v1065 = vpack.c.b16 %v951, %v950
  %v1066 = vpack.c.b16 %v953, %v952
  %v1067 = vpack.c.b16 %v955, %v954
  %v1068 = vpack.c.b16 %v957, %v956
  %v1069 = vpack.c.b16 %v959, %v958
  %v1070 = vpack.c.b16 %v961, %v960
  %v1071 = vpack.c.b16 %v963, %v962
  %v1072 = vpack.c.b16 %v965, %v964
  %v1073 = vpack.c.b16 %v967, %v966
  %v1074 = vpack.c.b16 %v969, %v968
  %v1075 = vpack.c.b16 %v971, %v970
  %1180 = vmatprep.subr.bf16.mxu0 0
  %1181 = vmatpush1.bf16.msra.mxu0 %v972
  %1182 = vmatprep.subr.bf16.mxu0 0
  %1183 = vmatpush1.bf16.msra.mxu0 %v973
  %1184 = vmatprep.subr.bf16.mxu0 0
  %1185 = vmatpush1.bf16.msra.mxu0 %v974
  %1186 = vmatprep.subr.bf16.mxu0 0
  %1187 = vmatpush1.bf16.msra.mxu0 %v975
  %1188 = vmatprep.subr.bf16.mxu0 0
  %1189 = vmatpush1.bf16.msra.mxu0 %v976
  %1190 = vmatprep.subr.bf16.mxu0 0
  %1191 = vmatpush1.bf16.msra.mxu0 %v977
  %1192 = vmatprep.subr.bf16.mxu0 0
  %1193 = vmatpush1.bf16.msra.mxu0 %v978
  %1194 = vmatprep.subr.bf16.mxu0 0
  %1195 = vmatpush1.bf16.msra.mxu0 %v979
  %1196 = vmatprep.subr.bf16.mxu0 0
  %1197 = vmatpush1.bf16.msra.mxu0 %v980
  %1198 = vmatprep.subr.bf16.mxu0 0
  %1199 = vmatpush1.bf16.msra.mxu0 %v981
  %1200 = vmatprep.subr.bf16.mxu0 0
  %1201 = vmatpush1.bf16.msra.mxu0 %v982
  %1202 = vmatprep.subr.bf16.mxu0 0
  %1203 = vmatpush1.bf16.msra.mxu0 %v983
  %1204 = vmatprep.subr.bf16.mxu0 0
  %1205 = vmatpush1.bf16.msra.mxu0 %v984
  %1206 = vmatprep.subr.bf16.mxu0 0
  %1207 = vmatpush1.bf16.msra.mxu0 %v985
  %1208 = vmatprep.subr.bf16.mxu0 0
  %1209 = vmatpush1.bf16.msra.mxu0 %v986
  %1210 = vmatprep.subr.bf16.mxu0 0
  %1211 = vmatpush1.bf16.msra.mxu0 %v987
  %1212 = vmatprep.mubr.bf16.mxu0 %v453
  %1213 = vmatmul.mubr.bf16.gmra.mrb[0].mxu0 %v452
  %v1214 = vpop.f32.mrb[0].mxu0
  %v1215 = vadd.f32 %v290, %v1214
  %v1216 = vpop.f32.mrb[0].mxu0
  %v1217 = vpop.f32.mrb[0].mxu0
  %v1218 = vadd.f32 %v290, %v1217
  %v1219 = vpop.f32.mrb[0].mxu0
  %1220 = vmatprep.mubr.bf16.mxu0 %v466
  %1221 = vmatmul.mubr.bf16.gmra.mrb[0].mxu0 %v465
  %v1222 = vpop.f32.mrb[0].mxu0
  %v1223 = vadd.f32 %v290, %v1222
  %v1224 = vpop.f32.mrb[0].mxu0
  %v1225 = vpop.f32.mrb[0].mxu0
  %v1226 = vadd.f32 %v290, %v1225
  %v1227 = vpop.f32.mrb[0].mxu0
  %1228 = vmatprep.mubr.bf16.mxu0 %v479
  %1229 = vmatmul.mubr.bf16.gmra.mrb[0].mxu0 %v478
  %v1230 = vpop.f32.mrb[0].mxu0
  %v1231 = vadd.f32 %v290, %v1230
  %v1232 = vpop.f32.mrb[0].mxu0
  %v1233 = vpop.f32.mrb[0].mxu0
  %v1234 = vadd.f32 %v290, %v1233
  %v1235 = vpop.f32.mrb[0].mxu0
  %1236 = vmatprep.mubr.bf16.mxu0 %v492
  %1237 = vmatmul.mubr.bf16.gmra.mrb[0].mxu0 %v491
  %v1238 = vpop.f32.mrb[0].mxu0
  %v1239 = vadd.f32 %v290, %v1238
  %v1240 = vpop.f32.mrb[0].mxu0
  %v1241 = vpop.f32.mrb[0].mxu0
  %v1242 = vadd.f32 %v290, %v1241
  %v1243 = vpop.f32.mrb[0].mxu0
  %1244 = vdwg.mxu0
  %1245 = vmatprep.subr.bf16.mxu0 0
  %1246 = vmatpush1.bf16.msra.mxu0 %v988
  %1247 = vmatprep.subr.bf16.mxu0 0
  %1248 = vmatpush1.bf16.msra.mxu0 %v989
  %1249 = vmatprep.subr.bf16.mxu0 0
  %1250 = vmatpush1.bf16.msra.mxu0 %v990
  %1251 = vmatprep.subr.bf16.mxu0 0
  %1252 = vmatpush1.bf16.msra.mxu0 %v991
  %1253 = vmatprep.subr.bf16.mxu0 0
  %1254 = vmatpush1.bf16.msra.mxu0 %v992
  %1255 = vmatprep.subr.bf16.mxu0 0
  %1256 = vmatpush1.bf16.msra.mxu0 %v993
  %1257 = vmatprep.subr.bf16.mxu0 0
  %1258 = vmatpush1.bf16.msra.mxu0 %v994
  %1259 = vmatprep.subr.bf16.mxu0 0
  %1260 = vmatpush1.bf16.msra.mxu0 %v995
  %1261 = vmatprep.subr.bf16.mxu0 0
  %1262 = vmatpush1.bf16.msra.mxu0 %v996
  %1263 = vmatprep.subr.bf16.mxu0 0
  %1264 = vmatpush1.bf16.msra.mxu0 %v997
  %1265 = vmatprep.subr.bf16.mxu0 0
  %1266 = vmatpush1.bf16.msra.mxu0 %v998
  %1267 = vmatprep.subr.bf16.mxu0 0
  %1268 = vmatpush1.bf16.msra.mxu0 %v999
  %1269 = vmatprep.subr.bf16.mxu0 0
  %1270 = vmatpush1.bf16.msra.mxu0 %v1000
  %1271 = vmatprep.subr.bf16.mxu0 0
  %1272 = vmatpush1.bf16.msra.mxu0 %v1001
  %1273 = vmatprep.subr.bf16.mxu0 0
  %1274 = vmatpush1.bf16.msra.mxu0 %v1002
  %1275 = vmatprep.subr.bf16.mxu0 0
  %1276 = vmatpush1.bf16.msra.mxu0 %v1003
  %1277 = vmatprep.mubr.bf16.mxu0 %v455
  %1278 = vmatmul.mubr.bf16.gmra.mrb[0].mxu0 %v454
  %v1279 = vpop.f32.mrb[0].mxu0
  %v1280 = vadd.f32 %v1215, %v1279
  %v1281 = vpop.f32.mrb[0].mxu0
  %v1282 = vpop.f32.mrb[0].mxu0
  %v1283 = vadd.f32 %v1218, %v1282
  %v1284 = vpop.f32.mrb[0].mxu0
  %1285 = vmatprep.mubr.bf16.mxu0 %v468
  %1286 = vmatmul.mubr.bf16.gmra.mrb[0].mxu0 %v467
  %v1287 = vpop.f32.mrb[0].mxu0
  %v1288 = vadd.f32 %v1223, %v1287
  %v1289 = vpop.f32.mrb[0].mxu0
  %v1290 = vpop.f32.mrb[0].mxu0
  %v1291 = vadd.f32 %v1226, %v1290
  %v1292 = vpop.f32.mrb[0].mxu0
  %1293 = vmatprep.mubr.bf16.mxu0 %v481
  %1294 = vmatmul.mubr.bf16.gmra.mrb[0].mxu0 %v480
  %v1295 = vpop.f32.mrb[0].mxu0
  %v1296 = vadd.f32 %v1231, %v1295
  %v1297 = vpop.f32.mrb[0].mxu0
  %v1298 = vpop.f32.mrb[0].mxu0
  %v1299 = vadd.f32 %v1234, %v1298
  %v1300 = vpop.f32.mrb[0].mxu0
  %1301 = vmatprep.mubr.bf16.mxu0 %v494
  %1302 = vmatmul.mubr.bf16.gmra.mrb[0].mxu0 %v493
  %v1303 = vpop.f32.mrb[0].mxu0
  %v1304 = vadd.f32 %v1239, %v1303
  %v1305 = vpop.f32.mrb[0].mxu0
  %v1306 = vpop.f32.mrb[0].mxu0
  %v1307 = vadd.f32 %v1242, %v1306
  %v1308 = vpop.f32.mrb[0].mxu0
  %1309 = vdwg.mxu0
  %1310 = vmatprep.subr.bf16.mxu0 0
  %1311 = vmatpush1.bf16.msra.mxu0 %v1004
  %1312 = vmatprep.subr.bf16.mxu0 0
  %1313 = vmatpush1.bf16.msra.mxu0 %v1005
  %1314 = vmatprep.subr.bf16.mxu0 0
  %1315 = vmatpush1.bf16.msra.mxu0 %v1006
  %1316 = vmatprep.subr.bf16.mxu0 0
  %1317 = vmatpush1.bf16.msra.mxu0 %v1007
  %1318 = vmatprep.subr.bf16.mxu0 0
  %1319 = vmatpush1.bf16.msra.mxu0 %v1008
  %1320 = vmatprep.subr.bf16.mxu0 0
  %1321 = vmatpush1.bf16.msra.mxu0 %v1009
  %1322 = vmatprep.subr.bf16.mxu0 0
  %1323 = vmatpush1.bf16.msra.mxu0 %v1010
  %1324 = vmatprep.subr.bf16.mxu0 0
  %1325 = vmatpush1.bf16.msra.mxu0 %v1011
  %1326 = vmatprep.subr.bf16.mxu0 0
  %1327 = vmatpush1.bf16.msra.mxu0 %v1012
  %1328 = vmatprep.subr.bf16.mxu0 0
  %1329 = vmatpush1.bf16.msra.mxu0 %v1013
  %1330 = vmatprep.subr.bf16.mxu0 0
  %1331 = vmatpush1.bf16.msra.mxu0 %v1014
  %1332 = vmatprep.subr.bf16.mxu0 0
  %1333 = vmatpush1.bf16.msra.mxu0 %v1015
  %1334 = vmatprep.subr.bf16.mxu0 0
  %1335 = vmatpush1.bf16.msra.mxu0 %v1016
  %1336 = vmatprep.subr.bf16.mxu0 0
  %1337 = vmatpush1.bf16.msra.mxu0 %v1017
  %1338 = vmatprep.subr.bf16.mxu0 0
  %1339 = vmatpush1.bf16.msra.mxu0 %v1018
  %1340 = vmatprep.subr.bf16.mxu0 0
  %1341 = vmatpush1.bf16.msra.mxu0 %v1019
  %1342 = vmatprep.mubr.bf16.mxu0 %v457
  %1343 = vmatmul.mubr.bf16.gmra.mrb[0].mxu0 %v456
  %v1344 = vpop.f32.mrb[0].mxu0
  %v1345 = vadd.f32 %v1280, %v1344
  %v1346 = vpop.f32.mrb[0].mxu0
  %v1347 = vpop.f32.mrb[0].mxu0
  %v1348 = vadd.f32 %v1283, %v1347
  %v1349 = vpop.f32.mrb[0].mxu0
  %1350 = vmatprep.mubr.bf16.mxu0 %v470
  %1351 = vmatmul.mubr.bf16.gmra.mrb[0].mxu0 %v469
  %v1352 = vpop.f32.mrb[0].mxu0
  %v1353 = vadd.f32 %v1288, %v1352
  %v1354 = vpop.f32.mrb[0].mxu0
  %v1355 = vpop.f32.mrb[0].mxu0
  %v1356 = vadd.f32 %v1291, %v1355
  %v1357 = vpop.f32.mrb[0].mxu0
  %1358 = vmatprep.mubr.bf16.mxu0 %v483
  %1359 = vmatmul.mubr.bf16.gmra.mrb[0].mxu0 %v482
  %v1360 = vpop.f32.mrb[0].mxu0
  %v1361 = vadd.f32 %v1296, %v1360
  %v1362 = vpop.f32.mrb[0].mxu0
  %v1363 = vpop.f32.mrb[0].mxu0
  %v1364 = vadd.f32 %v1299, %v1363
  %v1365 = vpop.f32.mrb[0].mxu0
  %1366 = vmatprep.mubr.bf16.mxu0 %v496
  %1367 = vmatmul.mubr.bf16.gmra.mrb[0].mxu0 %v495
  %v1368 = vpop.f32.mrb[0].mxu0
  %v1369 = vadd.f32 %v1304, %v1368
  %v1370 = vpop.f32.mrb[0].mxu0
  %v1371 = vpop.f32.mrb[0].mxu0
  %v1372 = vadd.f32 %v1307, %v1371
  %v1373 = vpop.f32.mrb[0].mxu0
  %1374 = vdwg.mxu0
  %1375 = vmatprep.subr.bf16.mxu0 0
  %1376 = vmatpush1.bf16.msra.mxu0 %v1020
  %1377 = vmatprep.subr.bf16.mxu0 0
  %1378 = vmatpush1.bf16.msra.mxu0 %v1021
  %1379 = vmatprep.subr.bf16.mxu0 0
  %1380 = vmatpush1.bf16.msra.mxu0 %v1022
  %1381 = vmatprep.subr.bf16.mxu0 0
  %1382 = vmatpush1.bf16.msra.mxu0 %v1023
  %1383 = vmatprep.subr.bf16.mxu0 0
  %1384 = vmatpush1.bf16.msra.mxu0 %v1024
  %1385 = vmatprep.subr.bf16.mxu0 0
  %1386 = vmatpush1.bf16.msra.mxu0 %v1025
  %1387 = vmatprep.subr.bf16.mxu0 0
  %1388 = vmatpush1.bf16.msra.mxu0 %v1026
  %1389 = vmatprep.subr.bf16.mxu0 0
  %1390 = vmatpush1.bf16.msra.mxu0 %v1027
  %1391 = vmatprep.subr.bf16.mxu0 0
  %1392 = vmatpush1.bf16.msra.mxu0 %v1028
  %1393 = vmatprep.subr.bf16.mxu0 0
  %1394 = vmatpush1.bf16.msra.mxu0 %v1029
  %1395 = vmatprep.subr.bf16.mxu0 0
  %1396 = vmatpush1.bf16.msra.mxu0 %v1030
  %1397 = vmatprep.subr.bf16.mxu0 0
  %1398 = vmatpush1.bf16.msra.mxu0 %v1031
  %1399 = vmatprep.subr.bf16.mxu0 0
  %1400 = vmatpush1.bf16.msra.mxu0 %v1032
  %1401 = vmatprep.subr.bf16.mxu0 0
  %1402 = vmatpush1.bf16.msra.mxu0 %v1033
  %1403 = vmatprep.subr.bf16.mxu0 0
  %1404 = vmatpush1.bf16.msra.mxu0 %v1034
  %1405 = vmatprep.subr.bf16.mxu0 0
  %1406 = vmatpush1.bf16.msra.mxu0 %v1035
  %1407 = vmatprep.mubr.bf16.mxu0 %v459
  %1408 = vmatmul.mubr.bf16.gmra.mrb[0].mxu0 %v458
  %v1409 = vpop.f32.mrb[0].mxu0
  %v1410 = vadd.f32 %v1345, %v1409
  %v1411 = vpop.f32.mrb[0].mxu0
  %v1412 = vpop.f32.mrb[0].mxu0
  %v1413 = vadd.f32 %v1348, %v1412
  %v1414 = vpop.f32.mrb[0].mxu0
  %1415 = vmatprep.mubr.bf16.mxu0 %v472
  %1416 = vmatmul.mubr.bf16.gmra.mrb[0].mxu0 %v471
  %v1417 = vpop.f32.mrb[0].mxu0
  %v1418 = vadd.f32 %v1353, %v1417
  %v1419 = vpop.f32.mrb[0].mxu0
  %v1420 = vpop.f32.mrb[0].mxu0
  %v1421 = vadd.f32 %v1356, %v1420
  %v1422 = vpop.f32.mrb[0].mxu0
  %1423 = vmatprep.mubr.bf16.mxu0 %v485
  %1424 = vmatmul.mubr.bf16.gmra.mrb[0].mxu0 %v484
  %v1425 = vpop.f32.mrb[0].mxu0
  %v1426 = vadd.f32 %v1361, %v1425
  %v1427 = vpop.f32.mrb[0].mxu0
  %v1428 = vpop.f32.mrb[0].mxu0
  %v1429 = vadd.f32 %v1364, %v1428
  %v1430 = vpop.f32.mrb[0].mxu0
  %1431 = vmatprep.mubr.bf16.mxu0 %v498
  %1432 = vmatmul.mubr.bf16.gmra.mrb[0].mxu0 %v497
  %v1433 = vpop.f32.mrb[0].mxu0
  %v1434 = vadd.f32 %v1369, %v1433
  %v1435 = vpop.f32.mrb[0].mxu0
  %v1436 = vpop.f32.mrb[0].mxu0
  %v1437 = vadd.f32 %v1372, %v1436
  %v1438 = vpop.f32.mrb[0].mxu0
  %1439 = vdwg.mxu0
  %1440 = vmatprep.subr.bf16.mxu0 0
  %1441 = vmatpush1.bf16.msra.mxu0 %v1036
  %1442 = vmatprep.subr.bf16.mxu0 0
  %1443 = vmatpush1.bf16.msra.mxu0 %v1037
  %1444 = vmatprep.subr.bf16.mxu0 0
  %1445 = vmatpush1.bf16.msra.mxu0 %v1038
  %1446 = vmatprep.subr.bf16.mxu0 0
  %1447 = vmatpush1.bf16.msra.mxu0 %v1039
  %1448 = vmatprep.subr.bf16.mxu0 0
  %1449 = vmatpush1.bf16.msra.mxu0 %v1040
  %1450 = vmatprep.subr.bf16.mxu0 0
  %1451 = vmatpush1.bf16.msra.mxu0 %v1041
  %1452 = vmatprep.subr.bf16.mxu0 0
  %1453 = vmatpush1.bf16.msra.mxu0 %v1042
  %1454 = vmatprep.subr.bf16.mxu0 0
  %1455 = vmatpush1.bf16.msra.mxu0 %v1043
  %1456 = vmatprep.subr.bf16.mxu0 0
  %1457 = vmatpush1.bf16.msra.mxu0 %v1044
  %1458 = vmatprep.subr.bf16.mxu0 0
  %1459 = vmatpush1.bf16.msra.mxu0 %v1045
  %1460 = vmatprep.subr.bf16.mxu0 0
  %1461 = vmatpush1.bf16.msra.mxu0 %v1046
  %1462 = vmatprep.subr.bf16.mxu0 0
  %1463 = vmatpush1.bf16.msra.mxu0 %v1047
  %1464 = vmatprep.subr.bf16.mxu0 0
  %1465 = vmatpush1.bf16.msra.mxu0 %v1048
  %1466 = vmatprep.subr.bf16.mxu0 0
  %1467 = vmatpush1.bf16.msra.mxu0 %v1049
  %1468 = vmatprep.subr.bf16.mxu0 0
  %1469 = vmatpush1.bf16.msra.mxu0 %v1050
  %1470 = vmatprep.subr.bf16.mxu0 0
  %1471 = vmatpush1.bf16.msra.mxu0 %v1051
  %1472 = vmatprep.mubr.bf16.mxu0 %v461
  %1473 = vmatmul.mubr.bf16.gmra.mrb[0].mxu0 %v460
  %v1474 = vpop.f32.mrb[0].mxu0
  %v1475 = vadd.f32 %v1410, %v1474
  %v1476 = vpop.f32.mrb[0].mxu0
  %v1477 = vpop.f32.mrb[0].mxu0
  %v1478 = vadd.f32 %v1413, %v1477
  %v1479 = vpop.f32.mrb[0].mxu0
  %1480 = vmatprep.mubr.bf16.mxu0 %v474
  %1481 = vmatmul.mubr.bf16.gmra.mrb[0].mxu0 %v473
  %v1482 = vpop.f32.mrb[0].mxu0
  %v1483 = vadd.f32 %v1418, %v1482
  %v1484 = vpop.f32.mrb[0].mxu0
  %v1485 = vpop.f32.mrb[0].mxu0
  %v1486 = vadd.f32 %v1421, %v1485
  %v1487 = vpop.f32.mrb[0].mxu0
  %1488 = vmatprep.mubr.bf16.mxu0 %v487
  %1489 = vmatmul.mubr.bf16.gmra.mrb[0].mxu0 %v486
  %v1490 = vpop.f32.mrb[0].mxu0
  %v1491 = vadd.f32 %v1426, %v1490
  %v1492 = vpop.f32.mrb[0].mxu0
  %v1493 = vpop.f32.mrb[0].mxu0
  %v1494 = vadd.f32 %v1429, %v1493
  %v1495 = vpop.f32.mrb[0].mxu0
  %1496 = vmatprep.mubr.bf16.mxu0 %v500
  %1497 = vmatmul.mubr.bf16.gmra.mrb[0].mxu0 %v499
  %v1498 = vpop.f32.mrb[0].mxu0
  %v1499 = vadd.f32 %v1434, %v1498
  %v1500 = vpop.f32.mrb[0].mxu0
  %v1501 = vpop.f32.mrb[0].mxu0
  %v1502 = vadd.f32 %v1437, %v1501
  %v1503 = vpop.f32.mrb[0].mxu0
  %1504 = vdwg.mxu0
  %1505 = vmatprep.subr.bf16.mxu0 0
  %1506 = vmatpush1.bf16.msra.mxu0 %v1052
  %1507 = vmatprep.subr.bf16.mxu0 0
  %1508 = vmatpush1.bf16.msra.mxu0 %v1053
  %1509 = vmatprep.subr.bf16.mxu0 0
  %1510 = vmatpush1.bf16.msra.mxu0 %v1054
  %1511 = vmatprep.subr.bf16.mxu0 0
  %1512 = vmatpush1.bf16.msra.mxu0 %v1055
  %1513 = vmatprep.subr.bf16.mxu0 0
  %1514 = vmatpush1.bf16.msra.mxu0 %v1056
  %1515 = vmatprep.subr.bf16.mxu0 0
  %1516 = vmatpush1.bf16.msra.mxu0 %v1057
  %1517 = vmatprep.subr.bf16.mxu0 0
  %1518 = vmatpush1.bf16.msra.mxu0 %v1058
  %1519 = vmatprep.subr.bf16.mxu0 0
  %1520 = vmatpush1.bf16.msra.mxu0 %v1059
  %1521 = vmatprep.subr.bf16.mxu0 0
  %1522 = vmatpush1.bf16.msra.mxu0 %v1060
  %1523 = vmatprep.subr.bf16.mxu0 0
  %1524 = vmatpush1.bf16.msra.mxu0 %v1061
  %1525 = vmatprep.subr.bf16.mxu0 0
  %1526 = vmatpush1.bf16.msra.mxu0 %v1062
  %1527 = vmatprep.subr.bf16.mxu0 0
  %1528 = vmatpush1.bf16.msra.mxu0 %v1063
  %1529 = vmatprep.subr.bf16.mxu0 0
  %1530 = vmatpush1.bf16.msra.mxu0 %v1064
  %1531 = vmatprep.subr.bf16.mxu0 0
  %1532 = vmatpush1.bf16.msra.mxu0 %v1065
  %1533 = vmatprep.subr.bf16.mxu0 0
  %1534 = vmatpush1.bf16.msra.mxu0 %v1066
  %1535 = vmatprep.subr.bf16.mxu0 0
  %1536 = vmatpush1.bf16.msra.mxu0 %v1067
  %1537 = vmatprep.mubr.bf16.mxu0 %v463
  %1538 = vmatmul.mubr.bf16.gmra.mrb[0].mxu0 %v462
  %v1539 = vpop.f32.mrb[0].mxu0
  %v1540 = vadd.f32 %v1475, %v1539
  %v1541 = vpop.f32.mrb[0].mxu0
  %v1542 = vpop.f32.mrb[0].mxu0
  %v1543 = vadd.f32 %v1478, %v1542
  %v1544 = vpop.f32.mrb[0].mxu0
  %1545 = vmatprep.mubr.bf16.mxu0 %v476
  %1546 = vmatmul.mubr.bf16.gmra.mrb[0].mxu0 %v475
  %v1547 = vpop.f32.mrb[0].mxu0
  %v1548 = vadd.f32 %v1483, %v1547
  %v1549 = vpop.f32.mrb[0].mxu0
  %v1550 = vpop.f32.mrb[0].mxu0
  %v1551 = vadd.f32 %v1486, %v1550
  %v1552 = vpop.f32.mrb[0].mxu0
  %1553 = vmatprep.mubr.bf16.mxu0 %v489
  %1554 = vmatmul.mubr.bf16.gmra.mrb[0].mxu0 %v488
  %v1555 = vpop.f32.mrb[0].mxu0
  %v1556 = vadd.f32 %v1491, %v1555
  %v1557 = vpop.f32.mrb[0].mxu0
  %v1558 = vpop.f32.mrb[0].mxu0
  %v1559 = vadd.f32 %v1494, %v1558
  %v1560 = vpop.f32.mrb[0].mxu0
  %1561 = vmatprep.mubr.bf16.mxu0 %v502
  %1562 = vmatmul.mubr.bf16.gmra.mrb[0].mxu0 %v501
  %v1563 = vpop.f32.mrb[0].mxu0
  %v1564 = vadd.f32 %v1499, %v1563
  %v1565 = vpop.f32.mrb[0].mxu0
  %v1566 = vpop.f32.mrb[0].mxu0
  %v1567 = vadd.f32 %v1502, %v1566
  %v1568 = vpop.f32.mrb[0].mxu0
  %1569 = vdwg.mxu0
  %1570 = vmatprep.subr.bf16.mxu0 0
  %1571 = vmatpush1.bf16.msra.mxu0 %v1068
  %1572 = vmatprep.subr.bf16.mxu0 0
  %1573 = vmatpush1.bf16.msra.mxu0 %v1069
  %1574 = vmatprep.subr.bf16.mxu0 0
  %1575 = vmatpush1.bf16.msra.mxu0 %v1070
  %1576 = vmatprep.subr.bf16.mxu0 0
  %1577 = vmatpush1.bf16.msra.mxu0 %v1071
  %1578 = vmatprep.subr.bf16.mxu0 0
  %1579 = vmatpush1.bf16.msra.mxu0 %v1072
  %1580 = vmatprep.subr.bf16.mxu0 0
  %1581 = vmatpush1.bf16.msra.mxu0 %v1073
  %1582 = vmatprep.subr.bf16.mxu0 0
  %1583 = vmatpush1.bf16.msra.mxu0 %v1074
  %1584 = vmatprep.subr.bf16.mxu0 0
  %1585 = vmatpush1.bf16.msra.mxu0 %v1075
  %1586 = vmatprep.subr.bf16.mxu0 0
  %1587 = vmatpush1.bf16.msra.mxu0 0
  %1588 = vmatprep.subr.bf16.mxu0 0
  %1589 = vmatpush1.bf16.msra.mxu0 0
  %1590 = vmatprep.subr.bf16.mxu0 0
  %1591 = vmatpush1.bf16.msra.mxu0 0
  %1592 = vmatprep.subr.bf16.mxu0 0
  %1593 = vmatpush1.bf16.msra.mxu0 0
  %1594 = vmatprep.subr.bf16.mxu0 0
  %1595 = vmatpush1.bf16.msra.mxu0 0
  %1596 = vmatprep.subr.bf16.mxu0 0
  %1597 = vmatpush1.bf16.msra.mxu0 0
  %1598 = vmatprep.subr.bf16.mxu0 0
  %1599 = vmatpush1.bf16.msra.mxu0 0
  %1600 = vmatprep.subr.bf16.mxu0 0
  %1601 = vmatpush1.bf16.msra.mxu0 0
  %1602 = vmatprep.mubr.bf16.mxu0 0
  %1603 = vmatmul.mubr.bf16.gmra.mrb[0].mxu0 %v464
  %v1604 = vpop.f32.mrb[0].mxu0
  %v1605 = vadd.f32 %v1540, %v1604
  %v1606 = vpop.f32.mrb[0].mxu0
  %v1607 = vpop.f32.mrb[0].mxu0
  %v1608 = vadd.f32 %v1543, %v1607
  %v1609 = vpop.f32.mrb[0].mxu0
  %1610 = vmatprep.mubr.bf16.mxu0 0
  %1611 = vmatmul.mubr.bf16.gmra.mrb[0].mxu0 %v477
  %v1612 = vpop.f32.mrb[0].mxu0
  %v1613 = vadd.f32 %v1548, %v1612
  %v1614 = vpop.f32.mrb[0].mxu0
  %v1615 = vpop.f32.mrb[0].mxu0
  %v1616 = vadd.f32 %v1551, %v1615
  %v1617 = vpop.f32.mrb[0].mxu0
  %1618 = vmatprep.mubr.bf16.mxu0 0
  %1619 = vmatmul.mubr.bf16.gmra.mrb[0].mxu0 %v490
  %v1620 = vpop.f32.mrb[0].mxu0
  %v1621 = vadd.f32 %v1556, %v1620
  %v1622 = vpop.f32.mrb[0].mxu0
  %v1623 = vpop.f32.mrb[0].mxu0
  %v1624 = vadd.f32 %v1559, %v1623
  %v1625 = vpop.f32.mrb[0].mxu0
  %1626 = vmatprep.mubr.bf16.mxu0 0
  %1627 = vmatmul.mubr.bf16.gmra.mrb[0].mxu0 %v503
  %v1628 = vpop.f32.mrb[0].mxu0
  %v1629 = vadd.f32 %v1564, %v1628
  %v1630 = vpop.f32.mrb[0].mxu0
  %v1631 = vpop.f32.mrb[0].mxu0
  %v1632 = vadd.f32 %v1567, %v1631
  %v1633 = vpop.f32.mrb[0].mxu0
  %1634 = vdwg.mxu0
  %vm1635 = vcmp.gt.f32.partialorder %v1605, 0.0
  %vm1636 = vcmp.gt.f32.partialorder %v1608, 0.0
  %vm1637 = vcmp.gt.f32.partialorder %v1613, 0.0
  %vm1638 = vcmp.gt.f32.partialorder %v1616, 0.0
  %vm1639 = vcmp.gt.f32.partialorder %v1621, 0.0
  %vm1640 = vcmp.gt.f32.partialorder %v1624, 0.0
  %vm1641 = vcmp.gt.f32.partialorder %v1629, 0.0
  %vm1642 = vcmp.gt.f32.partialorder %v1632, 0.0
  %v1643 = vmul.f32 %v1605, 0.01
  %v1644 = vmul.f32 %v1608, 0.01
  %v1645 = vmul.f32 %v1613, 0.01
  %v1646 = vmul.f32 %v1616, 0.01
  %v1647 = vmul.f32 %v1621, 0.01
  %v1648 = vmul.f32 %v1624, 0.01
  %v1649 = vmul.f32 %v1629, 0.01
  %v1650 = vmul.f32 %v1632, 0.01
  %v1651 = vsel %vm1635, %v1605, %v1643
  %v1652 = vsel %vm1636, %v1608, %v1644
  %v1653 = vsel %vm1637, %v1613, %v1645
  %v1654 = vsel %vm1638, %v1616, %v1646
  %v1655 = vsel %vm1639, %v1621, %v1647
  %v1656 = vsel %vm1640, %v1624, %v1648
  %v1657 = vsel %vm1641, %v1629, %v1649
  %v1658 = vsel %vm1642, %v1632, %v1650
  %v1659 = vpack.c.bf16 %v1652, %v1651
  %v1660 = vpack.c.bf16 %v1654, %v1653
  %v1661 = vpack.c.bf16 %v1656, %v1655
  %v1662 = vpack.c.bf16 %v1658, %v1657
  %v1663 = vld [vmem:[%s3] sm:$0xf]
  %v1664 = vld [vmem:[%s3 + $0x4] sm:$0xf]
  %v1665 = vld [vmem:[%s3 + $0x8] sm:$0xf]
  %v1666 = vld [vmem:[%s3 + $0xc] sm:$0xf]
  %v1667 = vld [vmem:[%s3 + $0x10] sm:$0xf]
  %v1668 = vld [vmem:[%s3 + $0x14] sm:$0xf]
  %v1669 = vld [vmem:[%s3 + $0x18] sm:$0xf]
  %v1670 = vld [vmem:[%s3 + $0x1c] sm:$0xf]
  %v1671 = vld [vmem:[%s3 + $0x20] sm:$0xf]
  %v1672 = vld [vmem:[%s3 + $0x24] sm:$0xf]
  %v1673 = vld [vmem:[%s3 + $0x28] sm:$0xf]
  %v1674 = vld [vmem:[%s3 + $0x2c] sm:$0xf]
  %v1675 = vld [vmem:[%s3 + $0x30] sm:$0xf]
  %v1676 = vld [vmem:[%s3 + $0x34] sm:$0xf]
  %v1677 = vld [vmem:[%s3 + $0x38] sm:$0xf]
  %v1678 = vld [vmem:[%s3 + $0x3c] sm:$0xf]
  %v1679 = vld [vmem:[%s4] sm:$0x1]
  %v1681 = vlaneseq
  %v1682 = vshrl.u32 %v1681, 7
  %v1683 = vsub.s32 0, %v1682
  %v1684 = vrot.slane %v1679, %v1683
  %v1702 = vunpack.c.l.b16 %v1663
  %v1703 = vunpack.c.l.b16 %v1664
  %v1704 = vunpack.c.l.b16 %v1665
  %v1705 = vunpack.c.l.b16 %v1666
  %v1706 = vunpack.c.l.b16 %v1667
  %v1707 = vunpack.c.l.b16 %v1668
  %v1708 = vunpack.c.l.b16 %v1669
  %v1709 = vunpack.c.l.b16 %v1670
  %v1710 = vunpack.c.l.b16 %v1671
  %v1711 = vunpack.c.l.b16 %v1672
  %v1712 = vunpack.c.l.b16 %v1673
  %v1713 = vunpack.c.l.b16 %v1674
  %v1714 = vunpack.c.l.b16 %v1675
  %v1715 = vunpack.c.l.b16 %v1676
  %v1716 = vunpack.c.l.b16 %v1677
  %v1717 = vunpack.c.l.b16 %v1678
  %v1718 = vpack.c.b16 %v1703, %v1702
  %v1719 = vpack.c.b16 %v1705, %v1704
  %v1720 = vpack.c.b16 %v1707, %v1706
  %v1721 = vpack.c.b16 %v1709, %v1708
  %v1722 = vpack.c.b16 %v1711, %v1710
  %v1723 = vpack.c.b16 %v1713, %v1712
  %v1724 = vpack.c.b16 %v1715, %v1714
  %v1725 = vpack.c.b16 %v1717, %v1716
  %1734 = vmatprep.subr.bf16.mxu0 0
  %1735 = vmatpush1.bf16.msra.mxu0 %v1718
  %1736 = vmatprep.subr.bf16.mxu0 0
  %1737 = vmatpush1.bf16.msra.mxu0 %v1719
  %1738 = vmatprep.subr.bf16.mxu0 0
  %1739 = vmatpush1.bf16.msra.mxu0 %v1720
  %1740 = vmatprep.subr.bf16.mxu0 0
  %1741 = vmatpush1.bf16.msra.mxu0 %v1721
  %1742 = vmatprep.subr.bf16.mxu0 0
  %1743 = vmatpush1.bf16.msra.mxu0 %v1722
  %1744 = vmatprep.subr.bf16.mxu0 0
  %1745 = vmatpush1.bf16.msra.mxu0 %v1723
  %1746 = vmatprep.subr.bf16.mxu0 0
  %1747 = vmatpush1.bf16.msra.mxu0 %v1724
  %1748 = vmatprep.subr.bf16.mxu0 0
  %1749 = vmatpush1.bf16.msra.mxu0 %v1725
  %1750 = vmatprep.subr.bf16.mxu0 0
  %1751 = vmatpush1.bf16.msra.mxu0 0
  %1752 = vmatprep.subr.bf16.mxu0 0
  %1753 = vmatpush1.bf16.msra.mxu0 0
  %1754 = vmatprep.subr.bf16.mxu0 0
  %1755 = vmatpush1.bf16.msra.mxu0 0
  %1756 = vmatprep.subr.bf16.mxu0 0
  %1757 = vmatpush1.bf16.msra.mxu0 0
  %1758 = vmatprep.subr.bf16.mxu0 0
  %1759 = vmatpush1.bf16.msra.mxu0 0
  %1760 = vmatprep.subr.bf16.mxu0 0
  %1761 = vmatpush1.bf16.msra.mxu0 0
  %1762 = vmatprep.subr.bf16.mxu0 0
  %1763 = vmatpush1.bf16.msra.mxu0 0
  %1764 = vmatprep.subr.bf16.mxu0 0
  %1765 = vmatpush1.bf16.msra.mxu0 0
  %1766 = vmatprep.mubr.bf16.mxu0 0
  %1767 = vmatmul.mubr.bf16.gmra.mrb[0].mxu0 %v1659
  %v1768 = vpop.f32.mrb[0].mxu0
  %v1769 = vadd.f32 %v1684, %v1768
  %v1770 = vpop.f32.mrb[0].mxu0
  %v1771 = vpop.f32.mrb[0].mxu0
  %v1772 = vadd.f32 %v1684, %v1771
  %v1773 = vpop.f32.mrb[0].mxu0
  %1774 = vmatprep.mubr.bf16.mxu0 0
  %1775 = vmatmul.mubr.bf16.gmra.mrb[0].mxu0 %v1660
  %v1776 = vpop.f32.mrb[0].mxu0
  %v1777 = vadd.f32 %v1684, %v1776
  %v1778 = vpop.f32.mrb[0].mxu0
  %v1779 = vpop.f32.mrb[0].mxu0
  %v1780 = vadd.f32 %v1684, %v1779
  %v1781 = vpop.f32.mrb[0].mxu0
  %1782 = vmatprep.mubr.bf16.mxu0 0
  %1783 = vmatmul.mubr.bf16.gmra.mrb[0].mxu0 %v1661
  %v1784 = vpop.f32.mrb[0].mxu0
  %v1785 = vadd.f32 %v1684, %v1784
  %v1786 = vpop.f32.mrb[0].mxu0
  %v1787 = vpop.f32.mrb[0].mxu0
  %v1788 = vadd.f32 %v1684, %v1787
  %v1789 = vpop.f32.mrb[0].mxu0
  %1790 = vmatprep.mubr.bf16.mxu0 0
  %1791 = vmatmul.mubr.bf16.gmra.mrb[0].mxu0 %v1662
  %v1792 = vpop.f32.mrb[0].mxu0
  %v1793 = vadd.f32 %v1684, %v1792
  %v1794 = vpop.f32.mrb[0].mxu0
  %v1795 = vpop.f32.mrb[0].mxu0
  %v1796 = vadd.f32 %v1684, %v1795
  %v1797 = vpop.f32.mrb[0].mxu0
  %1798 = vdwg.mxu0
  %vm1799 = vcmp.gt.f32.partialorder %v1769, 0.0
  %vm1800 = vcmp.gt.f32.partialorder %v1772, 0.0
  %vm1801 = vcmp.gt.f32.partialorder %v1777, 0.0
  %vm1802 = vcmp.gt.f32.partialorder %v1780, 0.0
  %vm1803 = vcmp.gt.f32.partialorder %v1785, 0.0
  %vm1804 = vcmp.gt.f32.partialorder %v1788, 0.0
  %vm1805 = vcmp.gt.f32.partialorder %v1793, 0.0
  %vm1806 = vcmp.gt.f32.partialorder %v1796, 0.0
  %v1807 = vmul.f32 %v1769, 0.01
  %v1808 = vmul.f32 %v1772, 0.01
  %v1809 = vmul.f32 %v1777, 0.01
  %v1810 = vmul.f32 %v1780, 0.01
  %v1811 = vmul.f32 %v1785, 0.01
  %v1812 = vmul.f32 %v1788, 0.01
  %v1813 = vmul.f32 %v1793, 0.01
  %v1814 = vmul.f32 %v1796, 0.01
  %v1815 = vsel %vm1799, %v1769, %v1807
  %v1816 = vsel %vm1800, %v1772, %v1808
  %v1817 = vsel %vm1801, %v1777, %v1809
  %v1818 = vsel %vm1802, %v1780, %v1810
  %v1819 = vsel %vm1803, %v1785, %v1811
  %v1820 = vsel %vm1804, %v1788, %v1812
  %v1821 = vsel %vm1805, %v1793, %v1813
  %v1822 = vsel %vm1806, %v1796, %v1814
  %v1823 = vpack.c.bf16 %v1816, %v1815
  %v1824 = vpack.c.bf16 %v1818, %v1817
  %v1825 = vpack.c.bf16 %v1820, %v1819
  %v1826 = vpack.c.bf16 %v1822, %v1821
  %v1831 = vunpack.c.l.b16 %v1823
  %v1832 = vunpack.c.h.b16 %v1823
  %v1833 = vunpack.c.l.b16 %v1824
  %v1834 = vunpack.c.h.b16 %v1824
  %v1835 = vunpack.c.l.b16 %v1825
  %v1836 = vunpack.c.h.b16 %v1825
  %v1837 = vunpack.c.l.b16 %v1826
  %v1838 = vunpack.c.h.b16 %v1826
  %v1839 = vpack.c.b16 %v1831, %v1831
  %v1840 = vpack.c.b16 %v1832, %v1832
  %v1841 = vpack.c.b16 %v1833, %v1833
  %v1842 = vpack.c.b16 %v1834, %v1834
  %v1843 = vpack.c.b16 %v1835, %v1835
  %v1844 = vpack.c.b16 %v1836, %v1836
  %v1845 = vpack.c.b16 %v1837, %v1837
  %v1846 = vpack.c.b16 %v1838, %v1838
  %1855 = vst [vmem:[%s5] sm:$0xf] %v1839
  %1856 = vst [vmem:[%s5 + $0x4] sm:$0xf] %v1840
  %1857 = vst [vmem:[%s5 + $0x8] sm:$0xf] %v1841
  %1858 = vst [vmem:[%s5 + $0xc] sm:$0xf] %v1842
  %1859 = vst [vmem:[%s5 + $0x10] sm:$0xf] %v1843
  %1860 = vst [vmem:[%s5 + $0x14] sm:$0xf] %v1844
  %1861 = vst [vmem:[%s5 + $0x18] sm:$0xf] %v1845
  %1862 = vst [vmem:[%s5 + $0x1c] sm:$0xf] %v1846
  // Predicated region
  $region22: #{forward.6} parent=0 // pred_check
    _
  $region23: #{forward.6} parent=0 // pred_check_branch
    %1864 = sbr.rel (0) target = $region25
  $region24: #{forward.6} parent=0 // pred_region
    _
  $region25: #{forward.6} parent=0 // pred_fallthru
    _
  // Predicated region
  $region26: #{forward.6} parent=0 // pred_check
    _
  $region27: #{forward.6} parent=0 // pred_check_branch
    %1866 = sbr.rel (0) target = $region29
  $region28: #{forward.6} parent=0 // pred_region
    _
  $region29: #{forward.6} parent=0 // pred_fallthru
    _

// kernel: forward.8
$region0: #{forward.8}
  #allocation0 [shape = 'u32[]', space=smem, size = 0x4, offset = 0x4, fixed_abs, tag = 'smem constant byte address 0x4 - core index']
  #allocation1 [shape = 'u32[144,128]{1,0:T(1,128)}', space=vmem, size = 0x12000, scoped, tag = 'internal scratch']
  %s0 = inlined_call_operand.vmem [shape: bf16[64,64], index: 0, kind: input, shape index: {}]
  %s1 = inlined_call_operand.vmem [shape: bf16[64,128], index: 1, kind: input, shape index: {}]
  %s2 = inlined_call_operand.vmem [shape: bf16[128,128], index: 2, kind: input, shape index: {}]
  %s3 = inlined_call_operand.vmem [shape: f32[4,64], index: 3, kind: input, shape index: {}]
  %s4 = inlined_call_operand.vmem [shape: f32[1,128], index: 4, kind: input, shape index: {}]
  %s5 = inlined_call_operand.vmem [shape: bf16[64,128], index: 5, kind: output, shape index: {}]
  %s6 = sld [smem:[#allocation0]]
  $region30: #{forward.8} parent=0
    _
  %s8 = ssub.s32 1, %s6
  %s9 = scalar_select 0, %s8, %s6
  // Predicated region
  $region2: #{forward.8} parent=0 // pred_check
    _
  $region3: #{forward.8} parent=0 // pred_check_branch
    %11 = sbr.rel (0) target = $region5
  $region4: #{forward.8} parent=0 // pred_region
    _
  $region5: #{forward.8} parent=0 // pred_fallthru
    _
  // Predicated region
  $region6: #{forward.8} parent=0 // pred_check
    _
  $region7: #{forward.8} parent=0 // pred_check_branch
    %13 = sbr.rel (0) target = $region9
  $region8: #{forward.8} parent=0 // pred_region
    _
  $region9: #{forward.8} parent=0 // pred_fallthru
    _
  // Predicated region
  $region10: #{forward.8} parent=0 // pred_check
    _
  $region11: #{forward.8} parent=0 // pred_check_branch
    %15 = sbr.rel (0) target = $region13
  $region12: #{forward.8} parent=0 // pred_region
    _
  $region13: #{forward.8} parent=0 // pred_fallthru
    _
  // Predicated region
  $region14: #{forward.8} parent=0 // pred_check
    _
  $region15: #{forward.8} parent=0 // pred_check_branch
    %17 = sbr.rel (0) target = $region17
  $region16: #{forward.8} parent=0 // pred_region
    _
  $region17: #{forward.8} parent=0 // pred_fallthru
    _
  // Predicated region
  $region18: #{forward.8} parent=0 // pred_check
    _
  $region19: #{forward.8} parent=0 // pred_check_branch
    %19 = sbr.rel (0) target = $region21
  $region20: #{forward.8} parent=0 // pred_region
    _
  $region21: #{forward.8} parent=0 // pred_fallthru
    _
  %s21 = smul.u32 0, 64
  %s22 = sshra.s32 %s21, 3
  %s23 = sand.u32 %s21, 7
  %s24 = smul.addr %s22, 4
  %s25 = scalar_lea.vmem %s1, %s24
  %v26 = vld [vmem:[%s25] sm:$0xf]
  %v27 = vld [vmem:[%s25 + $0x4] sm:$0xf]
  %v28 = vld [vmem:[%s25 + $0x8] sm:$0xf]
  %v29 = vld [vmem:[%s25 + $0xc] sm:$0xf]
  %v30 = vld [vmem:[%s25 + $0x10] sm:$0xf]
  %v31 = vld [vmem:[%s25 + $0x14] sm:$0xf]
  %v32 = vld [vmem:[%s25 + $0x18] sm:$0xf]
  %v33 = vld [vmem:[%s25 + $0x1c] sm:$0xf]
  %v34 = vld [vmem:[%s2] sm:$0xf]
  %v35 = vld [vmem:[%s2 + $0x4] sm:$0xf]
  %v36 = vld [vmem:[%s2 + $0x8] sm:$0xf]
  %v37 = vld [vmem:[%s2 + $0xc] sm:$0xf]
  %v38 = vld [vmem:[%s2 + $0x10] sm:$0xf]
  %v39 = vld [vmem:[%s2 + $0x14] sm:$0xf]
  %v40 = vld [vmem:[%s2 + $0x18] sm:$0xf]
  %v41 = vld [vmem:[%s2 + $0x1c] sm:$0xf]
  %v42 = vld [vmem:[%s2 + $0x20] sm:$0xf]
  %v43 = vld [vmem:[%s2 + $0x24] sm:$0xf]
  %v44 = vld [vmem:[%s2 + $0x28] sm:$0xf]
  %v45 = vld [vmem:[%s2 + $0x2c] sm:$0xf]
  %v46 = vld [vmem:[%s2 + $0x30] sm:$0xf]
  %v47 = vld [vmem:[%s2 + $0x34] sm:$0xf]
  %v48 = vld [vmem:[%s2 + $0x38] sm:$0xf]
  %v49 = vld [vmem:[%s2 + $0x3c] sm:$0xf]
  %v58 = vunpack.c.l.b16 %v26
  %v59 = vunpack.c.l.b16 %v27
  %v60 = vunpack.c.l.b16 %v28
  %v61 = vunpack.c.l.b16 %v29
  %v62 = vunpack.c.l.b16 %v30
  %v63 = vunpack.c.l.b16 %v31
  %v64 = vunpack.c.l.b16 %v32
  %v65 = vunpack.c.l.b16 %v33
  %v66 = vpack.c.b16 %v59, %v58
  %v67 = vpack.c.b16 %v61, %v60
  %v68 = vpack.c.b16 %v63, %v62
  %v69 = vpack.c.b16 %v65, %v64
  %v90 = vunpack.c.l.b16 %v34
  %v91 = vunpack.c.l.b16 %v35
  %v92 = vunpack.c.l.b16 %v36
  %v93 = vunpack.c.l.b16 %v37
  %v94 = vunpack.c.l.b16 %v38
  %v95 = vunpack.c.l.b16 %v39
  %v96 = vunpack.c.l.b16 %v40
  %v97 = vunpack.c.l.b16 %v41
  %v98 = vunpack.c.l.b16 %v42
  %v99 = vunpack.c.l.b16 %v43
  %v100 = vunpack.c.l.b16 %v44
  %v101 = vunpack.c.l.b16 %v45
  %v102 = vunpack.c.l.b16 %v46
  %v103 = vunpack.c.l.b16 %v47
  %v104 = vunpack.c.l.b16 %v48
  %v105 = vunpack.c.l.b16 %v49
  %v106 = vpack.c.b16 %v91, %v90
  %v107 = vpack.c.b16 %v93, %v92
  %v108 = vpack.c.b16 %v95, %v94
  %v109 = vpack.c.b16 %v97, %v96
  %v110 = vpack.c.b16 %v99, %v98
  %v111 = vpack.c.b16 %v101, %v100
  %v112 = vpack.c.b16 %v103, %v102
  %v113 = vpack.c.b16 %v105, %v104
  %122 = vmatprep.subr.bf16.mxu0 0
  %123 = vmatpush1.bf16.msra.mxu0 %v106
  %124 = vmatprep.subr.bf16.mxu0 0
  %125 = vmatpush1.bf16.msra.mxu0 %v107
  %126 = vmatprep.subr.bf16.mxu0 0
  %127 = vmatpush1.bf16.msra.mxu0 %v108
  %128 = vmatprep.subr.bf16.mxu0 0
  %129 = vmatpush1.bf16.msra.mxu0 %v109
  %130 = vmatprep.subr.bf16.mxu0 0
  %131 = vmatpush1.bf16.msra.mxu0 %v110
  %132 = vmatprep.subr.bf16.mxu0 0
  %133 = vmatpush1.bf16.msra.mxu0 %v111
  %134 = vmatprep.subr.bf16.mxu0 0
  %135 = vmatpush1.bf16.msra.mxu0 %v112
  %136 = vmatprep.subr.bf16.mxu0 0
  %137 = vmatpush1.bf16.msra.mxu0 %v113
  %138 = vmatprep.subr.bf16.mxu0 0
  %139 = vmatpush1.bf16.msra.mxu0 0
  %140 = vmatprep.subr.bf16.mxu0 0
  %141 = vmatpush1.bf16.msra.mxu0 0
  %142 = vmatprep.subr.bf16.mxu0 0
  %143 = vmatpush1.bf16.msra.mxu0 0
  %144 = vmatprep.subr.bf16.mxu0 0
  %145 = vmatpush1.bf16.msra.mxu0 0
  %146 = vmatprep.subr.bf16.mxu0 0
  %147 = vmatpush1.bf16.msra.mxu0 0
  %148 = vmatprep.subr.bf16.mxu0 0
  %149 = vmatpush1.bf16.msra.mxu0 0
  %150 = vmatprep.subr.bf16.mxu0 0
  %151 = vmatpush1.bf16.msra.mxu0 0
  %152 = vmatprep.subr.bf16.mxu0 0
  %153 = vmatpush1.bf16.msra.mxu0 0
  %154 = vmatprep.mubr.bf16.mxu0 0
  %155 = vmatmul.mubr.bf16.gmra.mrb[0].mxu0 %v66
  %v156 = vpop.f32.mrb[0].mxu0
  %v157 = vadd.f32 0.0, %v156
  %v158 = vpop.f32.mrb[0].mxu0
  %v159 = vpop.f32.mrb[0].mxu0
  %v160 = vadd.f32 0.0, %v159
  %v161 = vpop.f32.mrb[0].mxu0
  %162 = vmatprep.mubr.bf16.mxu0 0
  %163 = vmatmul.mubr.bf16.gmra.mrb[0].mxu0 %v67
  %v164 = vpop.f32.mrb[0].mxu0
  %v165 = vadd.f32 0.0, %v164
  %v166 = vpop.f32.mrb[0].mxu0
  %v167 = vpop.f32.mrb[0].mxu0
  %v168 = vadd.f32 0.0, %v167
  %v169 = vpop.f32.mrb[0].mxu0
  %170 = vmatprep.mubr.bf16.mxu0 0
  %171 = vmatmul.mubr.bf16.gmra.mrb[0].mxu0 %v68
  %v172 = vpop.f32.mrb[0].mxu0
  %v173 = vadd.f32 0.0, %v172
  %v174 = vpop.f32.mrb[0].mxu0
  %v175 = vpop.f32.mrb[0].mxu0
  %v176 = vadd.f32 0.0, %v175
  %v177 = vpop.f32.mrb[0].mxu0
  %178 = vmatprep.mubr.bf16.mxu0 0
  %179 = vmatmul.mubr.bf16.gmra.mrb[0].mxu0 %v69
  %v180 = vpop.f32.mrb[0].mxu0
  %v181 = vadd.f32 0.0, %v180
  %v182 = vpop.f32.mrb[0].mxu0
  %v183 = vpop.f32.mrb[0].mxu0
  %v184 = vadd.f32 0.0, %v183
  %v185 = vpop.f32.mrb[0].mxu0
  %186 = vdwg.mxu0
  %v187 = vld [vmem:[%s0] sm:$0xf]
  %v188 = vld [vmem:[%s0 + $0x4] sm:$0xf]
  %v189 = vld [vmem:[%s0 + $0x8] sm:$0xf]
  %v190 = vld [vmem:[%s0 + $0xc] sm:$0xf]
  %v191 = vld [vmem:[%s0 + $0x10] sm:$0xf]
  %v192 = vld [vmem:[%s0 + $0x14] sm:$0xf]
  %v193 = vld [vmem:[%s0 + $0x18] sm:$0xf]
  %v194 = vld [vmem:[%s0 + $0x1c] sm:$0xf]
  %v195 = vunpack.c.l.bf16 %v187
  %v196 = vunpack.c.l.bf16 %v188
  %v197 = vunpack.c.l.bf16 %v189
  %v198 = vunpack.c.l.bf16 %v190
  %v199 = vunpack.c.l.bf16 %v191
  %v200 = vunpack.c.l.bf16 %v192
  %v201 = vunpack.c.l.bf16 %v193
  %v202 = vunpack.c.l.bf16 %v194
  %v203 = vld [vmem:[%s3] sm:$0x1]
  %205 = vset.pattern.permute.xlu0 0
  %206 = vperm.xlu0 %205, %v157
  %v207 = vpop.permute.xlu0 %206
  %210 = vset.pattern.permute.xlu0 0
  %211 = vperm.xlu0 %210, %v160
  %v212 = vpop.permute.xlu0 %211
  %215 = vset.pattern.permute.xlu0 0
  %216 = vperm.xlu0 %215, %v165
  %v217 = vpop.permute.xlu0 %216
  %220 = vset.pattern.permute.xlu0 0
  %221 = vperm.xlu0 %220, %v168
  %v222 = vpop.permute.xlu0 %221
  %225 = vset.pattern.permute.xlu0 0
  %226 = vperm.xlu0 %225, %v173
  %v227 = vpop.permute.xlu0 %226
  %230 = vset.pattern.permute.xlu0 0
  %231 = vperm.xlu0 %230, %v176
  %v232 = vpop.permute.xlu0 %231
  %235 = vset.pattern.permute.xlu0 0
  %236 = vperm.xlu0 %235, %v181
  %v237 = vpop.permute.xlu0 %236
  %240 = vset.pattern.permute.xlu0 0
  %241 = vperm.xlu0 %240, %v184
  %v242 = vpop.permute.xlu0 %241
  %v244 = vlaneseq
  %v245 = vshrl.u32 %v244, 7
  %v246 = vsub.s32 0, %v245
  %v247 = vrot.slane %v203, %v246
  %v248 = vadd.f32 %v207, %v247
  %v249 = vadd.f32 %v212, %v247
  %v250 = vadd.f32 %v217, %v247
  %v251 = vadd.f32 %v222, %v247
  %v252 = vadd.f32 %v227, %v247
  %v253 = vadd.f32 %v232, %v247
  %v254 = vadd.f32 %v237, %v247
  %v255 = vadd.f32 %v242, %v247
  %vm256 = vcmp.gt.f32.partialorder %v248, 0.0
  %vm257 = vcmp.gt.f32.partialorder %v249, 0.0
  %vm258 = vcmp.gt.f32.partialorder %v250, 0.0
  %vm259 = vcmp.gt.f32.partialorder %v251, 0.0
  %vm260 = vcmp.gt.f32.partialorder %v252, 0.0
  %vm261 = vcmp.gt.f32.partialorder %v253, 0.0
  %vm262 = vcmp.gt.f32.partialorder %v254, 0.0
  %vm263 = vcmp.gt.f32.partialorder %v255, 0.0
  %v264 = vmul.f32 %v248, 0.2
  %v265 = vmul.f32 %v249, 0.2
  %v266 = vmul.f32 %v250, 0.2
  %v267 = vmul.f32 %v251, 0.2
  %v268 = vmul.f32 %v252, 0.2
  %v269 = vmul.f32 %v253, 0.2
  %v270 = vmul.f32 %v254, 0.2
  %v271 = vmul.f32 %v255, 0.2
  %v272 = vsel %vm256, %v248, %v264
  %v273 = vsel %vm257, %v249, %v265
  %v274 = vsel %vm258, %v250, %v266
  %v275 = vsel %vm259, %v251, %v267
  %v276 = vsel %vm260, %v252, %v268
  %v277 = vsel %vm261, %v253, %v269
  %v278 = vsel %vm262, %v254, %v270
  %v279 = vsel %vm263, %v255, %v271
  %v280 = vadd.f32 %v272, %v195
  %v281 = vadd.f32 %v273, %v196
  %v282 = vadd.f32 %v274, %v197
  %v283 = vadd.f32 %v275, %v198
  %v284 = vadd.f32 %v276, %v199
  %v285 = vadd.f32 %v277, %v200
  %v286 = vadd.f32 %v278, %v201
  %v287 = vadd.f32 %v279, %v202
  %vm288 = vcmask 523264
  %v289 = vsel %vm288, %v280, -inf
  %290 = vmax.xlane.f32.xlu0 %v289
  %v291 = vpop.xlane.xlu0 %290
  %v292 = vsel %vm288, %v281, -inf
  %293 = vmax.xlane.f32.xlu0 %v292
  %v294 = vpop.xlane.xlu0 %293
  %v295 = vsel %vm288, %v282, -inf
  %296 = vmax.xlane.f32.xlu0 %v295
  %v297 = vpop.xlane.xlu0 %296
  %v298 = vsel %vm288, %v283, -inf
  %299 = vmax.xlane.f32.xlu0 %v298
  %v300 = vpop.xlane.xlu0 %299
  %v301 = vsel %vm288, %v284, -inf
  %302 = vmax.xlane.f32.xlu0 %v301
  %v303 = vpop.xlane.xlu0 %302
  %v304 = vsel %vm288, %v285, -inf
  %305 = vmax.xlane.f32.xlu0 %v304
  %v306 = vpop.xlane.xlu0 %305
  %v307 = vsel %vm288, %v286, -inf
  %308 = vmax.xlane.f32.xlu0 %v307
  %v309 = vpop.xlane.xlu0 %308
  %v310 = vsel %vm288, %v287, -inf
  %311 = vmax.xlane.f32.xlu0 %v310
  %v312 = vpop.xlane.xlu0 %311
  %v313 = vsub.f32 %v280, %v291
  %v314 = vsub.f32 %v281, %v294
  %v315 = vsub.f32 %v282, %v297
  %v316 = vsub.f32 %v283, %v300
  %v317 = vsub.f32 %v284, %v303
  %v318 = vsub.f32 %v285, %v306
  %v319 = vsub.f32 %v286, %v309
  %v320 = vsub.f32 %v287, %v312
  %v321 = vmul.f32 %v313, 1.442695
  %v322 = vpow.pop %v321
  %v323 = vmul.f32 %v314, 1.442695
  %v324 = vpow.pop %v323
  %v325 = vmul.f32 %v315, 1.442695
  %v326 = vpow.pop %v325
  %v327 = vmul.f32 %v316, 1.442695
  %v328 = vpow.pop %v327
  %v329 = vmul.f32 %v317, 1.442695
  %v330 = vpow.pop %v329
  %v331 = vmul.f32 %v318, 1.442695
  %v332 = vpow.pop %v331
  %v333 = vmul.f32 %v319, 1.442695
  %v334 = vpow.pop %v333
  %v335 = vmul.f32 %v320, 1.442695
  %v336 = vpow.pop %v335
  %v337 = vsel %vm288, %v322, 0.0
  %338 = vadd.xlane.f32.xlu0 %v337
  %v339 = vpop.xlane.xlu0 %338
  %v340 = vsel %vm288, %v324, 0.0
  %341 = vadd.xlane.f32.xlu0 %v340
  %v342 = vpop.xlane.xlu0 %341
  %v343 = vsel %vm288, %v326, 0.0
  %344 = vadd.xlane.f32.xlu0 %v343
  %v345 = vpop.xlane.xlu0 %344
  %v346 = vsel %vm288, %v328, 0.0
  %347 = vadd.xlane.f32.xlu0 %v346
  %v348 = vpop.xlane.xlu0 %347
  %v349 = vsel %vm288, %v330, 0.0
  %350 = vadd.xlane.f32.xlu0 %v349
  %v351 = vpop.xlane.xlu0 %350
  %v352 = vsel %vm288, %v332, 0.0
  %353 = vadd.xlane.f32.xlu0 %v352
  %v354 = vpop.xlane.xlu0 %353
  %v355 = vsel %vm288, %v334, 0.0
  %356 = vadd.xlane.f32.xlu0 %v355
  %v357 = vpop.xlane.xlu0 %356
  %v358 = vsel %vm288, %v336, 0.0
  %359 = vadd.xlane.f32.xlu0 %v358
  %v360 = vpop.xlane.xlu0 %359
  %v361 = vrcp.pop %v339
  %v362 = vrcp.pop %v342
  %v363 = vrcp.pop %v345
  %v364 = vrcp.pop %v348
  %v365 = vrcp.pop %v351
  %v366 = vrcp.pop %v354
  %v367 = vrcp.pop %v357
  %v368 = vrcp.pop %v360
  %v369 = vmul.f32 %v322, %v361
  %v370 = vmul.f32 %v324, %v362
  %v371 = vmul.f32 %v326, %v363
  %v372 = vmul.f32 %v328, %v364
  %v373 = vmul.f32 %v330, %v365
  %v374 = vmul.f32 %v332, %v366
  %v375 = vmul.f32 %v334, %v367
  %v376 = vmul.f32 %v336, %v368
  %v377 = vpack.c.bf16 %v370, %v369
  %v378 = vpack.c.bf16 %v372, %v371
  %v379 = vpack.c.bf16 %v374, %v373
  %v380 = vpack.c.bf16 %v376, %v375
  %v381 = vld [vmem:[%s1] sm:$0xf]
  %v382 = vld [vmem:[%s1 + $0x4] sm:$0xf]
  %v383 = vld [vmem:[%s1 + $0x8] sm:$0xf]
  %v384 = vld [vmem:[%s1 + $0xc] sm:$0xf]
  %v385 = vld [vmem:[%s1 + $0x10] sm:$0xf]
  %v386 = vld [vmem:[%s1 + $0x14] sm:$0xf]
  %v387 = vld [vmem:[%s1 + $0x18] sm:$0xf]
  %v388 = vld [vmem:[%s1 + $0x1c] sm:$0xf]
  %v397 = vunpack.c.l.b16 %v381
  %v398 = vunpack.c.l.b16 %v382
  %v399 = vunpack.c.l.b16 %v383
  %v400 = vunpack.c.l.b16 %v384
  %v401 = vunpack.c.l.b16 %v385
  %v402 = vunpack.c.l.b16 %v386
  %v403 = vunpack.c.l.b16 %v387
  %v404 = vunpack.c.l.b16 %v388
  %v405 = vpack.c.b16 %v398, %v397
  %v406 = vpack.c.b16 %v400, %v399
  %v407 = vpack.c.b16 %v402, %v401
  %v408 = vpack.c.b16 %v404, %v403
  %v414 = vsel %vm288, %v377, 0
  %v417 = vsel %vm288, %v378, 0
  %v420 = vsel %vm288, %v379, 0
  %v423 = vsel %vm288, %v380, 0
  %425 = vmatprep.subr.bf16.mxu0 0
  %426 = vmatpush1.bf16.msra.mxu0 %v405
  %427 = vmatprep.subr.bf16.mxu0 0
  %428 = vmatpush1.bf16.msra.mxu0 %v406
  %429 = vmatprep.subr.bf16.mxu0 0
  %430 = vmatpush1.bf16.msra.mxu0 %v407
  %431 = vmatprep.subr.bf16.mxu0 0
  %432 = vmatpush1.bf16.msra.mxu0 %v408
  %433 = vmatprep.subr.bf16.mxu0 0
  %434 = vmatpush1.bf16.msra.mxu0 0
  %435 = vmatprep.subr.bf16.mxu0 0
  %436 = vmatpush1.bf16.msra.mxu0 0
  %437 = vmatprep.subr.bf16.mxu0 0
  %438 = vmatpush1.bf16.msra.mxu0 0
  %439 = vmatprep.subr.bf16.mxu0 0
  %440 = vmatpush1.bf16.msra.mxu0 0
  %441 = vmatprep.subr.bf16.mxu0 0
  %442 = vmatpush1.bf16.msra.mxu0 0
  %443 = vmatprep.subr.bf16.mxu0 0
  %444 = vmatpush1.bf16.msra.mxu0 0
  %445 = vmatprep.subr.bf16.mxu0 0
  %446 = vmatpush1.bf16.msra.mxu0 0
  %447 = vmatprep.subr.bf16.mxu0 0
  %448 = vmatpush1.bf16.msra.mxu0 0
  %449 = vmatprep.subr.bf16.mxu0 0
  %450 = vmatpush1.bf16.msra.mxu0 0
  %451 = vmatprep.subr.bf16.mxu0 0
  %452 = vmatpush1.bf16.msra.mxu0 0
  %453 = vmatprep.subr.bf16.mxu0 0
  %454 = vmatpush1.bf16.msra.mxu0 0
  %455 = vmatprep.subr.bf16.mxu0 0
  %456 = vmatpush1.bf16.msra.mxu0 0
  %457 = vmatprep.mubr.bf16.mxu0 0
  %458 = vmatmul.mubr.bf16.gmra.mrb[0].mxu0 %v414
  %v459 = vpop.f32.mrb[0].mxu0
  %v460 = vadd.f32 0.0, %v459
  %v461 = vpop.f32.mrb[0].mxu0
  %v462 = vpop.f32.mrb[0].mxu0
  %v463 = vadd.f32 0.0, %v462
  %v464 = vpop.f32.mrb[0].mxu0
  %465 = vmatprep.mubr.bf16.mxu0 0
  %466 = vmatmul.mubr.bf16.gmra.mrb[0].mxu0 %v417
  %v467 = vpop.f32.mrb[0].mxu0
  %v468 = vadd.f32 0.0, %v467
  %v469 = vpop.f32.mrb[0].mxu0
  %v470 = vpop.f32.mrb[0].mxu0
  %v471 = vadd.f32 0.0, %v470
  %v472 = vpop.f32.mrb[0].mxu0
  %473 = vmatprep.mubr.bf16.mxu0 0
  %474 = vmatmul.mubr.bf16.gmra.mrb[0].mxu0 %v420
  %v475 = vpop.f32.mrb[0].mxu0
  %v476 = vadd.f32 0.0, %v475
  %v477 = vpop.f32.mrb[0].mxu0
  %v478 = vpop.f32.mrb[0].mxu0
  %v479 = vadd.f32 0.0, %v478
  %v480 = vpop.f32.mrb[0].mxu0
  %481 = vmatprep.mubr.bf16.mxu0 0
  %482 = vmatmul.mubr.bf16.gmra.mrb[0].mxu0 %v423
  %v483 = vpop.f32.mrb[0].mxu0
  %v484 = vadd.f32 0.0, %v483
  %v485 = vpop.f32.mrb[0].mxu0
  %v486 = vpop.f32.mrb[0].mxu0
  %v487 = vadd.f32 0.0, %v486
  %v488 = vpop.f32.mrb[0].mxu0
  %489 = vdwg.mxu0
  %v490 = vld [vmem:[%s3 + $0x1] sm:$0x1]
  %491 = vset.pattern.permute.xlu0 1
  %492 = vperm.xlu0 %491, %v157
  %v493 = vpop.permute.xlu0 %492
  %495 = vset.pattern.permute.xlu0 1
  %496 = vperm.xlu0 %495, %v160
  %v497 = vpop.permute.xlu0 %496
  %499 = vset.pattern.permute.xlu0 1
  %500 = vperm.xlu0 %499, %v165
  %v501 = vpop.permute.xlu0 %500
  %503 = vset.pattern.permute.xlu0 1
  %504 = vperm.xlu0 %503, %v168
  %v505 = vpop.permute.xlu0 %504
  %507 = vset.pattern.permute.xlu0 1
  %508 = vperm.xlu0 %507, %v173
  %v509 = vpop.permute.xlu0 %508
  %511 = vset.pattern.permute.xlu0 1
  %512 = vperm.xlu0 %511, %v176
  %v513 = vpop.permute.xlu0 %512
  %515 = vset.pattern.permute.xlu0 1
  %516 = vperm.xlu0 %515, %v181
  %v517 = vpop.permute.xlu0 %516
  %519 = vset.pattern.permute.xlu0 1
  %520 = vperm.xlu0 %519, %v184
  %v521 = vpop.permute.xlu0 %520
  %v523 = vlaneseq
  %v524 = vshrl.u32 %v523, 7
  %v525 = vsub.s32 0, %v524
  %v526 = vrot.slane %v490, %v525
  %v527 = vadd.f32 %v493, %v526
  %v528 = vadd.f32 %v497, %v526
  %v529 = vadd.f32 %v501, %v526
  %v530 = vadd.f32 %v505, %v526
  %v531 = vadd.f32 %v509, %v526
  %v532 = vadd.f32 %v513, %v526
  %v533 = vadd.f32 %v517, %v526
  %v534 = vadd.f32 %v521, %v526
  %vm535 = vcmp.gt.f32.partialorder %v527, 0.0
  %vm536 = vcmp.gt.f32.partialorder %v528, 0.0
  %vm537 = vcmp.gt.f32.partialorder %v529, 0.0
  %vm538 = vcmp.gt.f32.partialorder %v530, 0.0
  %vm539 = vcmp.gt.f32.partialorder %v531, 0.0
  %vm540 = vcmp.gt.f32.partialorder %v532, 0.0
  %vm541 = vcmp.gt.f32.partialorder %v533, 0.0
  %vm542 = vcmp.gt.f32.partialorder %v534, 0.0
  %v543 = vmul.f32 %v527, 0.2
  %v544 = vmul.f32 %v528, 0.2
  %v545 = vmul.f32 %v529, 0.2
  %v546 = vmul.f32 %v530, 0.2
  %v547 = vmul.f32 %v531, 0.2
  %v548 = vmul.f32 %v532, 0.2
  %v549 = vmul.f32 %v533, 0.2
  %v550 = vmul.f32 %v534, 0.2
  %v551 = vsel %vm535, %v527, %v543
  %v552 = vsel %vm536, %v528, %v544
  %v553 = vsel %vm537, %v529, %v545
  %v554 = vsel %vm538, %v530, %v546
  %v555 = vsel %vm539, %v531, %v547
  %v556 = vsel %vm540, %v532, %v548
  %v557 = vsel %vm541, %v533, %v549
  %v558 = vsel %vm542, %v534, %v550
  %v559 = vadd.f32 %v551, %v195
  %v560 = vadd.f32 %v552, %v196
  %v561 = vadd.f32 %v553, %v197
  %v562 = vadd.f32 %v554, %v198
  %v563 = vadd.f32 %v555, %v199
  %v564 = vadd.f32 %v556, %v200
  %v565 = vadd.f32 %v557, %v201
  %v566 = vadd.f32 %v558, %v202
  %v567 = vsel %vm288, %v559, -inf
  %568 = vmax.xlane.f32.xlu0 %v567
  %v569 = vpop.xlane.xlu0 %568
  %v570 = vsel %vm288, %v560, -inf
  %571 = vmax.xlane.f32.xlu0 %v570
  %v572 = vpop.xlane.xlu0 %571
  %v573 = vsel %vm288, %v561, -inf
  %574 = vmax.xlane.f32.xlu0 %v573
  %v575 = vpop.xlane.xlu0 %574
  %v576 = vsel %vm288, %v562, -inf
  %577 = vmax.xlane.f32.xlu0 %v576
  %v578 = vpop.xlane.xlu0 %577
  %v579 = vsel %vm288, %v563, -inf
  %580 = vmax.xlane.f32.xlu0 %v579
  %v581 = vpop.xlane.xlu0 %580
  %v582 = vsel %vm288, %v564, -inf
  %583 = vmax.xlane.f32.xlu0 %v582
  %v584 = vpop.xlane.xlu0 %583
  %v585 = vsel %vm288, %v565, -inf
  %586 = vmax.xlane.f32.xlu0 %v585
  %v587 = vpop.xlane.xlu0 %586
  %v588 = vsel %vm288, %v566, -inf
  %589 = vmax.xlane.f32.xlu0 %v588
  %v590 = vpop.xlane.xlu0 %589
  %v591 = vsub.f32 %v559, %v569
  %v592 = vsub.f32 %v560, %v572
  %v593 = vsub.f32 %v561, %v575
  %v594 = vsub.f32 %v562, %v578
  %v595 = vsub.f32 %v563, %v581
  %v596 = vsub.f32 %v564, %v584
  %v597 = vsub.f32 %v565, %v587
  %v598 = vsub.f32 %v566, %v590
  %v599 = vmul.f32 %v591, 1.442695
  %v600 = vpow.pop %v599
  %v601 = vmul.f32 %v592, 1.442695
  %v602 = vpow.pop %v601
  %v603 = vmul.f32 %v593, 1.442695
  %v604 = vpow.pop %v603
  %v605 = vmul.f32 %v594, 1.442695
  %v606 = vpow.pop %v605
  %v607 = vmul.f32 %v595, 1.442695
  %v608 = vpow.pop %v607
  %v609 = vmul.f32 %v596, 1.442695
  %v610 = vpow.pop %v609
  %v611 = vmul.f32 %v597, 1.442695
  %v612 = vpow.pop %v611
  %v613 = vmul.f32 %v598, 1.442695
  %v614 = vpow.pop %v613
  %v615 = vsel %vm288, %v600, 0.0
  %616 = vadd.xlane.f32.xlu0 %v615
  %v617 = vpop.xlane.xlu0 %616
  %v618 = vsel %vm288, %v602, 0.0
  %619 = vadd.xlane.f32.xlu0 %v618
  %v620 = vpop.xlane.xlu0 %619
  %v621 = vsel %vm288, %v604, 0.0
  %622 = vadd.xlane.f32.xlu0 %v621
  %v623 = vpop.xlane.xlu0 %622
  %v624 = vsel %vm288, %v606, 0.0
  %625 = vadd.xlane.f32.xlu0 %v624
  %v626 = vpop.xlane.xlu0 %625
  %v627 = vsel %vm288, %v608, 0.0
  %628 = vadd.xlane.f32.xlu0 %v627
  %v629 = vpop.xlane.xlu0 %628
  %v630 = vsel %vm288, %v610, 0.0
  %631 = vadd.xlane.f32.xlu0 %v630
  %v632 = vpop.xlane.xlu0 %631
  %v633 = vsel %vm288, %v612, 0.0
  %634 = vadd.xlane.f32.xlu0 %v633
  %v635 = vpop.xlane.xlu0 %634
  %v636 = vsel %vm288, %v614, 0.0
  %637 = vadd.xlane.f32.xlu0 %v636
  %v638 = vpop.xlane.xlu0 %637
  %v639 = vrcp.pop %v617
  %v640 = vrcp.pop %v620
  %v641 = vrcp.pop %v623
  %v642 = vrcp.pop %v626
  %v643 = vrcp.pop %v629
  %v644 = vrcp.pop %v632
  %v645 = vrcp.pop %v635
  %v646 = vrcp.pop %v638
  %v647 = vmul.f32 %v600, %v639
  %v648 = vmul.f32 %v602, %v640
  %v649 = vmul.f32 %v604, %v641
  %v650 = vmul.f32 %v606, %v642
  %v651 = vmul.f32 %v608, %v643
  %v652 = vmul.f32 %v610, %v644
  %v653 = vmul.f32 %v612, %v645
  %v654 = vmul.f32 %v614, %v646
  %v655 = vpack.c.bf16 %v648, %v647
  %v656 = vpack.c.bf16 %v650, %v649
  %v657 = vpack.c.bf16 %v652, %v651
  %v658 = vpack.c.bf16 %v654, %v653
  %659 = vrot.lane.b32.xlu0 %v405, 96
  %v660 = vpop.permute.xlu0 %659
  %661 = vrot.lane.b32.xlu0 %v406, 96
  %v662 = vpop.permute.xlu0 %661
  %663 = vrot.lane.b32.xlu0 %v407, 96
  %v664 = vpop.permute.xlu0 %663
  %665 = vrot.lane.b32.xlu0 %v408, 96
  %v666 = vpop.permute.xlu0 %665
  %v672 = vsel %vm288, %v655, 0
  %v675 = vsel %vm288, %v656, 0
  %v678 = vsel %vm288, %v657, 0
  %v681 = vsel %vm288, %v658, 0
  %683 = vmatprep.subr.bf16.mxu0 0
  %684 = vmatpush1.bf16.msra.mxu0 %v660
  %685 = vmatprep.subr.bf16.mxu0 0
  %686 = vmatpush1.bf16.msra.mxu0 %v662
  %687 = vmatprep.subr.bf16.mxu0 0
  %688 = vmatpush1.bf16.msra.mxu0 %v664
  %689 = vmatprep.subr.bf16.mxu0 0
  %690 = vmatpush1.bf16.msra.mxu0 %v666
  %691 = vmatprep.subr.bf16.mxu0 0
  %692 = vmatpush1.bf16.msra.mxu0 0
  %693 = vmatprep.subr.bf16.mxu0 0
  %694 = vmatpush1.bf16.msra.mxu0 0
  %695 = vmatprep.subr.bf16.mxu0 0
  %696 = vmatpush1.bf16.msra.mxu0 0
  %697 = vmatprep.subr.bf16.mxu0 0
  %698 = vmatpush1.bf16.msra.mxu0 0
  %699 = vmatprep.subr.bf16.mxu0 0
  %700 = vmatpush1.bf16.msra.mxu0 0
  %701 = vmatprep.subr.bf16.mxu0 0
  %702 = vmatpush1.bf16.msra.mxu0 0
  %703 = vmatprep.subr.bf16.mxu0 0
  %704 = vmatpush1.bf16.msra.mxu0 0
  %705 = vmatprep.subr.bf16.mxu0 0
  %706 = vmatpush1.bf16.msra.mxu0 0
  %707 = vmatprep.subr.bf16.mxu0 0
  %708 = vmatpush1.bf16.msra.mxu0 0
  %709 = vmatprep.subr.bf16.mxu0 0
  %710 = vmatpush1.bf16.msra.mxu0 0
  %711 = vmatprep.subr.bf16.mxu0 0
  %712 = vmatpush1.bf16.msra.mxu0 0
  %713 = vmatprep.subr.bf16.mxu0 0
  %714 = vmatpush1.bf16.msra.mxu0 0
  %715 = vmatprep.mubr.bf16.mxu0 0
  %716 = vmatmul.mubr.bf16.gmra.mrb[0].mxu0 %v672
  %v717 = vpop.f32.mrb[0].mxu0
  %v718 = vadd.f32 0.0, %v717
  %v719 = vpop.f32.mrb[0].mxu0
  %v720 = vpop.f32.mrb[0].mxu0
  %v721 = vadd.f32 0.0, %v720
  %v722 = vpop.f32.mrb[0].mxu0
  %723 = vmatprep.mubr.bf16.mxu0 0
  %724 = vmatmul.mubr.bf16.gmra.mrb[0].mxu0 %v675
  %v725 = vpop.f32.mrb[0].mxu0
  %v726 = vadd.f32 0.0, %v725
  %v727 = vpop.f32.mrb[0].mxu0
  %v728 = vpop.f32.mrb[0].mxu0
  %v729 = vadd.f32 0.0, %v728
  %v730 = vpop.f32.mrb[0].mxu0
  %731 = vmatprep.mubr.bf16.mxu0 0
  %732 = vmatmul.mubr.bf16.gmra.mrb[0].mxu0 %v678
  %v733 = vpop.f32.mrb[0].mxu0
  %v734 = vadd.f32 0.0, %v733
  %v735 = vpop.f32.mrb[0].mxu0
  %v736 = vpop.f32.mrb[0].mxu0
  %v737 = vadd.f32 0.0, %v736
  %v738 = vpop.f32.mrb[0].mxu0
  %739 = vmatprep.mubr.bf16.mxu0 0
  %740 = vmatmul.mubr.bf16.gmra.mrb[0].mxu0 %v681
  %v741 = vpop.f32.mrb[0].mxu0
  %v742 = vadd.f32 0.0, %v741
  %v743 = vpop.f32.mrb[0].mxu0
  %v744 = vpop.f32.mrb[0].mxu0
  %v745 = vadd.f32 0.0, %v744
  %v746 = vpop.f32.mrb[0].mxu0
  %747 = vdwg.mxu0
  %v748 = vld [vmem:[%s3 + $0x2] sm:$0x1]
  %749 = vset.pattern.permute.xlu0 2
  %750 = vperm.xlu0 %749, %v157
  %v751 = vpop.permute.xlu0 %750
  %753 = vset.pattern.permute.xlu0 2
  %754 = vperm.xlu0 %753, %v160
  %v755 = vpop.permute.xlu0 %754
  %757 = vset.pattern.permute.xlu0 2
  %758 = vperm.xlu0 %757, %v165
  %v759 = vpop.permute.xlu0 %758
  %761 = vset.pattern.permute.xlu0 2
  %762 = vperm.xlu0 %761, %v168
  %v763 = vpop.permute.xlu0 %762
  %765 = vset.pattern.permute.xlu0 2
  %766 = vperm.xlu0 %765, %v173
  %v767 = vpop.permute.xlu0 %766
  %769 = vset.pattern.permute.xlu0 2
  %770 = vperm.xlu0 %769, %v176
  %v771 = vpop.permute.xlu0 %770
  %773 = vset.pattern.permute.xlu0 2
  %774 = vperm.xlu0 %773, %v181
  %v775 = vpop.permute.xlu0 %774
  %777 = vset.pattern.permute.xlu0 2
  %778 = vperm.xlu0 %777, %v184
  %v779 = vpop.permute.xlu0 %778
  %v781 = vlaneseq
  %v782 = vshrl.u32 %v781, 7
  %v783 = vsub.s32 0, %v782
  %v784 = vrot.slane %v748, %v783
  %v785 = vadd.f32 %v751, %v784
  %v786 = vadd.f32 %v755, %v784
  %v787 = vadd.f32 %v759, %v784
  %v788 = vadd.f32 %v763, %v784
  %v789 = vadd.f32 %v767, %v784
  %v790 = vadd.f32 %v771, %v784
  %v791 = vadd.f32 %v775, %v784
  %v792 = vadd.f32 %v779, %v784
  %vm793 = vcmp.gt.f32.partialorder %v785, 0.0
  %vm794 = vcmp.gt.f32.partialorder %v786, 0.0
  %vm795 = vcmp.gt.f32.partialorder %v787, 0.0
  %vm796 = vcmp.gt.f32.partialorder %v788, 0.0
  %vm797 = vcmp.gt.f32.partialorder %v789, 0.0
  %vm798 = vcmp.gt.f32.partialorder %v790, 0.0
  %vm799 = vcmp.gt.f32.partialorder %v791, 0.0
  %vm800 = vcmp.gt.f32.partialorder %v792, 0.0
  %v801 = vmul.f32 %v785, 0.2
  %v802 = vmul.f32 %v786, 0.2
  %v803 = vmul.f32 %v787, 0.2
  %v804 = vmul.f32 %v788, 0.2
  %v805 = vmul.f32 %v789, 0.2
  %v806 = vmul.f32 %v790, 0.2
  %v807 = vmul.f32 %v791, 0.2
  %v808 = vmul.f32 %v792, 0.2
  %v809 = vsel %vm793, %v785, %v801
  %v810 = vsel %vm794, %v786, %v802
  %v811 = vsel %vm795, %v787, %v803
  %v812 = vsel %vm796, %v788, %v804
  %v813 = vsel %vm797, %v789, %v805
  %v814 = vsel %vm798, %v790, %v806
  %v815 = vsel %vm799, %v791, %v807
  %v816 = vsel %vm800, %v792, %v808
  %v817 = vadd.f32 %v809, %v195
  %v818 = vadd.f32 %v810, %v196
  %v819 = vadd.f32 %v811, %v197
  %v820 = vadd.f32 %v812, %v198
  %v821 = vadd.f32 %v813, %v199
  %v822 = vadd.f32 %v814, %v200
  %v823 = vadd.f32 %v815, %v201
  %v824 = vadd.f32 %v816, %v202
  %v825 = vsel %vm288, %v817, -inf
  %826 = vmax.xlane.f32.xlu0 %v825
  %v827 = vpop.xlane.xlu0 %826
  %v828 = vsel %vm288, %v818, -inf
  %829 = vmax.xlane.f32.xlu0 %v828
  %v830 = vpop.xlane.xlu0 %829
  %v831 = vsel %vm288, %v819, -inf
  %832 = vmax.xlane.f32.xlu0 %v831
  %v833 = vpop.xlane.xlu0 %832
  %v834 = vsel %vm288, %v820, -inf
  %835 = vmax.xlane.f32.xlu0 %v834
  %v836 = vpop.xlane.xlu0 %835
  %v837 = vsel %vm288, %v821, -inf
  %838 = vmax.xlane.f32.xlu0 %v837
  %v839 = vpop.xlane.xlu0 %838
  %v840 = vsel %vm288, %v822, -inf
  %841 = vmax.xlane.f32.xlu0 %v840
  %v842 = vpop.xlane.xlu0 %841
  %v843 = vsel %vm288, %v823, -inf
  %844 = vmax.xlane.f32.xlu0 %v843
  %v845 = vpop.xlane.xlu0 %844
  %v846 = vsel %vm288, %v824, -inf
  %847 = vmax.xlane.f32.xlu0 %v846
  %v848 = vpop.xlane.xlu0 %847
  %v849 = vsub.f32 %v817, %v827
  %v850 = vsub.f32 %v818, %v830
  %v851 = vsub.f32 %v819, %v833
  %v852 = vsub.f32 %v820, %v836
  %v853 = vsub.f32 %v821, %v839
  %v854 = vsub.f32 %v822, %v842
  %v855 = vsub.f32 %v823, %v845
  %v856 = vsub.f32 %v824, %v848
  %v857 = vmul.f32 %v849, 1.442695
  %v858 = vpow.pop %v857
  %v859 = vmul.f32 %v850, 1.442695
  %v860 = vpow.pop %v859
  %v861 = vmul.f32 %v851, 1.442695
  %v862 = vpow.pop %v861
  %v863 = vmul.f32 %v852, 1.442695
  %v864 = vpow.pop %v863
  %v865 = vmul.f32 %v853, 1.442695
  %v866 = vpow.pop %v865
  %v867 = vmul.f32 %v854, 1.442695
  %v868 = vpow.pop %v867
  %v869 = vmul.f32 %v855, 1.442695
  %v870 = vpow.pop %v869
  %v871 = vmul.f32 %v856, 1.442695
  %v872 = vpow.pop %v871
  %v873 = vsel %vm288, %v858, 0.0
  %874 = vadd.xlane.f32.xlu0 %v873
  %v875 = vpop.xlane.xlu0 %874
  %v876 = vsel %vm288, %v860, 0.0
  %877 = vadd.xlane.f32.xlu0 %v876
  %v878 = vpop.xlane.xlu0 %877
  %v879 = vsel %vm288, %v862, 0.0
  %880 = vadd.xlane.f32.xlu0 %v879
  %v881 = vpop.xlane.xlu0 %880
  %v882 = vsel %vm288, %v864, 0.0
  %883 = vadd.xlane.f32.xlu0 %v882
  %v884 = vpop.xlane.xlu0 %883
  %v885 = vsel %vm288, %v866, 0.0
  %886 = vadd.xlane.f32.xlu0 %v885
  %v887 = vpop.xlane.xlu0 %886
  %v888 = vsel %vm288, %v868, 0.0
  %889 = vadd.xlane.f32.xlu0 %v888
  %v890 = vpop.xlane.xlu0 %889
  %v891 = vsel %vm288, %v870, 0.0
  %892 = vadd.xlane.f32.xlu0 %v891
  %v893 = vpop.xlane.xlu0 %892
  %v894 = vsel %vm288, %v872, 0.0
  %895 = vadd.xlane.f32.xlu0 %v894
  %v896 = vpop.xlane.xlu0 %895
  %v897 = vrcp.pop %v875
  %v898 = vrcp.pop %v878
  %v899 = vrcp.pop %v881
  %v900 = vrcp.pop %v884
  %v901 = vrcp.pop %v887
  %v902 = vrcp.pop %v890
  %v903 = vrcp.pop %v893
  %v904 = vrcp.pop %v896
  %v905 = vmul.f32 %v858, %v897
  %v906 = vmul.f32 %v860, %v898
  %v907 = vmul.f32 %v862, %v899
  %v908 = vmul.f32 %v864, %v900
  %v909 = vmul.f32 %v866, %v901
  %v910 = vmul.f32 %v868, %v902
  %v911 = vmul.f32 %v870, %v903
  %v912 = vmul.f32 %v872, %v904
  %v913 = vpack.c.bf16 %v906, %v905
  %v914 = vpack.c.bf16 %v908, %v907
  %v915 = vpack.c.bf16 %v910, %v909
  %v916 = vpack.c.bf16 %v912, %v911
  %917 = vrot.lane.b32.xlu0 %v405, 64
  %v918 = vpop.permute.xlu0 %917
  %919 = vrot.lane.b32.xlu0 %v406, 64
  %v920 = vpop.permute.xlu0 %919
  %921 = vrot.lane.b32.xlu0 %v407, 64
  %v922 = vpop.permute.xlu0 %921
  %923 = vrot.lane.b32.xlu0 %v408, 64
  %v924 = vpop.permute.xlu0 %923
  %v930 = vsel %vm288, %v913, 0
  %v933 = vsel %vm288, %v914, 0
  %v936 = vsel %vm288, %v915, 0
  %v939 = vsel %vm288, %v916, 0
  %941 = vmatprep.subr.bf16.mxu0 0
  %942 = vmatpush1.bf16.msra.mxu0 %v918
  %943 = vmatprep.subr.bf16.mxu0 0
  %944 = vmatpush1.bf16.msra.mxu0 %v920
  %945 = vmatprep.subr.bf16.mxu0 0
  %946 = vmatpush1.bf16.msra.mxu0 %v922
  %947 = vmatprep.subr.bf16.mxu0 0
  %948 = vmatpush1.bf16.msra.mxu0 %v924
  %949 = vmatprep.subr.bf16.mxu0 0
  %950 = vmatpush1.bf16.msra.mxu0 0
  %951 = vmatprep.subr.bf16.mxu0 0
  %952 = vmatpush1.bf16.msra.mxu0 0
  %953 = vmatprep.subr.bf16.mxu0 0
  %954 = vmatpush1.bf16.msra.mxu0 0
  %955 = vmatprep.subr.bf16.mxu0 0
  %956 = vmatpush1.bf16.msra.mxu0 0
  %957 = vmatprep.subr.bf16.mxu0 0
  %958 = vmatpush1.bf16.msra.mxu0 0
  %959 = vmatprep.subr.bf16.mxu0 0
  %960 = vmatpush1.bf16.msra.mxu0 0
  %961 = vmatprep.subr.bf16.mxu0 0
  %962 = vmatpush1.bf16.msra.mxu0 0
  %963 = vmatprep.subr.bf16.mxu0 0
  %964 = vmatpush1.bf16.msra.mxu0 0
  %965 = vmatprep.subr.bf16.mxu0 0
  %966 = vmatpush1.bf16.msra.mxu0 0
  %967 = vmatprep.subr.bf16.mxu0 0
  %968 = vmatpush1.bf16.msra.mxu0 0
  %969 = vmatprep.subr.bf16.mxu0 0
  %970 = vmatpush1.bf16.msra.mxu0 0
  %971 = vmatprep.subr.bf16.mxu0 0
  %972 = vmatpush1.bf16.msra.mxu0 0
  %973 = vmatprep.mubr.bf16.mxu0 0
  %974 = vmatmul.mubr.bf16.gmra.mrb[0].mxu0 %v930
  %v975 = vpop.f32.mrb[0].mxu0
  %v976 = vadd.f32 0.0, %v975
  %v977 = vpop.f32.mrb[0].mxu0
  %v978 = vpop.f32.mrb[0].mxu0
  %v979 = vadd.f32 0.0, %v978
  %v980 = vpop.f32.mrb[0].mxu0
  %981 = vmatprep.mubr.bf16.mxu0 0
  %982 = vmatmul.mubr.bf16.gmra.mrb[0].mxu0 %v933
  %v983 = vpop.f32.mrb[0].mxu0
  %v984 = vadd.f32 0.0, %v983
  %v985 = vpop.f32.mrb[0].mxu0
  %v986 = vpop.f32.mrb[0].mxu0
  %v987 = vadd.f32 0.0, %v986
  %v988 = vpop.f32.mrb[0].mxu0
  %989 = vmatprep.mubr.bf16.mxu0 0
  %990 = vmatmul.mubr.bf16.gmra.mrb[0].mxu0 %v936
  %v991 = vpop.f32.mrb[0].mxu0
  %v992 = vadd.f32 0.0, %v991
  %v993 = vpop.f32.mrb[0].mxu0
  %v994 = vpop.f32.mrb[0].mxu0
  %v995 = vadd.f32 0.0, %v994
  %v996 = vpop.f32.mrb[0].mxu0
  %997 = vmatprep.mubr.bf16.mxu0 0
  %998 = vmatmul.mubr.bf16.gmra.mrb[0].mxu0 %v939
  %v999 = vpop.f32.mrb[0].mxu0
  %v1000 = vadd.f32 0.0, %v999
  %v1001 = vpop.f32.mrb[0].mxu0
  %v1002 = vpop.f32.mrb[0].mxu0
  %v1003 = vadd.f32 0.0, %v1002
  %v1004 = vpop.f32.mrb[0].mxu0
  %1005 = vdwg.mxu0
  %v1006 = vld [vmem:[%s3 + $0x3] sm:$0x1]
  %1007 = vset.pattern.permute.xlu0 3
  %1008 = vperm.xlu0 %1007, %v157
  %v1009 = vpop.permute.xlu0 %1008
  %1011 = vset.pattern.permute.xlu0 3
  %1012 = vperm.xlu0 %1011, %v160
  %v1013 = vpop.permute.xlu0 %1012
  %1015 = vset.pattern.permute.xlu0 3
  %1016 = vperm.xlu0 %1015, %v165
  %v1017 = vpop.permute.xlu0 %1016
  %1019 = vset.pattern.permute.xlu0 3
  %1020 = vperm.xlu0 %1019, %v168
  %v1021 = vpop.permute.xlu0 %1020
  %1023 = vset.pattern.permute.xlu0 3
  %1024 = vperm.xlu0 %1023, %v173
  %v1025 = vpop.permute.xlu0 %1024
  %1027 = vset.pattern.permute.xlu0 3
  %1028 = vperm.xlu0 %1027, %v176
  %v1029 = vpop.permute.xlu0 %1028
  %1031 = vset.pattern.permute.xlu0 3
  %1032 = vperm.xlu0 %1031, %v181
  %v1033 = vpop.permute.xlu0 %1032
  %1035 = vset.pattern.permute.xlu0 3
  %1036 = vperm.xlu0 %1035, %v184
  %v1037 = vpop.permute.xlu0 %1036
  %v1039 = vlaneseq
  %v1040 = vshrl.u32 %v1039, 7
  %v1041 = vsub.s32 0, %v1040
  %v1042 = vrot.slane %v1006, %v1041
  %v1043 = vadd.f32 %v1009, %v1042
  %v1044 = vadd.f32 %v1013, %v1042
  %v1045 = vadd.f32 %v1017, %v1042
  %v1046 = vadd.f32 %v1021, %v1042
  %v1047 = vadd.f32 %v1025, %v1042
  %v1048 = vadd.f32 %v1029, %v1042
  %v1049 = vadd.f32 %v1033, %v1042
  %v1050 = vadd.f32 %v1037, %v1042
  %vm1051 = vcmp.gt.f32.partialorder %v1043, 0.0
  %vm1052 = vcmp.gt.f32.partialorder %v1044, 0.0
  %vm1053 = vcmp.gt.f32.partialorder %v1045, 0.0
  %vm1054 = vcmp.gt.f32.partialorder %v1046, 0.0
  %vm1055 = vcmp.gt.f32.partialorder %v1047, 0.0
  %vm1056 = vcmp.gt.f32.partialorder %v1048, 0.0
  %vm1057 = vcmp.gt.f32.partialorder %v1049, 0.0
  %vm1058 = vcmp.gt.f32.partialorder %v1050, 0.0
  %v1059 = vmul.f32 %v1043, 0.2
  %v1060 = vmul.f32 %v1044, 0.2
  %v1061 = vmul.f32 %v1045, 0.2
  %v1062 = vmul.f32 %v1046, 0.2
  %v1063 = vmul.f32 %v1047, 0.2
  %v1064 = vmul.f32 %v1048, 0.2
  %v1065 = vmul.f32 %v1049, 0.2
  %v1066 = vmul.f32 %v1050, 0.2
  %v1067 = vsel %vm1051, %v1043, %v1059
  %v1068 = vsel %vm1052, %v1044, %v1060
  %v1069 = vsel %vm1053, %v1045, %v1061
  %v1070 = vsel %vm1054, %v1046, %v1062
  %v1071 = vsel %vm1055, %v1047, %v1063
  %v1072 = vsel %vm1056, %v1048, %v1064
  %v1073 = vsel %vm1057, %v1049, %v1065
  %v1074 = vsel %vm1058, %v1050, %v1066
  %v1075 = vadd.f32 %v1067, %v195
  %v1076 = vadd.f32 %v1068, %v196
  %v1077 = vadd.f32 %v1069, %v197
  %v1078 = vadd.f32 %v1070, %v198
  %v1079 = vadd.f32 %v1071, %v199
  %v1080 = vadd.f32 %v1072, %v200
  %v1081 = vadd.f32 %v1073, %v201
  %v1082 = vadd.f32 %v1074, %v202
  %v1083 = vsel %vm288, %v1075, -inf
  %1084 = vmax.xlane.f32.xlu0 %v1083
  %v1085 = vpop.xlane.xlu0 %1084
  %v1086 = vsel %vm288, %v1076, -inf
  %1087 = vmax.xlane.f32.xlu0 %v1086
  %v1088 = vpop.xlane.xlu0 %1087
  %v1089 = vsel %vm288, %v1077, -inf
  %1090 = vmax.xlane.f32.xlu0 %v1089
  %v1091 = vpop.xlane.xlu0 %1090
  %v1092 = vsel %vm288, %v1078, -inf
  %1093 = vmax.xlane.f32.xlu0 %v1092
  %v1094 = vpop.xlane.xlu0 %1093
  %v1095 = vsel %vm288, %v1079, -inf
  %1096 = vmax.xlane.f32.xlu0 %v1095
  %v1097 = vpop.xlane.xlu0 %1096
  %v1098 = vsel %vm288, %v1080, -inf
  %1099 = vmax.xlane.f32.xlu0 %v1098
  %v1100 = vpop.xlane.xlu0 %1099
  %v1101 = vsel %vm288, %v1081, -inf
  %1102 = vmax.xlane.f32.xlu0 %v1101
  %v1103 = vpop.xlane.xlu0 %1102
  %v1104 = vsel %vm288, %v1082, -inf
  %1105 = vmax.xlane.f32.xlu0 %v1104
  %v1106 = vpop.xlane.xlu0 %1105
  %v1107 = vsub.f32 %v1075, %v1085
  %v1108 = vsub.f32 %v1076, %v1088
  %v1109 = vsub.f32 %v1077, %v1091
  %v1110 = vsub.f32 %v1078, %v1094
  %v1111 = vsub.f32 %v1079, %v1097
  %v1112 = vsub.f32 %v1080, %v1100
  %v1113 = vsub.f32 %v1081, %v1103
  %v1114 = vsub.f32 %v1082, %v1106
  %v1115 = vmul.f32 %v1107, 1.442695
  %v1116 = vpow.pop %v1115
  %v1117 = vmul.f32 %v1108, 1.442695
  %v1118 = vpow.pop %v1117
  %v1119 = vmul.f32 %v1109, 1.442695
  %v1120 = vpow.pop %v1119
  %v1121 = vmul.f32 %v1110, 1.442695
  %v1122 = vpow.pop %v1121
  %v1123 = vmul.f32 %v1111, 1.442695
  %v1124 = vpow.pop %v1123
  %v1125 = vmul.f32 %v1112, 1.442695
  %v1126 = vpow.pop %v1125
  %v1127 = vmul.f32 %v1113, 1.442695
  %v1128 = vpow.pop %v1127
  %v1129 = vmul.f32 %v1114, 1.442695
  %v1130 = vpow.pop %v1129
  %v1131 = vsel %vm288, %v1116, 0.0
  %1132 = vadd.xlane.f32.xlu0 %v1131
  %v1133 = vpop.xlane.xlu0 %1132
  %v1134 = vsel %vm288, %v1118, 0.0
  %1135 = vadd.xlane.f32.xlu0 %v1134
  %v1136 = vpop.xlane.xlu0 %1135
  %v1137 = vsel %vm288, %v1120, 0.0
  %1138 = vadd.xlane.f32.xlu0 %v1137
  %v1139 = vpop.xlane.xlu0 %1138
  %v1140 = vsel %vm288, %v1122, 0.0
  %1141 = vadd.xlane.f32.xlu0 %v1140
  %v1142 = vpop.xlane.xlu0 %1141
  %v1143 = vsel %vm288, %v1124, 0.0
  %1144 = vadd.xlane.f32.xlu0 %v1143
  %v1145 = vpop.xlane.xlu0 %1144
  %v1146 = vsel %vm288, %v1126, 0.0
  %1147 = vadd.xlane.f32.xlu0 %v1146
  %v1148 = vpop.xlane.xlu0 %1147
  %v1149 = vsel %vm288, %v1128, 0.0
  %1150 = vadd.xlane.f32.xlu0 %v1149
  %v1151 = vpop.xlane.xlu0 %1150
  %v1152 = vsel %vm288, %v1130, 0.0
  %1153 = vadd.xlane.f32.xlu0 %v1152
  %v1154 = vpop.xlane.xlu0 %1153
  %v1155 = vrcp.pop %v1133
  %v1156 = vrcp.pop %v1136
  %v1157 = vrcp.pop %v1139
  %v1158 = vrcp.pop %v1142
  %v1159 = vrcp.pop %v1145
  %v1160 = vrcp.pop %v1148
  %v1161 = vrcp.pop %v1151
  %v1162 = vrcp.pop %v1154
  %v1163 = vmul.f32 %v1116, %v1155
  %v1164 = vmul.f32 %v1118, %v1156
  %v1165 = vmul.f32 %v1120, %v1157
  %v1166 = vmul.f32 %v1122, %v1158
  %v1167 = vmul.f32 %v1124, %v1159
  %v1168 = vmul.f32 %v1126, %v1160
  %v1169 = vmul.f32 %v1128, %v1161
  %v1170 = vmul.f32 %v1130, %v1162
  %v1171 = vpack.c.bf16 %v1164, %v1163
  %v1172 = vpack.c.bf16 %v1166, %v1165
  %v1173 = vpack.c.bf16 %v1168, %v1167
  %v1174 = vpack.c.bf16 %v1170, %v1169
  %1175 = vrot.lane.b32.xlu0 %v405, 32
  %v1176 = vpop.permute.xlu0 %1175
  %1177 = vrot.lane.b32.xlu0 %v406, 32
  %v1178 = vpop.permute.xlu0 %1177
  %1179 = vrot.lane.b32.xlu0 %v407, 32
  %v1180 = vpop.permute.xlu0 %1179
  %1181 = vrot.lane.b32.xlu0 %v408, 32
  %v1182 = vpop.permute.xlu0 %1181
  %v1188 = vsel %vm288, %v1171, 0
  %v1191 = vsel %vm288, %v1172, 0
  %v1194 = vsel %vm288, %v1173, 0
  %v1197 = vsel %vm288, %v1174, 0
  %1199 = vmatprep.subr.bf16.mxu0 0
  %1200 = vmatpush1.bf16.msra.mxu0 %v1176
  %1201 = vmatprep.subr.bf16.mxu0 0
  %1202 = vmatpush1.bf16.msra.mxu0 %v1178
  %1203 = vmatprep.subr.bf16.mxu0 0
  %1204 = vmatpush1.bf16.msra.mxu0 %v1180
  %1205 = vmatprep.subr.bf16.mxu0 0
  %1206 = vmatpush1.bf16.msra.mxu0 %v1182
  %1207 = vmatprep.subr.bf16.mxu0 0
  %1208 = vmatpush1.bf16.msra.mxu0 0
  %1209 = vmatprep.subr.bf16.mxu0 0
  %1210 = vmatpush1.bf16.msra.mxu0 0
  %1211 = vmatprep.subr.bf16.mxu0 0
  %1212 = vmatpush1.bf16.msra.mxu0 0
  %1213 = vmatprep.subr.bf16.mxu0 0
  %1214 = vmatpush1.bf16.msra.mxu0 0
  %1215 = vmatprep.subr.bf16.mxu0 0
  %1216 = vmatpush1.bf16.msra.mxu0 0
  %1217 = vmatprep.subr.bf16.mxu0 0
  %1218 = vmatpush1.bf16.msra.mxu0 0
  %1219 = vmatprep.subr.bf16.mxu0 0
  %1220 = vmatpush1.bf16.msra.mxu0 0
  %1221 = vmatprep.subr.bf16.mxu0 0
  %1222 = vmatpush1.bf16.msra.mxu0 0
  %1223 = vmatprep.subr.bf16.mxu0 0
  %1224 = vmatpush1.bf16.msra.mxu0 0
  %1225 = vmatprep.subr.bf16.mxu0 0
  %1226 = vmatpush1.bf16.msra.mxu0 0
  %1227 = vmatprep.subr.bf16.mxu0 0
  %1228 = vmatpush1.bf16.msra.mxu0 0
  %1229 = vmatprep.subr.bf16.mxu0 0
  %1230 = vmatpush1.bf16.msra.mxu0 0
  %1231 = vmatprep.mubr.bf16.mxu0 0
  %1232 = vmatmul.mubr.bf16.gmra.mrb[0].mxu0 %v1188
  %v1233 = vpop.f32.mrb[0].mxu0
  %v1234 = vadd.f32 0.0, %v1233
  %v1235 = vpop.f32.mrb[0].mxu0
  %v1236 = vpop.f32.mrb[0].mxu0
  %v1237 = vadd.f32 0.0, %v1236
  %v1238 = vpop.f32.mrb[0].mxu0
  %1239 = vmatprep.mubr.bf16.mxu0 0
  %1240 = vmatmul.mubr.bf16.gmra.mrb[0].mxu0 %v1191
  %v1241 = vpop.f32.mrb[0].mxu0
  %v1242 = vadd.f32 0.0, %v1241
  %v1243 = vpop.f32.mrb[0].mxu0
  %v1244 = vpop.f32.mrb[0].mxu0
  %v1245 = vadd.f32 0.0, %v1244
  %v1246 = vpop.f32.mrb[0].mxu0
  %1247 = vmatprep.mubr.bf16.mxu0 0
  %1248 = vmatmul.mubr.bf16.gmra.mrb[0].mxu0 %v1194
  %v1249 = vpop.f32.mrb[0].mxu0
  %v1250 = vadd.f32 0.0, %v1249
  %v1251 = vpop.f32.mrb[0].mxu0
  %v1252 = vpop.f32.mrb[0].mxu0
  %v1253 = vadd.f32 0.0, %v1252
  %v1254 = vpop.f32.mrb[0].mxu0
  %1255 = vmatprep.mubr.bf16.mxu0 0
  %1256 = vmatmul.mubr.bf16.gmra.mrb[0].mxu0 %v1197
  %v1257 = vpop.f32.mrb[0].mxu0
  %v1258 = vadd.f32 0.0, %v1257
  %v1259 = vpop.f32.mrb[0].mxu0
  %v1260 = vpop.f32.mrb[0].mxu0
  %v1261 = vadd.f32 0.0, %v1260
  %v1262 = vpop.f32.mrb[0].mxu0
  %1263 = vdwg.mxu0
  %1272 = vrot.lane.b32.xlu0 %v718, 32
  %v1273 = vpop.permute.xlu0 %1272
  %1274 = vrot.lane.b32.xlu0 %v721, 32
  %v1275 = vpop.permute.xlu0 %1274
  %1276 = vrot.lane.b32.xlu0 %v726, 32
  %v1277 = vpop.permute.xlu0 %1276
  %1278 = vrot.lane.b32.xlu0 %v729, 32
  %v1279 = vpop.permute.xlu0 %1278
  %1280 = vrot.lane.b32.xlu0 %v734, 32
  %v1281 = vpop.permute.xlu0 %1280
  %1282 = vrot.lane.b32.xlu0 %v737, 32
  %v1283 = vpop.permute.xlu0 %1282
  %1284 = vrot.lane.b32.xlu0 %v742, 32
  %v1285 = vpop.permute.xlu0 %1284
  %1286 = vrot.lane.b32.xlu0 %v745, 32
  %v1287 = vpop.permute.xlu0 %1286
  %1304 = vrot.lane.b32.xlu0 %v976, 64
  %v1305 = vpop.permute.xlu0 %1304
  %1306 = vrot.lane.b32.xlu0 %v979, 64
  %v1307 = vpop.permute.xlu0 %1306
  %1308 = vrot.lane.b32.xlu0 %v984, 64
  %v1309 = vpop.permute.xlu0 %1308
  %1310 = vrot.lane.b32.xlu0 %v987, 64
  %v1311 = vpop.permute.xlu0 %1310
  %1312 = vrot.lane.b32.xlu0 %v992, 64
  %v1313 = vpop.permute.xlu0 %1312
  %1314 = vrot.lane.b32.xlu0 %v995, 64
  %v1315 = vpop.permute.xlu0 %1314
  %1316 = vrot.lane.b32.xlu0 %v1000, 64
  %v1317 = vpop.permute.xlu0 %1316
  %1318 = vrot.lane.b32.xlu0 %v1003, 64
  %v1319 = vpop.permute.xlu0 %1318
  %1336 = vrot.lane.b32.xlu0 %v1234, 96
  %v1337 = vpop.permute.xlu0 %1336
  %1338 = vrot.lane.b32.xlu0 %v1237, 96
  %v1339 = vpop.permute.xlu0 %1338
  %1340 = vrot.lane.b32.xlu0 %v1242, 96
  %v1341 = vpop.permute.xlu0 %1340
  %1342 = vrot.lane.b32.xlu0 %v1245, 96
  %v1343 = vpop.permute.xlu0 %1342
  %1344 = vrot.lane.b32.xlu0 %v1250, 96
  %v1345 = vpop.permute.xlu0 %1344
  %1346 = vrot.lane.b32.xlu0 %v1253, 96
  %v1347 = vpop.permute.xlu0 %1346
  %1348 = vrot.lane.b32.xlu0 %v1258, 96
  %v1349 = vpop.permute.xlu0 %1348
  %1350 = vrot.lane.b32.xlu0 %v1261, 96
  %v1351 = vpop.permute.xlu0 %1350
  %vm1360 = vcmask 261120
  %v1361 = vsel %vm1360, %v460, %v1273
  %v1362 = vsel %vm1360, %v463, %v1275
  %v1363 = vsel %vm1360, %v468, %v1277
  %v1364 = vsel %vm1360, %v471, %v1279
  %v1365 = vsel %vm1360, %v476, %v1281
  %v1366 = vsel %vm1360, %v479, %v1283
  %v1367 = vsel %vm1360, %v484, %v1285
  %v1368 = vsel %vm1360, %v487, %v1287
  %v1369 = vsel %vm288, %v1361, %v1305
  %v1370 = vsel %vm288, %v1362, %v1307
  %v1371 = vsel %vm288, %v1363, %v1309
  %v1372 = vsel %vm288, %v1364, %v1311
  %v1373 = vsel %vm288, %v1365, %v1313
  %v1374 = vsel %vm288, %v1366, %v1315
  %v1375 = vsel %vm288, %v1367, %v1317
  %v1376 = vsel %vm288, %v1368, %v1319
  %vm1377 = vcmask 785408
  %v1378 = vsel %vm1377, %v1369, %v1337
  %v1379 = vsel %vm1377, %v1370, %v1339
  %v1380 = vsel %vm1377, %v1371, %v1341
  %v1381 = vsel %vm1377, %v1372, %v1343
  %v1382 = vsel %vm1377, %v1373, %v1345
  %v1383 = vsel %vm1377, %v1374, %v1347
  %v1384 = vsel %vm1377, %v1375, %v1349
  %v1385 = vsel %vm1377, %v1376, %v1351
  %v1386 = vld [vmem:[%s4] sm:$0x1]
  %v1388 = vlaneseq
  %v1389 = vshrl.u32 %v1388, 7
  %v1390 = vsub.s32 0, %v1389
  %v1391 = vrot.slane %v1386, %v1390
  %v1393 = vadd.f32 %v1378, %v1391
  %v1394 = vadd.f32 %v1379, %v1391
  %v1395 = vadd.f32 %v1380, %v1391
  %v1396 = vadd.f32 %v1381, %v1391
  %v1397 = vadd.f32 %v1382, %v1391
  %v1398 = vadd.f32 %v1383, %v1391
  %v1399 = vadd.f32 %v1384, %v1391
  %v1400 = vadd.f32 %v1385, %v1391
  %v1401 = vpack.c.bf16 %v1394, %v1393
  %v1402 = vpack.c.bf16 %v1396, %v1395
  %v1403 = vpack.c.bf16 %v1398, %v1397
  %v1404 = vpack.c.bf16 %v1400, %v1399
  %v1409 = vunpack.c.l.b16 %v1401
  %v1410 = vunpack.c.h.b16 %v1401
  %v1411 = vunpack.c.l.b16 %v1402
  %v1412 = vunpack.c.h.b16 %v1402
  %v1413 = vunpack.c.l.b16 %v1403
  %v1414 = vunpack.c.h.b16 %v1403
  %v1415 = vunpack.c.l.b16 %v1404
  %v1416 = vunpack.c.h.b16 %v1404
  %v1417 = vpack.c.b16 %v1409, %v1409
  %v1418 = vpack.c.b16 %v1410, %v1410
  %v1419 = vpack.c.b16 %v1411, %v1411
  %v1420 = vpack.c.b16 %v1412, %v1412
  %v1421 = vpack.c.b16 %v1413, %v1413
  %v1422 = vpack.c.b16 %v1414, %v1414
  %v1423 = vpack.c.b16 %v1415, %v1415
  %v1424 = vpack.c.b16 %v1416, %v1416
  %1433 = vst [vmem:[%s5] sm:$0xf] %v1417
  %1434 = vst [vmem:[%s5 + $0x4] sm:$0xf] %v1418
  %1435 = vst [vmem:[%s5 + $0x8] sm:$0xf] %v1419
  %1436 = vst [vmem:[%s5 + $0xc] sm:$0xf] %v1420
  %1437 = vst [vmem:[%s5 + $0x10] sm:$0xf] %v1421
  %1438 = vst [vmem:[%s5 + $0x14] sm:$0xf] %v1422
  %1439 = vst [vmem:[%s5 + $0x18] sm:$0xf] %v1423
  %1440 = vst [vmem:[%s5 + $0x1c] sm:$0xf] %v1424
  // Predicated region
  $region22: #{forward.8} parent=0 // pred_check
    _
  $region23: #{forward.8} parent=0 // pred_check_branch
    %1442 = sbr.rel (0) target = $region25
  $region24: #{forward.8} parent=0 // pred_region
    _
  $region25: #{forward.8} parent=0 // pred_fallthru
    _
  // Predicated region
  $region26: #{forward.8} parent=0 // pred_check
    _
  $region27: #{forward.8} parent=0 // pred_check_branch
    %1444 = sbr.rel (0) target = $region29
  $region28: #{forward.8} parent=0 // pred_region
    _
  $region29: #{forward.8} parent=0 // pred_fallthru
    _

// kernel: forward.10
$region0: #{forward.10}
  #allocation0 [shape = 'u32[]', space=smem, size = 0x4, offset = 0x4, fixed_abs, tag = 'smem constant byte address 0x4 - core index']
  #allocation1 [shape = 'u32[144,128]{1,0:T(1,128)}', space=vmem, size = 0x12000, scoped, tag = 'internal scratch']
  %s0 = inlined_call_operand.vmem [shape: bf16[64,64], index: 0, kind: input, shape index: {}]
  %s1 = inlined_call_operand.vmem [shape: bf16[64,128], index: 1, kind: input, shape index: {}]
  %s2 = inlined_call_operand.vmem [shape: bf16[128,128], index: 2, kind: input, shape index: {}]
  %s3 = inlined_call_operand.vmem [shape: f32[1,64], index: 3, kind: input, shape index: {}]
  %s4 = inlined_call_operand.vmem [shape: f32[1,128], index: 4, kind: input, shape index: {}]
  %s5 = inlined_call_operand.vmem [shape: bf16[64,128], index: 5, kind: output, shape index: {}]
  %s6 = sld [smem:[#allocation0]]
  $region30: #{forward.10} parent=0
    _
  %s8 = ssub.s32 1, %s6
  %s9 = scalar_select 0, %s8, %s6
  // Predicated region
  $region2: #{forward.10} parent=0 // pred_check
    _
  $region3: #{forward.10} parent=0 // pred_check_branch
    %11 = sbr.rel (0) target = $region5
  $region4: #{forward.10} parent=0 // pred_region
    _
  $region5: #{forward.10} parent=0 // pred_fallthru
    _
  // Predicated region
  $region6: #{forward.10} parent=0 // pred_check
    _
  $region7: #{forward.10} parent=0 // pred_check_branch
    %13 = sbr.rel (0) target = $region9
  $region8: #{forward.10} parent=0 // pred_region
    _
  $region9: #{forward.10} parent=0 // pred_fallthru
    _
  // Predicated region
  $region10: #{forward.10} parent=0 // pred_check
    _
  $region11: #{forward.10} parent=0 // pred_check_branch
    %15 = sbr.rel (0) target = $region13
  $region12: #{forward.10} parent=0 // pred_region
    _
  $region13: #{forward.10} parent=0 // pred_fallthru
    _
  // Predicated region
  $region14: #{forward.10} parent=0 // pred_check
    _
  $region15: #{forward.10} parent=0 // pred_check_branch
    %17 = sbr.rel (0) target = $region17
  $region16: #{forward.10} parent=0 // pred_region
    _
  $region17: #{forward.10} parent=0 // pred_fallthru
    _
  // Predicated region
  $region18: #{forward.10} parent=0 // pred_check
    _
  $region19: #{forward.10} parent=0 // pred_check_branch
    %19 = sbr.rel (0) target = $region21
  $region20: #{forward.10} parent=0 // pred_region
    _
  $region21: #{forward.10} parent=0 // pred_fallthru
    _
  %s21 = smul.u32 0, 64
  %s22 = sshra.s32 %s21, 3
  %s23 = sand.u32 %s21, 7
  %s24 = smul.addr %s22, 4
  %s25 = scalar_lea.vmem %s1, %s24
  %v26 = vld [vmem:[%s25] sm:$0xf]
  %v27 = vld [vmem:[%s25 + $0x4] sm:$0xf]
  %v28 = vld [vmem:[%s25 + $0x8] sm:$0xf]
  %v29 = vld [vmem:[%s25 + $0xc] sm:$0xf]
  %v30 = vld [vmem:[%s25 + $0x10] sm:$0xf]
  %v31 = vld [vmem:[%s25 + $0x14] sm:$0xf]
  %v32 = vld [vmem:[%s25 + $0x18] sm:$0xf]
  %v33 = vld [vmem:[%s25 + $0x1c] sm:$0xf]
  %v34 = vld [vmem:[%s2] sm:$0xf]
  %v35 = vld [vmem:[%s2 + $0x4] sm:$0xf]
  %v36 = vld [vmem:[%s2 + $0x8] sm:$0xf]
  %v37 = vld [vmem:[%s2 + $0xc] sm:$0xf]
  %v38 = vld [vmem:[%s2 + $0x10] sm:$0xf]
  %v39 = vld [vmem:[%s2 + $0x14] sm:$0xf]
  %v40 = vld [vmem:[%s2 + $0x18] sm:$0xf]
  %v41 = vld [vmem:[%s2 + $0x1c] sm:$0xf]
  %v42 = vld [vmem:[%s2 + $0x20] sm:$0xf]
  %v43 = vld [vmem:[%s2 + $0x24] sm:$0xf]
  %v44 = vld [vmem:[%s2 + $0x28] sm:$0xf]
  %v45 = vld [vmem:[%s2 + $0x2c] sm:$0xf]
  %v46 = vld [vmem:[%s2 + $0x30] sm:$0xf]
  %v47 = vld [vmem:[%s2 + $0x34] sm:$0xf]
  %v48 = vld [vmem:[%s2 + $0x38] sm:$0xf]
  %v49 = vld [vmem:[%s2 + $0x3c] sm:$0xf]
  %v58 = vunpack.c.l.b16 %v26
  %v59 = vunpack.c.l.b16 %v27
  %v60 = vunpack.c.l.b16 %v28
  %v61 = vunpack.c.l.b16 %v29
  %v62 = vunpack.c.l.b16 %v30
  %v63 = vunpack.c.l.b16 %v31
  %v64 = vunpack.c.l.b16 %v32
  %v65 = vunpack.c.l.b16 %v33
  %v66 = vpack.c.b16 %v59, %v58
  %v67 = vpack.c.b16 %v61, %v60
  %v68 = vpack.c.b16 %v63, %v62
  %v69 = vpack.c.b16 %v65, %v64
  %v90 = vunpack.c.l.b16 %v34
  %v91 = vunpack.c.l.b16 %v35
  %v92 = vunpack.c.l.b16 %v36
  %v93 = vunpack.c.l.b16 %v37
  %v94 = vunpack.c.l.b16 %v38
  %v95 = vunpack.c.l.b16 %v39
  %v96 = vunpack.c.l.b16 %v40
  %v97 = vunpack.c.l.b16 %v41
  %v98 = vunpack.c.l.b16 %v42
  %v99 = vunpack.c.l.b16 %v43
  %v100 = vunpack.c.l.b16 %v44
  %v101 = vunpack.c.l.b16 %v45
  %v102 = vunpack.c.l.b16 %v46
  %v103 = vunpack.c.l.b16 %v47
  %v104 = vunpack.c.l.b16 %v48
  %v105 = vunpack.c.l.b16 %v49
  %v106 = vpack.c.b16 %v91, %v90
  %v107 = vpack.c.b16 %v93, %v92
  %v108 = vpack.c.b16 %v95, %v94
  %v109 = vpack.c.b16 %v97, %v96
  %v110 = vpack.c.b16 %v99, %v98
  %v111 = vpack.c.b16 %v101, %v100
  %v112 = vpack.c.b16 %v103, %v102
  %v113 = vpack.c.b16 %v105, %v104
  %122 = vmatprep.subr.bf16.mxu0 0
  %123 = vmatpush1.bf16.msra.mxu0 %v106
  %124 = vmatprep.subr.bf16.mxu0 0
  %125 = vmatpush1.bf16.msra.mxu0 %v107
  %126 = vmatprep.subr.bf16.mxu0 0
  %127 = vmatpush1.bf16.msra.mxu0 %v108
  %128 = vmatprep.subr.bf16.mxu0 0
  %129 = vmatpush1.bf16.msra.mxu0 %v109
  %130 = vmatprep.subr.bf16.mxu0 0
  %131 = vmatpush1.bf16.msra.mxu0 %v110
  %132 = vmatprep.subr.bf16.mxu0 0
  %133 = vmatpush1.bf16.msra.mxu0 %v111
  %134 = vmatprep.subr.bf16.mxu0 0
  %135 = vmatpush1.bf16.msra.mxu0 %v112
  %136 = vmatprep.subr.bf16.mxu0 0
  %137 = vmatpush1.bf16.msra.mxu0 %v113
  %138 = vmatprep.subr.bf16.mxu0 0
  %139 = vmatpush1.bf16.msra.mxu0 0
  %140 = vmatprep.subr.bf16.mxu0 0
  %141 = vmatpush1.bf16.msra.mxu0 0
  %142 = vmatprep.subr.bf16.mxu0 0
  %143 = vmatpush1.bf16.msra.mxu0 0
  %144 = vmatprep.subr.bf16.mxu0 0
  %145 = vmatpush1.bf16.msra.mxu0 0
  %146 = vmatprep.subr.bf16.mxu0 0
  %147 = vmatpush1.bf16.msra.mxu0 0
  %148 = vmatprep.subr.bf16.mxu0 0
  %149 = vmatpush1.bf16.msra.mxu0 0
  %150 = vmatprep.subr.bf16.mxu0 0
  %151 = vmatpush1.bf16.msra.mxu0 0
  %152 = vmatprep.subr.bf16.mxu0 0
  %153 = vmatpush1.bf16.msra.mxu0 0
  %154 = vmatprep.mubr.bf16.mxu0 0
  %155 = vmatmul.mubr.bf16.gmra.mrb[0].mxu0 %v66
  %v156 = vpop.f32.mrb[0].mxu0
  %v157 = vadd.f32 0.0, %v156
  %v158 = vpop.f32.mrb[0].mxu0
  %v159 = vpop.f32.mrb[0].mxu0
  %v160 = vadd.f32 0.0, %v159
  %v161 = vpop.f32.mrb[0].mxu0
  %162 = vmatprep.mubr.bf16.mxu0 0
  %163 = vmatmul.mubr.bf16.gmra.mrb[0].mxu0 %v67
  %v164 = vpop.f32.mrb[0].mxu0
  %v165 = vadd.f32 0.0, %v164
  %v166 = vpop.f32.mrb[0].mxu0
  %v167 = vpop.f32.mrb[0].mxu0
  %v168 = vadd.f32 0.0, %v167
  %v169 = vpop.f32.mrb[0].mxu0
  %170 = vmatprep.mubr.bf16.mxu0 0
  %171 = vmatmul.mubr.bf16.gmra.mrb[0].mxu0 %v68
  %v172 = vpop.f32.mrb[0].mxu0
  %v173 = vadd.f32 0.0, %v172
  %v174 = vpop.f32.mrb[0].mxu0
  %v175 = vpop.f32.mrb[0].mxu0
  %v176 = vadd.f32 0.0, %v175
  %v177 = vpop.f32.mrb[0].mxu0
  %178 = vmatprep.mubr.bf16.mxu0 0
  %179 = vmatmul.mubr.bf16.gmra.mrb[0].mxu0 %v69
  %v180 = vpop.f32.mrb[0].mxu0
  %v181 = vadd.f32 0.0, %v180
  %v182 = vpop.f32.mrb[0].mxu0
  %v183 = vpop.f32.mrb[0].mxu0
  %v184 = vadd.f32 0.0, %v183
  %v185 = vpop.f32.mrb[0].mxu0
  %186 = vdwg.mxu0
  %v187 = vld [vmem:[%s0] sm:$0xf]
  %v188 = vld [vmem:[%s0 + $0x4] sm:$0xf]
  %v189 = vld [vmem:[%s0 + $0x8] sm:$0xf]
  %v190 = vld [vmem:[%s0 + $0xc] sm:$0xf]
  %v191 = vld [vmem:[%s0 + $0x10] sm:$0xf]
  %v192 = vld [vmem:[%s0 + $0x14] sm:$0xf]
  %v193 = vld [vmem:[%s0 + $0x18] sm:$0xf]
  %v194 = vld [vmem:[%s0 + $0x1c] sm:$0xf]
  %v195 = vunpack.c.l.bf16 %v187
  %v196 = vunpack.c.l.bf16 %v188
  %v197 = vunpack.c.l.bf16 %v189
  %v198 = vunpack.c.l.bf16 %v190
  %v199 = vunpack.c.l.bf16 %v191
  %v200 = vunpack.c.l.bf16 %v192
  %v201 = vunpack.c.l.bf16 %v193
  %v202 = vunpack.c.l.bf16 %v194
  %v203 = vld [vmem:[%s3] sm:$0x1]
  %205 = vset.pattern.permute.xlu0 0
  %206 = vperm.xlu0 %205, %v157
  %v207 = vpop.permute.xlu0 %206
  %210 = vset.pattern.permute.xlu0 0
  %211 = vperm.xlu0 %210, %v160
  %v212 = vpop.permute.xlu0 %211
  %215 = vset.pattern.permute.xlu0 0
  %216 = vperm.xlu0 %215, %v165
  %v217 = vpop.permute.xlu0 %216
  %220 = vset.pattern.permute.xlu0 0
  %221 = vperm.xlu0 %220, %v168
  %v222 = vpop.permute.xlu0 %221
  %225 = vset.pattern.permute.xlu0 0
  %226 = vperm.xlu0 %225, %v173
  %v227 = vpop.permute.xlu0 %226
  %230 = vset.pattern.permute.xlu0 0
  %231 = vperm.xlu0 %230, %v176
  %v232 = vpop.permute.xlu0 %231
  %235 = vset.pattern.permute.xlu0 0
  %236 = vperm.xlu0 %235, %v181
  %v237 = vpop.permute.xlu0 %236
  %240 = vset.pattern.permute.xlu0 0
  %241 = vperm.xlu0 %240, %v184
  %v242 = vpop.permute.xlu0 %241
  %v245 = vlaneseq
  %v246 = vshrl.u32 %v245, 7
  %v247 = vsub.s32 0, %v246
  %v248 = vrot.slane %v203, %v247
  %v250 = vadd.f32 %v207, %v248
  %v251 = vadd.f32 %v212, %v248
  %v252 = vadd.f32 %v217, %v248
  %v253 = vadd.f32 %v222, %v248
  %v254 = vadd.f32 %v227, %v248
  %v255 = vadd.f32 %v232, %v248
  %v256 = vadd.f32 %v237, %v248
  %v257 = vadd.f32 %v242, %v248
  %vm258 = vcmp.gt.f32.partialorder %v250, 0.0
  %vm259 = vcmp.gt.f32.partialorder %v251, 0.0
  %vm260 = vcmp.gt.f32.partialorder %v252, 0.0
  %vm261 = vcmp.gt.f32.partialorder %v253, 0.0
  %vm262 = vcmp.gt.f32.partialorder %v254, 0.0
  %vm263 = vcmp.gt.f32.partialorder %v255, 0.0
  %vm264 = vcmp.gt.f32.partialorder %v256, 0.0
  %vm265 = vcmp.gt.f32.partialorder %v257, 0.0
  %v266 = vmul.f32 %v250, 0.2
  %v267 = vmul.f32 %v251, 0.2
  %v268 = vmul.f32 %v252, 0.2
  %v269 = vmul.f32 %v253, 0.2
  %v270 = vmul.f32 %v254, 0.2
  %v271 = vmul.f32 %v255, 0.2
  %v272 = vmul.f32 %v256, 0.2
  %v273 = vmul.f32 %v257, 0.2
  %v274 = vsel %vm258, %v250, %v266
  %v275 = vsel %vm259, %v251, %v267
  %v276 = vsel %vm260, %v252, %v268
  %v277 = vsel %vm261, %v253, %v269
  %v278 = vsel %vm262, %v254, %v270
  %v279 = vsel %vm263, %v255, %v271
  %v280 = vsel %vm264, %v256, %v272
  %v281 = vsel %vm265, %v257, %v273
  %v282 = vadd.f32 %v274, %v195
  %v283 = vadd.f32 %v275, %v196
  %v284 = vadd.f32 %v276, %v197
  %v285 = vadd.f32 %v277, %v198
  %v286 = vadd.f32 %v278, %v199
  %v287 = vadd.f32 %v279, %v200
  %v288 = vadd.f32 %v280, %v201
  %v289 = vadd.f32 %v281, %v202
  %vm290 = vcmask 523264
  %v291 = vsel %vm290, %v282, -inf
  %292 = vmax.xlane.f32.xlu0 %v291
  %v293 = vpop.xlane.xlu0 %292
  %v294 = vsel %vm290, %v283, -inf
  %295 = vmax.xlane.f32.xlu0 %v294
  %v296 = vpop.xlane.xlu0 %295
  %v297 = vsel %vm290, %v284, -inf
  %298 = vmax.xlane.f32.xlu0 %v297
  %v299 = vpop.xlane.xlu0 %298
  %v300 = vsel %vm290, %v285, -inf
  %301 = vmax.xlane.f32.xlu0 %v300
  %v302 = vpop.xlane.xlu0 %301
  %v303 = vsel %vm290, %v286, -inf
  %304 = vmax.xlane.f32.xlu0 %v303
  %v305 = vpop.xlane.xlu0 %304
  %v306 = vsel %vm290, %v287, -inf
  %307 = vmax.xlane.f32.xlu0 %v306
  %v308 = vpop.xlane.xlu0 %307
  %v309 = vsel %vm290, %v288, -inf
  %310 = vmax.xlane.f32.xlu0 %v309
  %v311 = vpop.xlane.xlu0 %310
  %v312 = vsel %vm290, %v289, -inf
  %313 = vmax.xlane.f32.xlu0 %v312
  %v314 = vpop.xlane.xlu0 %313
  %v315 = vsub.f32 %v282, %v293
  %v316 = vsub.f32 %v283, %v296
  %v317 = vsub.f32 %v284, %v299
  %v318 = vsub.f32 %v285, %v302
  %v319 = vsub.f32 %v286, %v305
  %v320 = vsub.f32 %v287, %v308
  %v321 = vsub.f32 %v288, %v311
  %v322 = vsub.f32 %v289, %v314
  %v323 = vmul.f32 %v315, 1.442695
  %v324 = vpow.pop %v323
  %v325 = vmul.f32 %v316, 1.442695
  %v326 = vpow.pop %v325
  %v327 = vmul.f32 %v317, 1.442695
  %v328 = vpow.pop %v327
  %v329 = vmul.f32 %v318, 1.442695
  %v330 = vpow.pop %v329
  %v331 = vmul.f32 %v319, 1.442695
  %v332 = vpow.pop %v331
  %v333 = vmul.f32 %v320, 1.442695
  %v334 = vpow.pop %v333
  %v335 = vmul.f32 %v321, 1.442695
  %v336 = vpow.pop %v335
  %v337 = vmul.f32 %v322, 1.442695
  %v338 = vpow.pop %v337
  %v339 = vsel %vm290, %v324, 0.0
  %340 = vadd.xlane.f32.xlu0 %v339
  %v341 = vpop.xlane.xlu0 %340
  %v342 = vsel %vm290, %v326, 0.0
  %343 = vadd.xlane.f32.xlu0 %v342
  %v344 = vpop.xlane.xlu0 %343
  %v345 = vsel %vm290, %v328, 0.0
  %346 = vadd.xlane.f32.xlu0 %v345
  %v347 = vpop.xlane.xlu0 %346
  %v348 = vsel %vm290, %v330, 0.0
  %349 = vadd.xlane.f32.xlu0 %v348
  %v350 = vpop.xlane.xlu0 %349
  %v351 = vsel %vm290, %v332, 0.0
  %352 = vadd.xlane.f32.xlu0 %v351
  %v353 = vpop.xlane.xlu0 %352
  %v354 = vsel %vm290, %v334, 0.0
  %355 = vadd.xlane.f32.xlu0 %v354
  %v356 = vpop.xlane.xlu0 %355
  %v357 = vsel %vm290, %v336, 0.0
  %358 = vadd.xlane.f32.xlu0 %v357
  %v359 = vpop.xlane.xlu0 %358
  %v360 = vsel %vm290, %v338, 0.0
  %361 = vadd.xlane.f32.xlu0 %v360
  %v362 = vpop.xlane.xlu0 %361
  %v363 = vrcp.pop %v341
  %v364 = vrcp.pop %v344
  %v365 = vrcp.pop %v347
  %v366 = vrcp.pop %v350
  %v367 = vrcp.pop %v353
  %v368 = vrcp.pop %v356
  %v369 = vrcp.pop %v359
  %v370 = vrcp.pop %v362
  %v371 = vmul.f32 %v324, %v363
  %v372 = vmul.f32 %v326, %v364
  %v373 = vmul.f32 %v328, %v365
  %v374 = vmul.f32 %v330, %v366
  %v375 = vmul.f32 %v332, %v367
  %v376 = vmul.f32 %v334, %v368
  %v377 = vmul.f32 %v336, %v369
  %v378 = vmul.f32 %v338, %v370
  %v379 = vpack.c.bf16 %v372, %v371
  %v380 = vpack.c.bf16 %v374, %v373
  %v381 = vpack.c.bf16 %v376, %v375
  %v382 = vpack.c.bf16 %v378, %v377
  %v383 = vld [vmem:[%s1] sm:$0xf]
  %v384 = vld [vmem:[%s1 + $0x4] sm:$0xf]
  %v385 = vld [vmem:[%s1 + $0x8] sm:$0xf]
  %v386 = vld [vmem:[%s1 + $0xc] sm:$0xf]
  %v387 = vld [vmem:[%s1 + $0x10] sm:$0xf]
  %v388 = vld [vmem:[%s1 + $0x14] sm:$0xf]
  %v389 = vld [vmem:[%s1 + $0x18] sm:$0xf]
  %v390 = vld [vmem:[%s1 + $0x1c] sm:$0xf]
  %v391 = vld [vmem:[%s4] sm:$0x1]
  %v393 = vlaneseq
  %v394 = vshrl.u32 %v393, 7
  %v395 = vsub.s32 0, %v394
  %v396 = vrot.slane %v391, %v395
  %v406 = vunpack.c.l.b16 %v383
  %v407 = vunpack.c.l.b16 %v384
  %v408 = vunpack.c.l.b16 %v385
  %v409 = vunpack.c.l.b16 %v386
  %v410 = vunpack.c.l.b16 %v387
  %v411 = vunpack.c.l.b16 %v388
  %v412 = vunpack.c.l.b16 %v389
  %v413 = vunpack.c.l.b16 %v390
  %v414 = vpack.c.b16 %v407, %v406
  %v415 = vpack.c.b16 %v409, %v408
  %v416 = vpack.c.b16 %v411, %v410
  %v417 = vpack.c.b16 %v413, %v412
  %v423 = vsel %vm290, %v379, 0
  %v426 = vsel %vm290, %v380, 0
  %v429 = vsel %vm290, %v381, 0
  %v432 = vsel %vm290, %v382, 0
  %434 = vmatprep.subr.bf16.mxu0 0
  %435 = vmatpush1.bf16.msra.mxu0 %v414
  %436 = vmatprep.subr.bf16.mxu0 0
  %437 = vmatpush1.bf16.msra.mxu0 %v415
  %438 = vmatprep.subr.bf16.mxu0 0
  %439 = vmatpush1.bf16.msra.mxu0 %v416
  %440 = vmatprep.subr.bf16.mxu0 0
  %441 = vmatpush1.bf16.msra.mxu0 %v417
  %442 = vmatprep.subr.bf16.mxu0 0
  %443 = vmatpush1.bf16.msra.mxu0 0
  %444 = vmatprep.subr.bf16.mxu0 0
  %445 = vmatpush1.bf16.msra.mxu0 0
  %446 = vmatprep.subr.bf16.mxu0 0
  %447 = vmatpush1.bf16.msra.mxu0 0
  %448 = vmatprep.subr.bf16.mxu0 0
  %449 = vmatpush1.bf16.msra.mxu0 0
  %450 = vmatprep.subr.bf16.mxu0 0
  %451 = vmatpush1.bf16.msra.mxu0 0
  %452 = vmatprep.subr.bf16.mxu0 0
  %453 = vmatpush1.bf16.msra.mxu0 0
  %454 = vmatprep.subr.bf16.mxu0 0
  %455 = vmatpush1.bf16.msra.mxu0 0
  %456 = vmatprep.subr.bf16.mxu0 0
  %457 = vmatpush1.bf16.msra.mxu0 0
  %458 = vmatprep.subr.bf16.mxu0 0
  %459 = vmatpush1.bf16.msra.mxu0 0
  %460 = vmatprep.subr.bf16.mxu0 0
  %461 = vmatpush1.bf16.msra.mxu0 0
  %462 = vmatprep.subr.bf16.mxu0 0
  %463 = vmatpush1.bf16.msra.mxu0 0
  %464 = vmatprep.subr.bf16.mxu0 0
  %465 = vmatpush1.bf16.msra.mxu0 0
  %466 = vmatprep.mubr.bf16.mxu0 0
  %467 = vmatmul.mubr.bf16.gmra.mrb[0].mxu0 %v423
  %v468 = vpop.f32.mrb[0].mxu0
  %v469 = vadd.f32 %v396, %v468
  %v470 = vpop.f32.mrb[0].mxu0
  %v471 = vpop.f32.mrb[0].mxu0
  %v472 = vadd.f32 %v396, %v471
  %v473 = vpop.f32.mrb[0].mxu0
  %474 = vmatprep.mubr.bf16.mxu0 0
  %475 = vmatmul.mubr.bf16.gmra.mrb[0].mxu0 %v426
  %v476 = vpop.f32.mrb[0].mxu0
  %v477 = vadd.f32 %v396, %v476
  %v478 = vpop.f32.mrb[0].mxu0
  %v479 = vpop.f32.mrb[0].mxu0
  %v480 = vadd.f32 %v396, %v479
  %v481 = vpop.f32.mrb[0].mxu0
  %482 = vmatprep.mubr.bf16.mxu0 0
  %483 = vmatmul.mubr.bf16.gmra.mrb[0].mxu0 %v429
  %v484 = vpop.f32.mrb[0].mxu0
  %v485 = vadd.f32 %v396, %v484
  %v486 = vpop.f32.mrb[0].mxu0
  %v487 = vpop.f32.mrb[0].mxu0
  %v488 = vadd.f32 %v396, %v487
  %v489 = vpop.f32.mrb[0].mxu0
  %490 = vmatprep.mubr.bf16.mxu0 0
  %491 = vmatmul.mubr.bf16.gmra.mrb[0].mxu0 %v432
  %v492 = vpop.f32.mrb[0].mxu0
  %v493 = vadd.f32 %v396, %v492
  %v494 = vpop.f32.mrb[0].mxu0
  %v495 = vpop.f32.mrb[0].mxu0
  %v496 = vadd.f32 %v396, %v495
  %v497 = vpop.f32.mrb[0].mxu0
  %498 = vdwg.mxu0
  %v499 = vpack.c.bf16 %v472, %v469
  %v500 = vpack.c.bf16 %v480, %v477
  %v501 = vpack.c.bf16 %v488, %v485
  %v502 = vpack.c.bf16 %v496, %v493
  %v507 = vunpack.c.l.b16 %v499
  %v508 = vunpack.c.h.b16 %v499
  %v509 = vunpack.c.l.b16 %v500
  %v510 = vunpack.c.h.b16 %v500
  %v511 = vunpack.c.l.b16 %v501
  %v512 = vunpack.c.h.b16 %v501
  %v513 = vunpack.c.l.b16 %v502
  %v514 = vunpack.c.h.b16 %v502
  %v515 = vpack.c.b16 %v507, %v507
  %v516 = vpack.c.b16 %v508, %v508
  %v517 = vpack.c.b16 %v509, %v509
  %v518 = vpack.c.b16 %v510, %v510
  %v519 = vpack.c.b16 %v511, %v511
  %v520 = vpack.c.b16 %v512, %v512
  %v521 = vpack.c.b16 %v513, %v513
  %v522 = vpack.c.b16 %v514, %v514
  %531 = vst [vmem:[%s5] sm:$0xf] %v515
  %532 = vst [vmem:[%s5 + $0x4] sm:$0xf] %v516
  %533 = vst [vmem:[%s5 + $0x8] sm:$0xf] %v517
  %534 = vst [vmem:[%s5 + $0xc] sm:$0xf] %v518
  %535 = vst [vmem:[%s5 + $0x10] sm:$0xf] %v519
  %536 = vst [vmem:[%s5 + $0x14] sm:$0xf] %v520
  %537 = vst [vmem:[%s5 + $0x18] sm:$0xf] %v521
  %538 = vst [vmem:[%s5 + $0x1c] sm:$0xf] %v522
  // Predicated region
  $region22: #{forward.10} parent=0 // pred_check
    _
  $region23: #{forward.10} parent=0 // pred_check_branch
    %540 = sbr.rel (0) target = $region25
  $region24: #{forward.10} parent=0 // pred_region
    _
  $region25: #{forward.10} parent=0 // pred_fallthru
    _
  // Predicated region
  $region26: #{forward.10} parent=0 // pred_check
    _
  $region27: #{forward.10} parent=0 // pred_check_branch
    %542 = sbr.rel (0) target = $region29
  $region28: #{forward.10} parent=0 // pred_region
    _
  $region29: #{forward.10} parent=0 // pred_fallthru
    _

// kernel: forward.11
$region0: #{forward.11}
  #allocation0 [shape = 'u32[]', space=smem, size = 0x4, offset = 0x4, fixed_abs, tag = 'smem constant byte address 0x4 - core index']
  #allocation1 [shape = 'u32[144,128]{1,0:T(1,128)}', space=vmem, size = 0x12000, scoped, tag = 'internal scratch']
  %s0 = inlined_call_operand.vmem [shape: bf16[64,128], index: 0, kind: input, shape index: {}]
  %s1 = inlined_call_operand.vmem [shape: bf16[128,128], index: 1, kind: input, shape index: {}]
  %s2 = inlined_call_operand.vmem [shape: f32[1,128], index: 2, kind: input, shape index: {}]
  %s3 = inlined_call_operand.vmem [shape: bf16[128,128], index: 3, kind: input, shape index: {}]
  %s4 = inlined_call_operand.vmem [shape: f32[1,128], index: 4, kind: input, shape index: {}]
  %s5 = inlined_call_operand.vmem [shape: f32[64,128], index: 5, kind: output, shape index: {}]
  %s6 = sld [smem:[#allocation0]]
  $region30: #{forward.11} parent=0
    _
  %s8 = ssub.s32 1, %s6
  %s9 = scalar_select 0, %s8, %s6
  // Predicated region
  $region2: #{forward.11} parent=0 // pred_check
    _
  $region3: #{forward.11} parent=0 // pred_check_branch
    %11 = sbr.rel (0) target = $region5
  $region4: #{forward.11} parent=0 // pred_region
    _
  $region5: #{forward.11} parent=0 // pred_fallthru
    _
  // Predicated region
  $region6: #{forward.11} parent=0 // pred_check
    _
  $region7: #{forward.11} parent=0 // pred_check_branch
    %13 = sbr.rel (0) target = $region9
  $region8: #{forward.11} parent=0 // pred_region
    _
  $region9: #{forward.11} parent=0 // pred_fallthru
    _
  // Predicated region
  $region10: #{forward.11} parent=0 // pred_check
    _
  $region11: #{forward.11} parent=0 // pred_check_branch
    %15 = sbr.rel (0) target = $region13
  $region12: #{forward.11} parent=0 // pred_region
    _
  $region13: #{forward.11} parent=0 // pred_fallthru
    _
  // Predicated region
  $region14: #{forward.11} parent=0 // pred_check
    _
  $region15: #{forward.11} parent=0 // pred_check_branch
    %17 = sbr.rel (0) target = $region17
  $region16: #{forward.11} parent=0 // pred_region
    _
  $region17: #{forward.11} parent=0 // pred_fallthru
    _
  // Predicated region
  $region18: #{forward.11} parent=0 // pred_check
    _
  $region19: #{forward.11} parent=0 // pred_check_branch
    %19 = sbr.rel (0) target = $region21
  $region20: #{forward.11} parent=0 // pred_region
    _
  $region21: #{forward.11} parent=0 // pred_fallthru
    _
  %v21 = vld [vmem:[%s0] sm:$0xf]
  %v22 = vld [vmem:[%s0 + $0x4] sm:$0xf]
  %v23 = vld [vmem:[%s0 + $0x8] sm:$0xf]
  %v24 = vld [vmem:[%s0 + $0xc] sm:$0xf]
  %v25 = vld [vmem:[%s0 + $0x10] sm:$0xf]
  %v26 = vld [vmem:[%s0 + $0x14] sm:$0xf]
  %v27 = vld [vmem:[%s0 + $0x18] sm:$0xf]
  %v28 = vld [vmem:[%s0 + $0x1c] sm:$0xf]
  %v29 = vld [vmem:[%s1] sm:$0xf]
  %v30 = vld [vmem:[%s1 + $0x4] sm:$0xf]
  %v31 = vld [vmem:[%s1 + $0x8] sm:$0xf]
  %v32 = vld [vmem:[%s1 + $0xc] sm:$0xf]
  %v33 = vld [vmem:[%s1 + $0x10] sm:$0xf]
  %v34 = vld [vmem:[%s1 + $0x14] sm:$0xf]
  %v35 = vld [vmem:[%s1 + $0x18] sm:$0xf]
  %v36 = vld [vmem:[%s1 + $0x1c] sm:$0xf]
  %v37 = vld [vmem:[%s1 + $0x20] sm:$0xf]
  %v38 = vld [vmem:[%s1 + $0x24] sm:$0xf]
  %v39 = vld [vmem:[%s1 + $0x28] sm:$0xf]
  %v40 = vld [vmem:[%s1 + $0x2c] sm:$0xf]
  %v41 = vld [vmem:[%s1 + $0x30] sm:$0xf]
  %v42 = vld [vmem:[%s1 + $0x34] sm:$0xf]
  %v43 = vld [vmem:[%s1 + $0x38] sm:$0xf]
  %v44 = vld [vmem:[%s1 + $0x3c] sm:$0xf]
  %v45 = vld [vmem:[%s2] sm:$0x1]
  %v47 = vlaneseq
  %v48 = vshrl.u32 %v47, 7
  %v49 = vsub.s32 0, %v48
  %v50 = vrot.slane %v45, %v49
  %v60 = vunpack.c.l.b16 %v21
  %v61 = vunpack.c.l.b16 %v22
  %v62 = vunpack.c.l.b16 %v23
  %v63 = vunpack.c.l.b16 %v24
  %v64 = vunpack.c.l.b16 %v25
  %v65 = vunpack.c.l.b16 %v26
  %v66 = vunpack.c.l.b16 %v27
  %v67 = vunpack.c.l.b16 %v28
  %v68 = vpack.c.b16 %v61, %v60
  %v69 = vpack.c.b16 %v63, %v62
  %v70 = vpack.c.b16 %v65, %v64
  %v71 = vpack.c.b16 %v67, %v66
  %v92 = vunpack.c.l.b16 %v29
  %v93 = vunpack.c.l.b16 %v30
  %v94 = vunpack.c.l.b16 %v31
  %v95 = vunpack.c.l.b16 %v32
  %v96 = vunpack.c.l.b16 %v33
  %v97 = vunpack.c.l.b16 %v34
  %v98 = vunpack.c.l.b16 %v35
  %v99 = vunpack.c.l.b16 %v36
  %v100 = vunpack.c.l.b16 %v37
  %v101 = vunpack.c.l.b16 %v38
  %v102 = vunpack.c.l.b16 %v39
  %v103 = vunpack.c.l.b16 %v40
  %v104 = vunpack.c.l.b16 %v41
  %v105 = vunpack.c.l.b16 %v42
  %v106 = vunpack.c.l.b16 %v43
  %v107 = vunpack.c.l.b16 %v44
  %v108 = vpack.c.b16 %v93, %v92
  %v109 = vpack.c.b16 %v95, %v94
  %v110 = vpack.c.b16 %v97, %v96
  %v111 = vpack.c.b16 %v99, %v98
  %v112 = vpack.c.b16 %v101, %v100
  %v113 = vpack.c.b16 %v103, %v102
  %v114 = vpack.c.b16 %v105, %v104
  %v115 = vpack.c.b16 %v107, %v106
  %124 = vmatprep.subr.bf16.mxu0 0
  %125 = vmatpush1.bf16.msra.mxu0 %v108
  %126 = vmatprep.subr.bf16.mxu0 0
  %127 = vmatpush1.bf16.msra.mxu0 %v109
  %128 = vmatprep.subr.bf16.mxu0 0
  %129 = vmatpush1.bf16.msra.mxu0 %v110
  %130 = vmatprep.subr.bf16.mxu0 0
  %131 = vmatpush1.bf16.msra.mxu0 %v111
  %132 = vmatprep.subr.bf16.mxu0 0
  %133 = vmatpush1.bf16.msra.mxu0 %v112
  %134 = vmatprep.subr.bf16.mxu0 0
  %135 = vmatpush1.bf16.msra.mxu0 %v113
  %136 = vmatprep.subr.bf16.mxu0 0
  %137 = vmatpush1.bf16.msra.mxu0 %v114
  %138 = vmatprep.subr.bf16.mxu0 0
  %139 = vmatpush1.bf16.msra.mxu0 %v115
  %140 = vmatprep.subr.bf16.mxu0 0
  %141 = vmatpush1.bf16.msra.mxu0 0
  %142 = vmatprep.subr.bf16.mxu0 0
  %143 = vmatpush1.bf16.msra.mxu0 0
  %144 = vmatprep.subr.bf16.mxu0 0
  %145 = vmatpush1.bf16.msra.mxu0 0
  %146 = vmatprep.subr.bf16.mxu0 0
  %147 = vmatpush1.bf16.msra.mxu0 0
  %148 = vmatprep.subr.bf16.mxu0 0
  %149 = vmatpush1.bf16.msra.mxu0 0
  %150 = vmatprep.subr.bf16.mxu0 0
  %151 = vmatpush1.bf16.msra.mxu0 0
  %152 = vmatprep.subr.bf16.mxu0 0
  %153 = vmatpush1.bf16.msra.mxu0 0
  %154 = vmatprep.subr.bf16.mxu0 0
  %155 = vmatpush1.bf16.msra.mxu0 0
  %156 = vmatprep.mubr.bf16.mxu0 0
  %157 = vmatmul.mubr.bf16.gmra.mrb[0].mxu0 %v68
  %v158 = vpop.f32.mrb[0].mxu0
  %v159 = vadd.f32 %v50, %v158
  %v160 = vpop.f32.mrb[0].mxu0
  %v161 = vpop.f32.mrb[0].mxu0
  %v162 = vadd.f32 %v50, %v161
  %v163 = vpop.f32.mrb[0].mxu0
  %164 = vmatprep.mubr.bf16.mxu0 0
  %165 = vmatmul.mubr.bf16.gmra.mrb[0].mxu0 %v69
  %v166 = vpop.f32.mrb[0].mxu0
  %v167 = vadd.f32 %v50, %v166
  %v168 = vpop.f32.mrb[0].mxu0
  %v169 = vpop.f32.mrb[0].mxu0
  %v170 = vadd.f32 %v50, %v169
  %v171 = vpop.f32.mrb[0].mxu0
  %172 = vmatprep.mubr.bf16.mxu0 0
  %173 = vmatmul.mubr.bf16.gmra.mrb[0].mxu0 %v70
  %v174 = vpop.f32.mrb[0].mxu0
  %v175 = vadd.f32 %v50, %v174
  %v176 = vpop.f32.mrb[0].mxu0
  %v177 = vpop.f32.mrb[0].mxu0
  %v178 = vadd.f32 %v50, %v177
  %v179 = vpop.f32.mrb[0].mxu0
  %180 = vmatprep.mubr.bf16.mxu0 0
  %181 = vmatmul.mubr.bf16.gmra.mrb[0].mxu0 %v71
  %v182 = vpop.f32.mrb[0].mxu0
  %v183 = vadd.f32 %v50, %v182
  %v184 = vpop.f32.mrb[0].mxu0
  %v185 = vpop.f32.mrb[0].mxu0
  %v186 = vadd.f32 %v50, %v185
  %v187 = vpop.f32.mrb[0].mxu0
  %188 = vdwg.mxu0
  %vm189 = vcmp.gt.f32.partialorder %v159, 0.0
  %vm190 = vcmp.gt.f32.partialorder %v162, 0.0
  %vm191 = vcmp.gt.f32.partialorder %v167, 0.0
  %vm192 = vcmp.gt.f32.partialorder %v170, 0.0
  %vm193 = vcmp.gt.f32.partialorder %v175, 0.0
  %vm194 = vcmp.gt.f32.partialorder %v178, 0.0
  %vm195 = vcmp.gt.f32.partialorder %v183, 0.0
  %vm196 = vcmp.gt.f32.partialorder %v186, 0.0
  %v197 = vmul.f32 %v159, 0.01
  %v198 = vmul.f32 %v162, 0.01
  %v199 = vmul.f32 %v167, 0.01
  %v200 = vmul.f32 %v170, 0.01
  %v201 = vmul.f32 %v175, 0.01
  %v202 = vmul.f32 %v178, 0.01
  %v203 = vmul.f32 %v183, 0.01
  %v204 = vmul.f32 %v186, 0.01
  %v205 = vsel %vm189, %v159, %v197
  %v206 = vsel %vm190, %v162, %v198
  %v207 = vsel %vm191, %v167, %v199
  %v208 = vsel %vm192, %v170, %v200
  %v209 = vsel %vm193, %v175, %v201
  %v210 = vsel %vm194, %v178, %v202
  %v211 = vsel %vm195, %v183, %v203
  %v212 = vsel %vm196, %v186, %v204
  %v213 = vpack.c.bf16 %v206, %v205
  %v214 = vpack.c.bf16 %v208, %v207
  %v215 = vpack.c.bf16 %v210, %v209
  %v216 = vpack.c.bf16 %v212, %v211
  %v217 = vld [vmem:[%s3] sm:$0xf]
  %v218 = vld [vmem:[%s3 + $0x4] sm:$0xf]
  %v219 = vld [vmem:[%s3 + $0x8] sm:$0xf]
  %v220 = vld [vmem:[%s3 + $0xc] sm:$0xf]
  %v221 = vld [vmem:[%s3 + $0x10] sm:$0xf]
  %v222 = vld [vmem:[%s3 + $0x14] sm:$0xf]
  %v223 = vld [vmem:[%s3 + $0x18] sm:$0xf]
  %v224 = vld [vmem:[%s3 + $0x1c] sm:$0xf]
  %v225 = vld [vmem:[%s3 + $0x20] sm:$0xf]
  %v226 = vld [vmem:[%s3 + $0x24] sm:$0xf]
  %v227 = vld [vmem:[%s3 + $0x28] sm:$0xf]
  %v228 = vld [vmem:[%s3 + $0x2c] sm:$0xf]
  %v229 = vld [vmem:[%s3 + $0x30] sm:$0xf]
  %v230 = vld [vmem:[%s3 + $0x34] sm:$0xf]
  %v231 = vld [vmem:[%s3 + $0x38] sm:$0xf]
  %v232 = vld [vmem:[%s3 + $0x3c] sm:$0xf]
  %v233 = vld [vmem:[%s4] sm:$0x1]
  %v235 = vlaneseq
  %v236 = vshrl.u32 %v235, 7
  %v237 = vsub.s32 0, %v236
  %v238 = vrot.slane %v233, %v237
  %v256 = vunpack.c.l.b16 %v217
  %v257 = vunpack.c.l.b16 %v218
  %v258 = vunpack.c.l.b16 %v219
  %v259 = vunpack.c.l.b16 %v220
  %v260 = vunpack.c.l.b16 %v221
  %v261 = vunpack.c.l.b16 %v222
  %v262 = vunpack.c.l.b16 %v223
  %v263 = vunpack.c.l.b16 %v224
  %v264 = vunpack.c.l.b16 %v225
  %v265 = vunpack.c.l.b16 %v226
  %v266 = vunpack.c.l.b16 %v227
  %v267 = vunpack.c.l.b16 %v228
  %v268 = vunpack.c.l.b16 %v229
  %v269 = vunpack.c.l.b16 %v230
  %v270 = vunpack.c.l.b16 %v231
  %v271 = vunpack.c.l.b16 %v232
  %v272 = vpack.c.b16 %v257, %v256
  %v273 = vpack.c.b16 %v259, %v258
  %v274 = vpack.c.b16 %v261, %v260
  %v275 = vpack.c.b16 %v263, %v262
  %v276 = vpack.c.b16 %v265, %v264
  %v277 = vpack.c.b16 %v267, %v266
  %v278 = vpack.c.b16 %v269, %v268
  %v279 = vpack.c.b16 %v271, %v270
  %288 = vmatprep.subr.bf16.mxu0 0
  %289 = vmatpush1.bf16.msra.mxu0 %v272
  %290 = vmatprep.subr.bf16.mxu0 0
  %291 = vmatpush1.bf16.msra.mxu0 %v273
  %292 = vmatprep.subr.bf16.mxu0 0
  %293 = vmatpush1.bf16.msra.mxu0 %v274
  %294 = vmatprep.subr.bf16.mxu0 0
  %295 = vmatpush1.bf16.msra.mxu0 %v275
  %296 = vmatprep.subr.bf16.mxu0 0
  %297 = vmatpush1.bf16.msra.mxu0 %v276
  %298 = vmatprep.subr.bf16.mxu0 0
  %299 = vmatpush1.bf16.msra.mxu0 %v277
  %300 = vmatprep.subr.bf16.mxu0 0
  %301 = vmatpush1.bf16.msra.mxu0 %v278
  %302 = vmatprep.subr.bf16.mxu0 0
  %303 = vmatpush1.bf16.msra.mxu0 %v279
  %304 = vmatprep.subr.bf16.mxu0 0
  %305 = vmatpush1.bf16.msra.mxu0 0
  %306 = vmatprep.subr.bf16.mxu0 0
  %307 = vmatpush1.bf16.msra.mxu0 0
  %308 = vmatprep.subr.bf16.mxu0 0
  %309 = vmatpush1.bf16.msra.mxu0 0
  %310 = vmatprep.subr.bf16.mxu0 0
  %311 = vmatpush1.bf16.msra.mxu0 0
  %312 = vmatprep.subr.bf16.mxu0 0
  %313 = vmatpush1.bf16.msra.mxu0 0
  %314 = vmatprep.subr.bf16.mxu0 0
  %315 = vmatpush1.bf16.msra.mxu0 0
  %316 = vmatprep.subr.bf16.mxu0 0
  %317 = vmatpush1.bf16.msra.mxu0 0
  %318 = vmatprep.subr.bf16.mxu0 0
  %319 = vmatpush1.bf16.msra.mxu0 0
  %320 = vmatprep.mubr.bf16.mxu0 0
  %321 = vmatmul.mubr.bf16.gmra.mrb[0].mxu0 %v213
  %v322 = vpop.f32.mrb[0].mxu0
  %v323 = vadd.f32 %v238, %v322
  %v324 = vpop.f32.mrb[0].mxu0
  %v325 = vpop.f32.mrb[0].mxu0
  %v326 = vadd.f32 %v238, %v325
  %v327 = vpop.f32.mrb[0].mxu0
  %328 = vmatprep.mubr.bf16.mxu0 0
  %329 = vmatmul.mubr.bf16.gmra.mrb[0].mxu0 %v214
  %v330 = vpop.f32.mrb[0].mxu0
  %v331 = vadd.f32 %v238, %v330
  %v332 = vpop.f32.mrb[0].mxu0
  %v333 = vpop.f32.mrb[0].mxu0
  %v334 = vadd.f32 %v238, %v333
  %v335 = vpop.f32.mrb[0].mxu0
  %336 = vmatprep.mubr.bf16.mxu0 0
  %337 = vmatmul.mubr.bf16.gmra.mrb[0].mxu0 %v215
  %v338 = vpop.f32.mrb[0].mxu0
  %v339 = vadd.f32 %v238, %v338
  %v340 = vpop.f32.mrb[0].mxu0
  %v341 = vpop.f32.mrb[0].mxu0
  %v342 = vadd.f32 %v238, %v341
  %v343 = vpop.f32.mrb[0].mxu0
  %344 = vmatprep.mubr.bf16.mxu0 0
  %345 = vmatmul.mubr.bf16.gmra.mrb[0].mxu0 %v216
  %v346 = vpop.f32.mrb[0].mxu0
  %v347 = vadd.f32 %v238, %v346
  %v348 = vpop.f32.mrb[0].mxu0
  %v349 = vpop.f32.mrb[0].mxu0
  %v350 = vadd.f32 %v238, %v349
  %v351 = vpop.f32.mrb[0].mxu0
  %352 = vdwg.mxu0
  %353 = vst [vmem:[%s5] sm:$0xff] %v323
  %354 = vst [vmem:[%s5 + $0x8] sm:$0xff] %v326
  %355 = vst [vmem:[%s5 + $0x10] sm:$0xff] %v331
  %356 = vst [vmem:[%s5 + $0x18] sm:$0xff] %v334
  %357 = vst [vmem:[%s5 + $0x20] sm:$0xff] %v339
  %358 = vst [vmem:[%s5 + $0x28] sm:$0xff] %v342
  %359 = vst [vmem:[%s5 + $0x30] sm:$0xff] %v347
  %360 = vst [vmem:[%s5 + $0x38] sm:$0xff] %v350
  // Predicated region
  $region22: #{forward.11} parent=0 // pred_check
    _
  $region23: #{forward.11} parent=0 // pred_check_branch
    %362 = sbr.rel (0) target = $region25
  $region24: #{forward.11} parent=0 // pred_region
    _
  $region25: #{forward.11} parent=0 // pred_fallthru
    _
  // Predicated region
  $region26: #{forward.11} parent=0 // pred_check
    _
  $region27: #{forward.11} parent=0 // pred_check_branch
    %364 = sbr.rel (0) target = $region29
  $region28: #{forward.11} parent=0 // pred_region
    _
  $region29: #{forward.11} parent=0 // pred_fallthru
    _

</llo_original>
